<compile_context>
chip_gen: v7x
topology: tpu7x:2x2x1
jax: 0.10.0
libtpu: 0.0.40
codegen_flags: <defaults>
</compile_context>

<pallas_src>
import functools

import jax
import jax.numpy as jnp
from jax import lax
from jax.experimental import pallas as pl
from jax.experimental.pallas import tpu as pltpu

LANE = 128
VMEM_LIMIT = 48 * 1024 * 1024  # safe on v5e/v6e (128 MiB) and v7x (64 MiB physical)


def _ru(v, m=LANE):
    return ((v + m - 1) // m) * m


def _pad2(a, rows, cols):
    out = jnp.zeros((rows, cols), a.dtype)
    return out.at[: a.shape[0], : a.shape[1]].set(a)


# ----------------------------------------------------------------------------
# Kernel 1: E_GCL node update.
# grid = (node_tiles, edge_tiles); edge axis is a reduction ("arbitrary") with a
# (TN, hidden) f32 accumulator; scatter-add is a (TN, TE) one-hot matmul on the MXU.
# ----------------------------------------------------------------------------
def _egcl_kernel(h_ref, e1_ref, row_ref, we2_ref, be2_ref, wnode_ref, bnode_ref,
                 wn2_ref, bn2_ref, out_ref, acc_ref):
    k = pl.program_id(1)

    @pl.when(k == 0)
    def _():
        acc_ref[...] = jnp.zeros_like(acc_ref)

    # edge MLP (layer-1 pre-activation streamed in): SiLU -> Linear -> SiLU
    m1 = jax.nn.silu(e1_ref[...].astype(jnp.float32))                       # (TE, Hp)
    m2 = jax.nn.silu(
        jnp.dot(m1.astype(jnp.bfloat16), we2_ref[...],
                preferred_element_type=jnp.float32) + be2_ref[...])         # (TE, Hp)

    # unsorted_segment_sum over destination node for THIS node tile only
    tn = acc_ref.shape[0]
    te = m2.shape[0]
    node_ids = lax.broadcasted_iota(jnp.int32, (tn, te), 0) + pl.program_id(0) * tn
    onehot = (node_ids == row_ref[...]).astype(jnp.float32).astype(jnp.bfloat16)
    acc_ref[...] += jnp.dot(onehot, m2.astype(jnp.bfloat16),
                            preferred_element_type=jnp.float32)             # (TN, Hp)

    @pl.when(k == pl.num_programs(1) - 1)
    def _():
        h = h_ref[...]                                                      # (TN, Fp)
        # node MLP on cat([h, agg]) — single fused matmul
        hin = jnp.concatenate([h, acc_ref[...]], axis=-1).astype(jnp.bfloat16)
        n1 = jax.nn.silu(
            jnp.dot(hin, wnode_ref[...], preferred_element_type=jnp.float32)
            + bnode_ref[...])
        out = jnp.dot(n1.astype(jnp.bfloat16), wn2_ref[...],
                      preferred_element_type=jnp.float32) + bn2_ref[...]
        out_ref[...] = h + out                                              # residual


def egcl_pallas(h_p, e1_p, row_p, p, *, tn, te):
    n_pad, indim_p = h_p.shape
    e_pad, hidden_p = e1_p.shape
    grid = (n_pad // tn, e_pad // te)

    def full(a):
        nd = a.ndim
        return pl.BlockSpec(a.shape, lambda i, k: (0,) * nd)

    return pl.pallas_call(
        _egcl_kernel,
        out_shape=jax.ShapeDtypeStruct((n_pad, indim_p), jnp.float32),
        grid=grid,
        in_specs=[
            pl.BlockSpec((tn, indim_p), lambda i, k: (i, 0)),   # h (node tile)
            pl.BlockSpec((te, hidden_p), lambda i, k: (k, 0)),  # edge-MLP layer-1 pre-act
            pl.BlockSpec((1, te), lambda i, k: (0, k)),         # destination node ids
            full(p["we2"]), full(p["be2"]),
            full(p["wnode"]), full(p["bnode"]),
            full(p["wn2"]), full(p["bn2"]),
        ],
        out_specs=pl.BlockSpec((tn, indim_p), lambda i, k: (i, 0)),
        scratch_shapes=[pltpu.VMEM((tn, hidden_p), jnp.float32)],
        compiler_params=pltpu.CompilerParams(
            dimension_semantics=("parallel", "arbitrary"),
            vmem_limit_bytes=VMEM_LIMIT),
    )(h_p, e1_p, row_p, p["we2"], p["be2"], p["wnode"], p["bnode"], p["wn2"], p["bn2"])


# ----------------------------------------------------------------------------
# Kernel 2: SE(3)-invariant radius-masked attention (flash-style online softmax)
# fused with the combiner MLP (Linear -> ReLU -> LayerNorm -> Linear) epilogue.
# grid = (q_tiles, kv_tiles).
# ----------------------------------------------------------------------------
def _attn_comb_kernel(xq_ref, xk_ref, cq_ref, ck_ref, xg_ref,
                      wq_ref, bq_ref, wkv_ref, bkv_ref, wo_ref, bo_ref,
                      w1_ref, b1_ref, g_ref, bt_ref, w2_ref, b2_ref,
                      y_ref, q_sc, m_sc, l_sc, acc_sc,
                      *, hidden_real, n_real, r2):
    j = pl.program_id(1)
    d_p = acc_sc.shape[1]
    tk = xk_ref.shape[0]

    @pl.when(j == 0)
    def _():
        # query projection once per query tile (1/sqrt(dim_head) folded into wq/bq)
        q_sc[...] = jnp.dot(xq_ref[...].astype(jnp.bfloat16), wq_ref[...],
                            preferred_element_type=jnp.float32) + bq_ref[...]
        m_sc[...] = jnp.full_like(m_sc, -jnp.inf)
        l_sc[...] = jnp.zeros_like(l_sc)
        acc_sc[...] = jnp.zeros_like(acc_sc)

    # fused K|V projection of this key/value tile
    kv = jnp.dot(xk_ref[...].astype(jnp.bfloat16), wkv_ref[...],
                 preferred_element_type=jnp.float32) + bkv_ref[...]
    kk = kv[:, :d_p]
    vv = kv[:, d_p:]

    s = lax.dot_general(q_sc[...].astype(jnp.bfloat16), kk.astype(jnp.bfloat16),
                        (((1,), (1,)), ((), ())),
                        preferred_element_type=jnp.float32)                 # (TQ, TK)

    # SE(3)-invariant neighbourhood mask: pairwise |ci - cj|^2 via augmented coords
    d2 = lax.dot_general(cq_ref[...], ck_ref[...], (((1,), (1,)), ((), ())),
                         preferred_element_type=jnp.float32)
    key_ids = lax.broadcasted_iota(jnp.int32, s.shape, 1) + j * tk
    valid = jnp.logical_and(d2 <= r2, key_ids < n_real)
    s = jnp.where(valid, s, -1e30)

    # online softmax update (stats in f32)
    m_new = jnp.maximum(m_sc[...], jnp.max(s, axis=-1, keepdims=True))
    alpha = jnp.exp(m_sc[...] - m_new)
    p = jnp.exp(s - m_new)
    l_sc[...] = alpha * l_sc[...] + jnp.sum(p, axis=-1, keepdims=True)
    acc_sc[...] = alpha * acc_sc[...] + jnp.dot(
        p.astype(jnp.bfloat16), vv.astype(jnp.bfloat16),
        preferred_element_type=jnp.float32)
    m_sc[...] = m_new

    @pl.when(j == pl.num_programs(1) - 1)
    def _():
        o = acc_sc[...] * pl.reciprocal(l_sc[...], approx=True)
        x_tf = jnp.dot(o.astype(jnp.bfloat16), wo_ref[...],
                       preferred_element_type=jnp.float32) + bo_ref[...]
        combined = xg_ref[...] + x_tf          # module: combined = x_gnn + x_tf
        h1 = jax.nn.relu(
            jnp.dot(combined.astype(jnp.bfloat16), w1_ref[...],
                    preferred_element_type=jnp.float32) + b1_ref[...])
        # LayerNorm over the REAL hidden lanes only (rest is zero padding)
        lane = lax.broadcasted_iota(jnp.int32, h1.shape, 1)
        lmask = (lane < hidden_real).astype(jnp.float32)
        mu = jnp.sum(h1 * lmask, axis=-1, keepdims=True) / hidden_real
        diff = (h1 - mu) * lmask
        var = jnp.sum(diff * diff, axis=-1, keepdims=True) / hidden_real
        ln = diff * lax.rsqrt(var + 1e-5) * g_ref[...] + bt_ref[...]
        y_ref[...] = jnp.dot(ln.astype(jnp.bfloat16), w2_ref[...],
                             preferred_element_type=jnp.float32) + b2_ref[...]


def attn_combiner_pallas(x_p, cq_p, ck_p, x_gnn, attn_p, comb_p, *,
                         tq, tk, hidden_real, n_real, valid_radius, ydim_p):
    n_pad, indim_p = x_p.shape
    cdim = cq_p.shape[1]
    dh_p = attn_p["bq"].shape[1]
    grid = (n_pad // tq, n_pad // tk)

    def full(a):
        nd = a.ndim
        return pl.BlockSpec(a.shape, lambda i, j: (0,) * nd)

    kern = functools.partial(_attn_comb_kernel, hidden_real=hidden_real,
                             n_real=n_real, r2=float(valid_radius) ** 2)

    return pl.pallas_call(
        kern,
        out_shape=jax.ShapeDtypeStruct((n_pad, ydim_p), jnp.float32),
        grid=grid,
        in_specs=[
            pl.BlockSpec((tq, indim_p), lambda i, j: (i, 0)),   # x  (query tile)
            pl.BlockSpec((tk, indim_p), lambda i, j: (j, 0)),   # x  (key/value tile)
            pl.BlockSpec((tq, cdim), lambda i, j: (i, 0)),      # aug coords (q side)
            pl.BlockSpec((tk, cdim), lambda i, j: (j, 0)),      # aug coords (k side)
            pl.BlockSpec((tq, indim_p), lambda i, j: (i, 0)),   # x_gnn (for combiner)
            full(attn_p["wq"]), full(attn_p["bq"]),
            full(attn_p["wkv"]), full(attn_p["bkv"]),
            full(attn_p["wo"]), full(attn_p["bo"]),
            full(comb_p["w1"]), full(comb_p["b1"]),
            full(comb_p["gamma"]), full(comb_p["beta"]),
            full(comb_p["w2"]), full(comb_p["b2"]),
        ],
        out_specs=pl.BlockSpec((tq, ydim_p), lambda i, j: (i, 0)),
        scratch_shapes=[
            pltpu.VMEM((tq, dh_p), jnp.float32),   # cached q projection
            pltpu.VMEM((tq, 1), jnp.float32),      # running row max
            pltpu.VMEM((tq, 1), jnp.float32),      # running row sum
            pltpu.VMEM((tq, dh_p), jnp.float32),   # output accumulator
        ],
        compiler_params=pltpu.CompilerParams(
            dimension_semantics=("parallel", "arbitrary"),
            vmem_limit_bytes=VMEM_LIMIT),
    )(x_p, x_p, cq_p, ck_p, x_gnn,
      attn_p["wq"], attn_p["bq"], attn_p["wkv"], attn_p["bkv"],
      attn_p["wo"], attn_p["bo"],
      comb_p["w1"], comb_p["b1"], comb_p["gamma"], comb_p["beta"],
      comb_p["w2"], comb_p["b2"])


# ----------------------------------------------------------------------------
# Parameters (deterministic, in-script).  Weights are zero-padded to 128-lane
# feature dims and stored in bf16 (MXU operands); biases / LN params stay f32.
# ----------------------------------------------------------------------------
def init_params(key, indim, hidden, outdim, edgedim, ydim, dim_head):
    indim_p, hidden_p, dh_p, ydim_p = _ru(indim), _ru(hidden), _ru(dim_head), _ru(ydim)
    ks = iter(jax.random.split(key, 40))
    w = lambda i, o: 0.1 * jax.random.normal(next(ks), (i, o), jnp.float32)
    b = lambda o: 0.01 * jax.random.normal(next(ks), (1, o), jnp.float32)

    # E_GCL: edge-MLP layer-1 split so cat([h_i, h_j, r_ij, e_ij]) @ W folds into
    # per-node projections + per-edge terms (evaluated in plain-JAX glue).
    glue = dict(we1_src=w(indim, hidden), we1_dst=w(indim, hidden),
                w_rad=w(1, hidden), we1_edge=w(edgedim, hidden), be1=b(hidden))

    wn1h, wn1a = w(indim, hidden), w(hidden, hidden)
    egcl = dict(
        we2=_pad2(w(hidden, hidden), hidden_p, hidden_p).astype(jnp.bfloat16),
        be2=_pad2(b(hidden), 1, hidden_p),
        wnode=jnp.concatenate([_pad2(wn1h, indim_p, hidden_p),
                               _pad2(wn1a, hidden_p, hidden_p)],
                              axis=0).astype(jnp.bfloat16),
        bnode=_pad2(b(hidden), 1, hidden_p),
        wn2=_pad2(w(hidden, indim), hidden_p, indim_p).astype(jnp.bfloat16),
        bn2=_pad2(b(indim), 1, indim_p),
    )

    # degree-0 SE(3) attention; softmax scale folded into wq / bq.
    scale = 1.0 / (dim_head ** 0.5)
    wk, bk = w(indim, dim_head), b(dim_head)
    wv, bv = w(indim, dim_head), b(dim_head)
    attn = dict(
        wq=_pad2(w(indim, dim_head) * scale, indim_p, dh_p).astype(jnp.bfloat16),
        bq=_pad2(b(dim_head) * scale, 1, dh_p),
        wkv=jnp.concatenate([_pad2(wk, indim_p, dh_p),
                             _pad2(wv, indim_p, dh_p)], axis=1).astype(jnp.bfloat16),
        bkv=jnp.concatenate([_pad2(bk, 1, dh_p), _pad2(bv, 1, dh_p)], axis=1),
        wo=_pad2(w(dim_head, indim), dh_p, indim_p).astype(jnp.bfloat16),
        bo=_pad2(b(indim), 1, indim_p),
    )

    # combiner (note: module requires indim == 2*outdim for x_gnn + x_tf to feed it)
    comb = dict(
        w1=_pad2(w(2 * outdim, hidden), indim_p, hidden_p).astype(jnp.bfloat16),
        b1=_pad2(b(hidden), 1, hidden_p),
        gamma=_pad2(jnp.ones((1, hidden), jnp.float32), 1, hidden_p),
        beta=jnp.zeros((1, hidden_p), jnp.float32),
        w2=_pad2(w(hidden, ydim), hidden_p, ydim_p).astype(jnp.bfloat16),
        b2=_pad2(b(ydim), 1, ydim_p),
    )
    return glue, egcl, attn, comb


# ----------------------------------------------------------------------------
# Full SE3GTLayer forward
# ----------------------------------------------------------------------------
def se3gt_forward(x, edge_index, edge_attr, coords, params, *,
                  ydim, valid_radius, tn=128, tq=128, tk=128, te=256):
    glue, egcl_p, attn_p, comb_p = params
    n, indim = x.shape
    hidden = glue["be1"].shape[1]
    hidden_p = egcl_p["be2"].shape[1]
    indim_p = egcl_p["bn2"].shape[1]
    ydim_p = comb_p["b2"].shape[1]

    n_pad = _ru(n, tq)
    row = edge_index[0].astype(jnp.int32)
    col = edge_index[1].astype(jnp.int32)
    e = row.shape[0]
    e_pad = _ru(e, te)

    # ---- E_GCL glue: coord2radial + folded edge-MLP layer 1 (per-node projections) ----
    coord_diff = coords[row] - coords[col]
    radial = jnp.sum(coord_diff * coord_diff, axis=1, keepdims=True)          # (E, 1)
    proj_src = x @ glue["we1_src"]                                            # (N, hidden)
    proj_dst = x @ glue["we1_dst"]
    e1 = (proj_src[row] + proj_dst[col] + radial * glue["w_rad"]
          + edge_attr @ glue["we1_edge"] + glue["be1"])                       # (E, hidden)
    e1_p = jnp.pad(e1, ((0, e_pad - e), (0, hidden_p - hidden))).astype(jnp.bfloat16)
    row_p = jnp.pad(row, ((0, e_pad - e),), constant_values=-1).reshape(1, e_pad)

    # ---- padded node tensors; augmented coords give |ci-cj|^2 as one dot in-kernel ----
    x_p = jnp.pad(x, ((0, n_pad - n), (0, indim_p - indim)))
    csq = jnp.sum(coords * coords, axis=1, keepdims=True)
    one = jnp.ones_like(csq)
    cq_aug = jnp.concatenate([coords, csq, one], axis=1)            # [ c, |c|^2, 1 ]
    ck_aug = jnp.concatenate([-2.0 * coords, one, csq], axis=1)     # [-2c, 1, |c|^2]
    cq_p = jnp.pad(cq_aug, ((0, n_pad - n), (0, LANE - cq_aug.shape[1])))
    ck_p = jnp.pad(ck_aug, ((0, n_pad - n), (0, LANE - ck_aug.shape[1])))

    x_gnn = egcl_pallas(x_p, e1_p, row_p, egcl_p, tn=tn, te=te)
    y_p = attn_combiner_pallas(x_p, cq_p, ck_p, x_gnn, attn_p, comb_p,
                               tq=tq, tk=tk, hidden_real=hidden, n_real=n,
                               valid_radius=valid_radius, ydim_p=ydim_p)
    return y_p[:n, :ydim]


if __name__ == "__main__":
    # Small shapes implied by the module (indim == 2*outdim so x_gnn + x_tf feeds
    # Linear(2*outdim, hidden)).  N is NOT a multiple of 128 to exercise padding.
    N, indim, hidden, outdim, edgedim, ydim = 200, 32, 32, 16, 4, 8
    dim_head, valid_radius = 64, 10.0

    key = jax.random.PRNGKey(0)
    kx, kc, ke, kp = jax.random.split(key, 4)

    x = jax.random.normal(kx, (N, indim), jnp.float32)
    coords = jax.random.normal(kc, (N, 3), jnp.float32)

    # fully-connected graph without self loops (E = N*(N-1))
    src, dst = jnp.meshgrid(jnp.arange(N), jnp.arange(N), indexing="ij")
    keep = (src != dst).reshape(-1)
    edge_index = jnp.stack([src.reshape(-1)[keep], dst.reshape(-1)[keep]],
                           axis=0).astype(jnp.int32)
    E = edge_index.shape[1]
    edge_attr = jax.random.normal(ke, (E, edgedim), jnp.float32)

    params = init_params(kp, indim, hidden, outdim, edgedim, ydim, dim_head)

    fwd = jax.jit(lambda x_, ei_, ea_, c_, p_: se3gt_forward(
        x_, ei_, ea_, c_, p_, ydim=ydim, valid_radius=valid_radius))
    y = fwd(x, edge_index, edge_attr, coords, params)
    y = jax.block_until_ready(y)
    assert y.shape == (N, ydim) and bool(jnp.all(jnp.isfinite(y)))
    print("KERNEL_OK")
</pallas_src>

<mosaic_0001>
module attributes {stable_mosaic.version = 11 : i64} {
  func.func @_egcl_kernel(%arg0: i32, %arg1: i32, %arg2: memref<128x128xf32, #tpu.memory_space<vmem>>, %arg3: memref<256x128xbf16, #tpu.memory_space<vmem>>, %arg4: memref<1x256xi32, #tpu.memory_space<vmem>>, %arg5: memref<128x128xbf16, #tpu.memory_space<vmem>>, %arg6: memref<1x128xf32, #tpu.memory_space<vmem>>, %arg7: memref<256x128xbf16, #tpu.memory_space<vmem>>, %arg8: memref<1x128xf32, #tpu.memory_space<vmem>>, %arg9: memref<128x128xbf16, #tpu.memory_space<vmem>>, %arg10: memref<1x128xf32, #tpu.memory_space<vmem>>, %arg11: memref<128x128xf32, #tpu.memory_space<vmem>>, %arg12: memref<128x128xf32, #tpu.memory_space<vmem>>) attributes {dimension_semantics = [#tpu.dimension_semantics<parallel>, #tpu.dimension_semantics<arbitrary>], iteration_bounds = array<i64: 2, 156>, scalar_prefetch = 0 : i64, scratch_operands = 1 : i64, tpu.core_type = #tpu.core_type<tc>, window_params = [{transform_indices = @transform_0, window_bounds = array<i64: 128, 128>}, {transform_indices = @transform_1, window_bounds = array<i64: 256, 128>}, {transform_indices = @transform_2, window_bounds = array<i64: 1, 256>}, {pipeline_mode = #tpu.pipeline_mode<synchronous>, transform_indices = @transform_3, window_bounds = array<i64: 128, 128>}, {pipeline_mode = #tpu.pipeline_mode<synchronous>, transform_indices = @transform_4, window_bounds = array<i64: 1, 128>}, {pipeline_mode = #tpu.pipeline_mode<synchronous>, transform_indices = @transform_5, window_bounds = array<i64: 256, 128>}, {pipeline_mode = #tpu.pipeline_mode<synchronous>, transform_indices = @transform_6, window_bounds = array<i64: 1, 128>}, {pipeline_mode = #tpu.pipeline_mode<synchronous>, transform_indices = @transform_7, window_bounds = array<i64: 128, 128>}, {pipeline_mode = #tpu.pipeline_mode<synchronous>, transform_indices = @transform_8, window_bounds = array<i64: 1, 128>}, {transform_indices = @transform_9, window_bounds = array<i64: 128, 128>}]} {
    %c0_i32 = arith.constant 0 : i32
    %0 = arith.cmpi eq, %arg1, %c0_i32 : i32
    %1 = arith.extui %0 : i1 to i32
    %c0_i32_0 = arith.constant 0 : i32
    %2 = arith.cmpi ne, %1, %c0_i32_0 : i32
    scf.if %2 {
      %cst_16 = arith.constant 0.000000e+00 : f32
      %41 = vector.broadcast %cst_16 : f32 to vector<128x128xf32>
      %c0_17 = arith.constant 0 : index
      %c0_18 = arith.constant 0 : index
      %42 = vector.load %arg12[%c0_17, %c0_18] : memref<128x128xf32, #tpu.memory_space<vmem>>, vector<128x128xf32>
      tpu.vector_store %arg12[%c0_17, %c0_18], %41 {strides = array<i32>} : memref<128x128xf32, #tpu.memory_space<vmem>>, vector<128x128xf32>,
    } else {
    }
    %c0 = arith.constant 0 : index
    %c0_1 = arith.constant 0 : index
    %3 = vector.load %arg3[%c0, %c0_1] : memref<256x128xbf16, #tpu.memory_space<vmem>>, vector<256x128xbf16>
    %4 = arith.extf %3 : vector<256x128xbf16> to vector<256x128xf32>
    %5 = arith.negf %4 : vector<256x128xf32>
    %6 = math.exp %5 : vector<256x128xf32>
    %cst = arith.constant 1.000000e+00 : f32
    %7 = vector.broadcast %cst : f32 to vector<256x128xf32>
    %8 = arith.addf %7, %6 : vector<256x128xf32>
    %9 = arith.divf %7, %8 : vector<256x128xf32>
    %10 = arith.mulf %4, %9 : vector<256x128xf32>
    %11 = arith.truncf %10 : vector<256x128xf32> to vector<256x128xbf16>
    %c0_2 = arith.constant 0 : index
    %c0_3 = arith.constant 0 : index
    %12 = vector.load %arg5[%c0_2, %c0_3] : memref<128x128xbf16, #tpu.memory_space<vmem>>, vector<128x128xbf16>
    %cst_4 = arith.constant dense<0.000000e+00> : vector<256x128xf32>
    %13 = tpu.matmul %11, %12, %cst_4 {dimension_numbers = #tpu.dot_dimension_numbers<[1], [0], [0], [1], [0, 0, 1, 1], [], []>} : vector<256x128xbf16>, vector<128x128xbf16>, vector<256x128xf32> -> vector<256x128xf32>
    %c0_5 = arith.constant 0 : index
    %c0_6 = arith.constant 0 : index
    %14 = vector.load %arg6[%c0_5, %c0_6] : memref<1x128xf32, #tpu.memory_space<vmem>>, vector<1x128xf32>
    %15 = vector.broadcast %14 : vector<1x128xf32> to vector<256x128xf32>
    %16 = arith.addf %13, %15 : vector<256x128xf32>
    %17 = arith.negf %16 : vector<256x128xf32>
    %18 = math.exp %17 : vector<256x128xf32>
    %cst_7 = arith.constant 1.000000e+00 : f32
    %19 = vector.broadcast %cst_7 : f32 to vector<256x128xf32>
    %20 = arith.addf %19, %18 : vector<256x128xf32>
    %21 = arith.divf %19, %20 : vector<256x128xf32>
    %22 = arith.mulf %16, %21 : vector<256x128xf32>
    %23 = tpu.iota {dimensions = array<i32: 0>} : vector<128x256xi32>
    %c128_i32 = arith.constant 128 : i32
    %24 = arith.muli %arg0, %c128_i32 : i32
    %25 = vector.broadcast %24 : i32 to vector<128x256xi32>
    %26 = arith.addi %23, %25 : vector<128x256xi32>
    %c0_8 = arith.constant 0 : index
    %c0_9 = arith.constant 0 : index
    %27 = vector.load %arg4[%c0_8, %c0_9] : memref<1x256xi32, #tpu.memory_space<vmem>>, vector<1x256xi32>
    %28 = vector.broadcast %27 : vector<1x256xi32> to vector<128x256xi32>
    %29 = arith.cmpi eq, %26, %28 : vector<128x256xi32>
    %30 = arith.extui %29 : vector<128x256xi1> to vector<128x256xi32>
    %31 = arith.sitofp %30 : vector<128x256xi32> to vector<128x256xf32>
    %32 = arith.truncf %31 : vector<128x256xf32> to vector<128x256xbf16>
    %c0_10 = arith.constant 0 : index
    %c0_11 = arith.constant 0 : index
    %33 = vector.load %arg12[%c0_10, %c0_11] : memref<128x128xf32, #tpu.memory_space<vmem>>, vector<128x128xf32>
    %34 = arith.truncf %22 : vector<256x128xf32> to vector<256x128xbf16>
    %cst_12 = arith.constant dense<0.000000e+00> : vector<128x128xf32>
    %35 = tpu.matmul %32, %34, %cst_12 {dimension_numbers = #tpu.dot_dimension_numbers<[1], [0], [0], [1], [0, 0, 1, 1], [], []>} : vector<128x256xbf16>, vector<256x128xbf16>, vector<128x128xf32> -> vector<128x128xf32>
    %36 = arith.addf %33, %35 : vector<128x128xf32>
    %c0_13 = arith.constant 0 : index
    %c0_14 = arith.constant 0 : index
    %37 = vector.load %arg12[%c0_13, %c0_14] : memref<128x128xf32, #tpu.memory_space<vmem>>, vector<128x128xf32>
    tpu.vector_store %arg12[%c0_13, %c0_14], %36 {strides = array<i32>} : memref<128x128xf32, #tpu.memory_space<vmem>>, vector<128x128xf32>,
    %c155_i32 = arith.constant 155 : i32
    %38 = arith.cmpi eq, %arg1, %c155_i32 : i32
    %39 = arith.extui %38 : i1 to i32
    %c0_i32_15 = arith.constant 0 : i32
    %40 = arith.cmpi ne, %39, %c0_i32_15 : i32
    scf.if %40 {
      %c0_16 = arith.constant 0 : index
      %c0_17 = arith.constant 0 : index
      %41 = vector.load %arg2[%c0_16, %c0_17] : memref<128x128xf32, #tpu.memory_space<vmem>>, vector<128x128xf32>
      %c0_18 = arith.constant 0 : index
      %c0_19 = arith.constant 0 : index
      %42 = vector.load %arg12[%c0_18, %c0_19] : memref<128x128xf32, #tpu.memory_space<vmem>>, vector<128x128xf32>
      %43 = tpu.concatenate %41, %42 in 1 : vector<128x128xf32>, vector<128x128xf32> -> vector<128x256xf32>
      %44 = arith.truncf %43 : vector<128x256xf32> to vector<128x256xbf16>
      %c0_20 = arith.constant 0 : index
      %c0_21 = arith.constant 0 : index
      %45 = vector.load %arg7[%c0_20, %c0_21] : memref<256x128xbf16, #tpu.memory_space<vmem>>, vector<256x128xbf16>
      %cst_22 = arith.constant dense<0.000000e+00> : vector<128x128xf32>
      %46 = tpu.matmul %44, %45, %cst_22 {dimension_numbers = #tpu.dot_dimension_numbers<[1], [0], [0], [1], [0, 0, 1, 1], [], []>} : vector<128x256xbf16>, vector<256x128xbf16>, vector<128x128xf32> -> vector<128x128xf32>
      %c0_23 = arith.constant 0 : index
      %c0_24 = arith.constant 0 : index
      %47 = vector.load %arg8[%c0_23, %c0_24] : memref<1x128xf32, #tpu.memory_space<vmem>>, vector<1x128xf32>
      %48 = vector.broadcast %47 : vector<1x128xf32> to vector<128x128xf32>
      %49 = arith.addf %46, %48 : vector<128x128xf32>
      %50 = arith.negf %49 : vector<128x128xf32>
      %51 = math.exp %50 : vector<128x128xf32>
      %cst_25 = arith.constant 1.000000e+00 : f32
      %52 = vector.broadcast %cst_25 : f32 to vector<128x128xf32>
      %53 = arith.addf %52, %51 : vector<128x128xf32>
      %54 = arith.divf %52, %53 : vector<128x128xf32>
      %55 = arith.mulf %49, %54 : vector<128x128xf32>
      %56 = arith.truncf %55 : vector<128x128xf32> to vector<128x128xbf16>
      %c0_26 = arith.constant 0 : index
      %c0_27 = arith.constant 0 : index
      %57 = vector.load %arg9[%c0_26, %c0_27] : memref<128x128xbf16, #tpu.memory_space<vmem>>, vector<128x128xbf16>
      %cst_28 = arith.constant dense<0.000000e+00> : vector<128x128xf32>
      %58 = tpu.matmul %56, %57, %cst_28 {dimension_numbers = #tpu.dot_dimension_numbers<[1], [0], [0], [1], [0, 0, 1, 1], [], []>} : vector<128x128xbf16>, vector<128x128xbf16>, vector<128x128xf32> -> vector<128x128xf32>
      %c0_29 = arith.constant 0 : index
      %c0_30 = arith.constant 0 : index
      %59 = vector.load %arg10[%c0_29, %c0_30] : memref<1x128xf32, #tpu.memory_space<vmem>>, vector<1x128xf32>
      %60 = vector.broadcast %59 : vector<1x128xf32> to vector<128x128xf32>
      %61 = arith.addf %58, %60 : vector<128x128xf32>
      %62 = arith.addf %41, %61 : vector<128x128xf32>
      %c0_31 = arith.constant 0 : index
      %c0_32 = arith.constant 0 : index
      %63 = vector.load %arg11[%c0_31, %c0_32] : memref<128x128xf32, #tpu.memory_space<vmem>>, vector<128x128xf32>
      tpu.vector_store %arg11[%c0_31, %c0_32], %62 {strides = array<i32>} : memref<128x128xf32, #tpu.memory_space<vmem>>, vector<128x128xf32>,
    } else {
    }
    return
  }
  func.func @transform_0(%arg0: i32, %arg1: i32) -> (i32, i32) {
    %c0_i32 = arith.constant 0 : i32
    %c0_i32_0 = arith.constant 0 : i32
    return %arg0, %c0_i32 : i32, i32
  }
  func.func @transform_1(%arg0: i32, %arg1: i32) -> (i32, i32) {
    %c0_i32 = arith.constant 0 : i32
    %c0_i32_0 = arith.constant 0 : i32
    return %arg1, %c0_i32 : i32, i32
  }
  func.func @transform_2(%arg0: i32, %arg1: i32) -> (i32, i32) {
    %c0_i32 = arith.constant 0 : i32
    %c0_i32_0 = arith.constant 0 : i32
    return %c0_i32, %arg1 : i32, i32
  }
  func.func @transform_3(%arg0: i32, %arg1: i32) -> (i32, i32) {
    %c0_i32 = arith.constant 0 : i32
    %c0_i32_0 = arith.constant 0 : i32
    %c0_i32_1 = arith.constant 0 : i32
    return %c0_i32, %c0_i32_0 : i32, i32
  }
  func.func @transform_4(%arg0: i32, %arg1: i32) -> (i32, i32) {
    %c0_i32 = arith.constant 0 : i32
    %c0_i32_0 = arith.constant 0 : i32
    %c0_i32_1 = arith.constant 0 : i32
    return %c0_i32, %c0_i32_0 : i32, i32
  }
  func.func @transform_5(%arg0: i32, %arg1: i32) -> (i32, i32) {
    %c0_i32 = arith.constant 0 : i32
    %c0_i32_0 = arith.constant 0 : i32
    %c0_i32_1 = arith.constant 0 : i32
    return %c0_i32, %c0_i32_0 : i32, i32
  }
  func.func @transform_6(%arg0: i32, %arg1: i32) -> (i32, i32) {
    %c0_i32 = arith.constant 0 : i32
    %c0_i32_0 = arith.constant 0 : i32
    %c0_i32_1 = arith.constant 0 : i32
    return %c0_i32, %c0_i32_0 : i32, i32
  }
  func.func @transform_7(%arg0: i32, %arg1: i32) -> (i32, i32) {
    %c0_i32 = arith.constant 0 : i32
    %c0_i32_0 = arith.constant 0 : i32
    %c0_i32_1 = arith.constant 0 : i32
    return %c0_i32, %c0_i32_0 : i32, i32
  }
  func.func @transform_8(%arg0: i32, %arg1: i32) -> (i32, i32) {
    %c0_i32 = arith.constant 0 : i32
    %c0_i32_0 = arith.constant 0 : i32
    %c0_i32_1 = arith.constant 0 : i32
    return %c0_i32, %c0_i32_0 : i32, i32
  }
  func.func @transform_9(%arg0: i32, %arg1: i32) -> (i32, i32) {
    %c0_i32 = arith.constant 0 : i32
    %c0_i32_0 = arith.constant 0 : i32
    return %arg0, %c0_i32 : i32, i32
  }
}

module attributes {stable_mosaic.version = 11 : i64} {
  func.func @_attn_comb_kernel(%arg0: i32, %arg1: i32, %arg2: memref<128x128xf32, #tpu.memory_space<vmem>>, %arg3: memref<128x128xf32, #tpu.memory_space<vmem>>, %arg4: memref<128x128xf32, #tpu.memory_space<vmem>>, %arg5: memref<128x128xf32, #tpu.memory_space<vmem>>, %arg6: memref<128x128xf32, #tpu.memory_space<vmem>>, %arg7: memref<128x128xbf16, #tpu.memory_space<vmem>>, %arg8: memref<1x128xf32, #tpu.memory_space<vmem>>, %arg9: memref<128x256xbf16, #tpu.memory_space<vmem>>, %arg10: memref<1x256xf32, #tpu.memory_space<vmem>>, %arg11: memref<128x128xbf16, #tpu.memory_space<vmem>>, %arg12: memref<1x128xf32, #tpu.memory_space<vmem>>, %arg13: memref<128x128xbf16, #tpu.memory_space<vmem>>, %arg14: memref<1x128xf32, #tpu.memory_space<vmem>>, %arg15: memref<1x128xf32, #tpu.memory_space<vmem>>, %arg16: memref<1x128xf32, #tpu.memory_space<vmem>>, %arg17: memref<128x128xbf16, #tpu.memory_space<vmem>>, %arg18: memref<1x128xf32, #tpu.memory_space<vmem>>, %arg19: memref<128x128xf32, #tpu.memory_space<vmem>>, %arg20: memref<128x128xf32, #tpu.memory_space<vmem>>, %arg21: memref<128x1xf32, #tpu.memory_space<vmem>>, %arg22: memref<128x1xf32, #tpu.memory_space<vmem>>, %arg23: memref<128x128xf32, #tpu.memory_space<vmem>>) attributes {dimension_semantics = [#tpu.dimension_semantics<parallel>, #tpu.dimension_semantics<arbitrary>], iteration_bounds = array<i64: 2, 2>, scalar_prefetch = 0 : i64, scratch_operands = 4 : i64, tpu.core_type = #tpu.core_type<tc>, window_params = [{transform_indices = @transform_0, window_bounds = array<i64: 128, 128>}, {transform_indices = @transform_1, window_bounds = array<i64: 128, 128>}, {transform_indices = @transform_2, window_bounds = array<i64: 128, 128>}, {transform_indices = @transform_3, window_bounds = array<i64: 128, 128>}, {transform_indices = @transform_4, window_bounds = array<i64: 128, 128>}, {pipeline_mode = #tpu.pipeline_mode<synchronous>, transform_indices = @transform_5, window_bounds = array<i64: 128, 128>}, {pipeline_mode = #tpu.pipeline_mode<synchronous>, transform_indices = @transform_6, window_bounds = array<i64: 1, 128>}, {pipeline_mode = #tpu.pipeline_mode<synchronous>, transform_indices = @transform_7, window_bounds = array<i64: 128, 256>}, {pipeline_mode = #tpu.pipeline_mode<synchronous>, transform_indices = @transform_8, window_bounds = array<i64: 1, 256>}, {pipeline_mode = #tpu.pipeline_mode<synchronous>, transform_indices = @transform_9, window_bounds = array<i64: 128, 128>}, {pipeline_mode = #tpu.pipeline_mode<synchronous>, transform_indices = @transform_10, window_bounds = array<i64: 1, 128>}, {pipeline_mode = #tpu.pipeline_mode<synchronous>, transform_indices = @transform_11, window_bounds = array<i64: 128, 128>}, {pipeline_mode = #tpu.pipeline_mode<synchronous>, transform_indices = @transform_12, window_bounds = array<i64: 1, 128>}, {pipeline_mode = #tpu.pipeline_mode<synchronous>, transform_indices = @transform_13, window_bounds = array<i64: 1, 128>}, {pipeline_mode = #tpu.pipeline_mode<synchronous>, transform_indices = @transform_14, window_bounds = array<i64: 1, 128>}, {pipeline_mode = #tpu.pipeline_mode<synchronous>, transform_indices = @transform_15, window_bounds = array<i64: 128, 128>}, {pipeline_mode = #tpu.pipeline_mode<synchronous>, transform_indices = @transform_16, window_bounds = array<i64: 1, 128>}, {transform_indices = @transform_17, window_bounds = array<i64: 128, 128>}]} {
    %c0_i32 = arith.constant 0 : i32
    %0 = arith.cmpi eq, %arg1, %c0_i32 : i32
    %1 = arith.extui %0 : i1 to i32
    %c0_i32_0 = arith.constant 0 : i32
    %2 = arith.cmpi ne, %1, %c0_i32_0 : i32
    scf.if %2 {
      %c0_34 = arith.constant 0 : index
      %c0_35 = arith.constant 0 : index
      %58 = vector.load %arg2[%c0_34, %c0_35] : memref<128x128xf32, #tpu.memory_space<vmem>>, vector<128x128xf32>
      %59 = arith.truncf %58 : vector<128x128xf32> to vector<128x128xbf16>
      %c0_36 = arith.constant 0 : index
      %c0_37 = arith.constant 0 : index
      %60 = vector.load %arg7[%c0_36, %c0_37] : memref<128x128xbf16, #tpu.memory_space<vmem>>, vector<128x128xbf16>
      %cst_38 = arith.constant dense<0.000000e+00> : vector<128x128xf32>
      %61 = tpu.matmul %59, %60, %cst_38 {dimension_numbers = #tpu.dot_dimension_numbers<[1], [0], [0], [1], [0, 0, 1, 1], [], []>} : vector<128x128xbf16>, vector<128x128xbf16>, vector<128x128xf32> -> vector<128x128xf32>
      %c0_39 = arith.constant 0 : index
      %c0_40 = arith.constant 0 : index
      %62 = vector.load %arg8[%c0_39, %c0_40] : memref<1x128xf32, #tpu.memory_space<vmem>>, vector<1x128xf32>
      %63 = vector.broadcast %62 : vector<1x128xf32> to vector<128x128xf32>
      %64 = arith.addf %61, %63 : vector<128x128xf32>
      %c0_41 = arith.constant 0 : index
      %c0_42 = arith.constant 0 : index
      %65 = vector.load %arg20[%c0_41, %c0_42] : memref<128x128xf32, #tpu.memory_space<vmem>>, vector<128x128xf32>
      tpu.vector_store %arg20[%c0_41, %c0_42], %64 {strides = array<i32>} : memref<128x128xf32, #tpu.memory_space<vmem>>, vector<128x128xf32>,
      %cst_43 = arith.constant 0xFF800000 : f32
      %66 = vector.broadcast %cst_43 : f32 to vector<128x1xf32>
      %c0_44 = arith.constant 0 : index
      %c0_45 = arith.constant 0 : index
      %67 = vector.load %arg21[%c0_44, %c0_45] : memref<128x1xf32, #tpu.memory_space<vmem>>, vector<128x1xf32>
      tpu.vector_store %arg21[%c0_44, %c0_45], %66 {strides = array<i32>} : memref<128x1xf32, #tpu.memory_space<vmem>>, vector<128x1xf32>,
      %cst_46 = arith.constant 0.000000e+00 : f32
      %68 = vector.broadcast %cst_46 : f32 to vector<128x1xf32>
      %c0_47 = arith.constant 0 : index
      %c0_48 = arith.constant 0 : index
      %69 = vector.load %arg22[%c0_47, %c0_48] : memref<128x1xf32, #tpu.memory_space<vmem>>, vector<128x1xf32>
      tpu.vector_store %arg22[%c0_47, %c0_48], %68 {strides = array<i32>} : memref<128x1xf32, #tpu.memory_space<vmem>>, vector<128x1xf32>,
      %cst_49 = arith.constant 0.000000e+00 : f32
      %70 = vector.broadcast %cst_49 : f32 to vector<128x128xf32>
      %c0_50 = arith.constant 0 : index
      %c0_51 = arith.constant 0 : index
      %71 = vector.load %arg23[%c0_50, %c0_51] : memref<128x128xf32, #tpu.memory_space<vmem>>, vector<128x128xf32>
      tpu.vector_store %arg23[%c0_50, %c0_51], %70 {strides = array<i32>} : memref<128x128xf32, #tpu.memory_space<vmem>>, vector<128x128xf32>,
    } else {
    }
    %c0 = arith.constant 0 : index
    %c0_1 = arith.constant 0 : index
    %3 = vector.load %arg3[%c0, %c0_1] : memref<128x128xf32, #tpu.memory_space<vmem>>, vector<128x128xf32>
    %4 = arith.truncf %3 : vector<128x128xf32> to vector<128x128xbf16>
    %c0_2 = arith.constant 0 : index
    %c0_3 = arith.constant 0 : index
    %5 = vector.load %arg9[%c0_2, %c0_3] : memref<128x256xbf16, #tpu.memory_space<vmem>>, vector<128x256xbf16>
    %cst = arith.constant dense<0.000000e+00> : vector<128x256xf32>
    %6 = tpu.matmul %4, %5, %cst {dimension_numbers = #tpu.dot_dimension_numbers<[1], [0], [0], [1], [0, 0, 1, 1], [], []>} : vector<128x128xbf16>, vector<128x256xbf16>, vector<128x256xf32> -> vector<128x256xf32>
    %c0_4 = arith.constant 0 : index
    %c0_5 = arith.constant 0 : index
    %7 = vector.load %arg10[%c0_4, %c0_5] : memref<1x256xf32, #tpu.memory_space<vmem>>, vector<1x256xf32>
    %8 = vector.broadcast %7 : vector<1x256xf32> to vector<128x256xf32>
    %9 = arith.addf %6, %8 : vector<128x256xf32>
    %10 = vector.extract_strided_slice %9 {offsets = [0, 0], sizes = [128, 128], strides = [1, 1]} : vector<128x256xf32> to vector<128x128xf32>
    %11 = vector.extract_strided_slice %9 {offsets = [0, 128], sizes = [128, 128], strides = [1, 1]} : vector<128x256xf32> to vector<128x128xf32>
    %c0_6 = arith.constant 0 : index
    %c0_7 = arith.constant 0 : index
    %12 = vector.load %arg20[%c0_6, %c0_7] : memref<128x128xf32, #tpu.memory_space<vmem>>, vector<128x128xf32>
    %13 = arith.truncf %12 : vector<128x128xf32> to vector<128x128xbf16>
    %14 = arith.truncf %10 : vector<128x128xf32> to vector<128x128xbf16>
    %cst_8 = arith.constant dense<0.000000e+00> : vector<128x128xf32>
    %15 = tpu.matmul %13, %14, %cst_8 {dimension_numbers = #tpu.dot_dimension_numbers<[1], [1], [0], [0], [0, 0, 1, 0], [], []>} : vector<128x128xbf16>, vector<128x128xbf16>, vector<128x128xf32> -> vector<128x128xf32>
    %c0_9 = arith.constant 0 : index
    %c0_10 = arith.constant 0 : index
    %16 = vector.load %arg4[%c0_9, %c0_10] : memref<128x128xf32, #tpu.memory_space<vmem>>, vector<128x128xf32>
    %c0_11 = arith.constant 0 : index
    %c0_12 = arith.constant 0 : index
    %17 = vector.load %arg5[%c0_11, %c0_12] : memref<128x128xf32, #tpu.memory_space<vmem>>, vector<128x128xf32>
    %cst_13 = arith.constant dense<0.000000e+00> : vector<128x128xf32>
    %18 = tpu.matmul %16, %17, %cst_13 {dimension_numbers = #tpu.dot_dimension_numbers<[1], [1], [0], [0], [0, 0, 1, 0], [], []>} : vector<128x128xf32>, vector<128x128xf32>, vector<128x128xf32> -> vector<128x128xf32>
    %19 = tpu.iota {dimensions = array<i32: 1>} : vector<128x128xi32>
    %c128_i32 = arith.constant 128 : i32
    %20 = arith.muli %arg1, %c128_i32 : i32
    %21 = vector.broadcast %20 : i32 to vector<128x128xi32>
    %22 = arith.addi %19, %21 : vector<128x128xi32>
    %cst_14 = arith.constant 1.000000e+02 : f32
    %23 = vector.broadcast %cst_14 : f32 to vector<128x128xf32>
    %24 = arith.cmpf ole, %18, %23 : vector<128x128xf32>
    %c200_i32 = arith.constant 200 : i32
    %25 = vector.broadcast %c200_i32 : i32 to vector<128x128xi32>
    %26 = arith.cmpi slt, %22, %25 : vector<128x128xi32>
    %27 = arith.andi %24, %26 : vector<128x128xi1>
    %cst_15 = arith.constant -1.000000e+30 : f32
    %28 = vector.broadcast %cst_15 : f32 to vector<128x128xf32>
    %29 = arith.select %27, %15, %28 : vector<128x128xi1>, vector<128x128xf32>
    %c0_16 = arith.constant 0 : index
    %c0_17 = arith.constant 0 : index
    %30 = vector.load %arg21[%c0_16, %c0_17] : memref<128x1xf32, #tpu.memory_space<vmem>>, vector<128x1xf32>
    %cst_18 = arith.constant dense<0xFF800000> : vector<128xf32>
    %31 = vector.multi_reduction <maximumf>, %29, %cst_18 [1] : vector<128x128xf32> to vector<128xf32>
    %32 = vector.shape_cast %31 : vector<128xf32> to vector<128x1xf32>
    %33 = arith.maximumf %30, %32 : vector<128x1xf32>
    %c0_19 = arith.constant 0 : index
    %c0_20 = arith.constant 0 : index
    %34 = vector.load %arg21[%c0_19, %c0_20] : memref<128x1xf32, #tpu.memory_space<vmem>>, vector<128x1xf32>
    %35 = arith.subf %34, %33 : vector<128x1xf32>
    %36 = math.exp %35 : vector<128x1xf32>
    %37 = vector.broadcast %33 : vector<128x1xf32> to vector<128x128xf32>
    %38 = arith.subf %29, %37 : vector<128x128xf32>
    %39 = math.exp %38 : vector<128x128xf32>
    %c0_21 = arith.constant 0 : index
    %c0_22 = arith.constant 0 : index
    %40 = vector.load %arg22[%c0_21, %c0_22] : memref<128x1xf32, #tpu.memory_space<vmem>>, vector<128x1xf32>
    %41 = arith.mulf %36, %40 : vector<128x1xf32>
    %cst_23 = arith.constant dense<0.000000e+00> : vector<128xf32>
    %42 = vector.multi_reduction <add>, %39, %cst_23 [1] : vector<128x128xf32> to vector<128xf32>
    %43 = vector.shape_cast %42 : vector<128xf32> to vector<128x1xf32>
    %44 = arith.addf %41, %43 : vector<128x1xf32>
    %c0_24 = arith.constant 0 : index
    %c0_25 = arith.constant 0 : index
    %45 = vector.load %arg22[%c0_24, %c0_25] : memref<128x1xf32, #tpu.memory_space<vmem>>, vector<128x1xf32>
    tpu.vector_store %arg22[%c0_24, %c0_25], %44 {strides = array<i32>} : memref<128x1xf32, #tpu.memory_space<vmem>>, vector<128x1xf32>,
    %c0_26 = arith.constant 0 : index
    %c0_27 = arith.constant 0 : index
    %46 = vector.load %arg23[%c0_26, %c0_27] : memref<128x128xf32, #tpu.memory_space<vmem>>, vector<128x128xf32>
    %47 = vector.broadcast %36 : vector<128x1xf32> to vector<128x128xf32>
    %48 = arith.mulf %47, %46 : vector<128x128xf32>
    %49 = arith.truncf %39 : vector<128x128xf32> to vector<128x128xbf16>
    %50 = arith.truncf %11 : vector<128x128xf32> to vector<128x128xbf16>
    %cst_28 = arith.constant dense<0.000000e+00> : vector<128x128xf32>
    %51 = tpu.matmul %49, %50, %cst_28 {dimension_numbers = #tpu.dot_dimension_numbers<[1], [0], [0], [1], [0, 0, 1, 1], [], []>} : vector<128x128xbf16>, vector<128x128xbf16>, vector<128x128xf32> -> vector<128x128xf32>
    %52 = arith.addf %48, %51 : vector<128x128xf32>
    %c0_29 = arith.constant 0 : index
    %c0_30 = arith.constant 0 : index
    %53 = vector.load %arg23[%c0_29, %c0_30] : memref<128x128xf32, #tpu.memory_space<vmem>>, vector<128x128xf32>
    tpu.vector_store %arg23[%c0_29, %c0_30], %52 {strides = array<i32>} : memref<128x128xf32, #tpu.memory_space<vmem>>, vector<128x128xf32>,
    %c0_31 = arith.constant 0 : index
    %c0_32 = arith.constant 0 : index
    %54 = vector.load %arg21[%c0_31, %c0_32] : memref<128x1xf32, #tpu.memory_space<vmem>>, vector<128x1xf32>
    tpu.vector_store %arg21[%c0_31, %c0_32], %33 {strides = array<i32>} : memref<128x1xf32, #tpu.memory_space<vmem>>, vector<128x1xf32>,
    %c1_i32 = arith.constant 1 : i32
    %55 = arith.cmpi eq, %arg1, %c1_i32 : i32
    %56 = arith.extui %55 : i1 to i32
    %c0_i32_33 = arith.constant 0 : i32
    %57 = arith.cmpi ne, %56, %c0_i32_33 : i32
    scf.if %57 {
      %c0_34 = arith.constant 0 : index
      %c0_35 = arith.constant 0 : index
      %58 = vector.load %arg23[%c0_34, %c0_35] : memref<128x128xf32, #tpu.memory_space<vmem>>, vector<128x128xf32>
      %c0_36 = arith.constant 0 : index
      %c0_37 = arith.constant 0 : index
      %59 = vector.load %arg22[%c0_36, %c0_37] : memref<128x1xf32, #tpu.memory_space<vmem>>, vector<128x1xf32>
      %60 = tpu.reciprocal %59 {approx = true} : vector<128x1xf32> -> vector<128x1xf32>
      %61 = vector.broadcast %60 : vector<128x1xf32> to vector<128x128xf32>
      %62 = arith.mulf %58, %61 : vector<128x128xf32>
      %63 = arith.truncf %62 : vector<128x128xf32> to vector<128x128xbf16>
      %c0_38 = arith.constant 0 : index
      %c0_39 = arith.constant 0 : index
      %64 = vector.load %arg11[%c0_38, %c0_39] : memref<128x128xbf16, #tpu.memory_space<vmem>>, vector<128x128xbf16>
      %cst_40 = arith.constant dense<0.000000e+00> : vector<128x128xf32>
      %65 = tpu.matmul %63, %64, %cst_40 {dimension_numbers = #tpu.dot_dimension_numbers<[1], [0], [0], [1], [0, 0, 1, 1], [], []>} : vector<128x128xbf16>, vector<128x128xbf16>, vector<128x128xf32> -> vector<128x128xf32>
      %c0_41 = arith.constant 0 : index
      %c0_42 = arith.constant 0 : index
      %66 = vector.load %arg12[%c0_41, %c0_42] : memref<1x128xf32, #tpu.memory_space<vmem>>, vector<1x128xf32>
      %67 = vector.broadcast %66 : vector<1x128xf32> to vector<128x128xf32>
      %68 = arith.addf %65, %67 : vector<128x128xf32>
      %c0_43 = arith.constant 0 : index
      %c0_44 = arith.constant 0 : index
      %69 = vector.load %arg6[%c0_43, %c0_44] : memref<128x128xf32, #tpu.memory_space<vmem>>, vector<128x128xf32>
      %70 = arith.addf %69, %68 : vector<128x128xf32>
      %71 = arith.truncf %70 : vector<128x128xf32> to vector<128x128xbf16>
      %c0_45 = arith.constant 0 : index
      %c0_46 = arith.constant 0 : index
      %72 = vector.load %arg13[%c0_45, %c0_46] : memref<128x128xbf16, #tpu.memory_space<vmem>>, vector<128x128xbf16>
      %cst_47 = arith.constant dense<0.000000e+00> : vector<128x128xf32>
      %73 = tpu.matmul %71, %72, %cst_47 {dimension_numbers = #tpu.dot_dimension_numbers<[1], [0], [0], [1], [0, 0, 1, 1], [], []>} : vector<128x128xbf16>, vector<128x128xbf16>, vector<128x128xf32> -> vector<128x128xf32>
      %c0_48 = arith.constant 0 : index
      %c0_49 = arith.constant 0 : index
      %74 = vector.load %arg14[%c0_48, %c0_49] : memref<1x128xf32, #tpu.memory_space<vmem>>, vector<1x128xf32>
      %75 = vector.broadcast %74 : vector<1x128xf32> to vector<128x128xf32>
      %76 = arith.addf %73, %75 : vector<128x128xf32>
      %cst_50 = arith.constant 0.000000e+00 : f32
      %77 = vector.broadcast %cst_50 : f32 to vector<128x128xf32>
      %78 = arith.maximumf %76, %77 : vector<128x128xf32>
      %79 = tpu.iota {dimensions = array<i32: 1>} : vector<128x128xi32>
      %c32_i32 = arith.constant 32 : i32
      %80 = vector.broadcast %c32_i32 : i32 to vector<128x128xi32>
      %81 = arith.cmpi slt, %79, %80 : vector<128x128xi32>
      %82 = arith.extui %81 : vector<128x128xi1> to vector<128x128xi32>
      %83 = arith.sitofp %82 : vector<128x128xi32> to vector<128x128xf32>
      %84 = arith.mulf %78, %83 : vector<128x128xf32>
      %cst_51 = arith.constant dense<0.000000e+00> : vector<128xf32>
      %85 = vector.multi_reduction <add>, %84, %cst_51 [1] : vector<128x128xf32> to vector<128xf32>
      %86 = vector.shape_cast %85 : vector<128xf32> to vector<128x1xf32>
      %cst_52 = arith.constant 3.200000e+01 : f32
      %87 = vector.broadcast %cst_52 : f32 to vector<128x1xf32>
      %88 = arith.divf %86, %87 : vector<128x1xf32>
      %89 = vector.broadcast %88 : vector<128x1xf32> to vector<128x128xf32>
      %90 = arith.subf %78, %89 : vector<128x128xf32>
      %91 = arith.mulf %90, %83 : vector<128x128xf32>
      %92 = arith.mulf %91, %91 : vector<128x128xf32>
      %cst_53 = arith.constant dense<0.000000e+00> : vector<128xf32>
      %93 = vector.multi_reduction <add>, %92, %cst_53 [1] : vector<128x128xf32> to vector<128xf32>
      %94 = vector.shape_cast %93 : vector<128xf32> to vector<128x1xf32>
      %cst_54 = arith.constant 3.200000e+01 : f32
      %95 = vector.broadcast %cst_54 : f32 to vector<128x1xf32>
      %96 = arith.divf %94, %95 : vector<128x1xf32>
      %cst_55 = arith.constant 9.99999974E-6 : f32
      %97 = vector.broadcast %cst_55 : f32 to vector<128x1xf32>
      %98 = arith.addf %96, %97 : vector<128x1xf32>
      %99 = math.rsqrt %98 : vector<128x1xf32>
      %100 = vector.broadcast %99 : vector<128x1xf32> to vector<128x128xf32>
      %101 = arith.mulf %91, %100 : vector<128x128xf32>
      %c0_56 = arith.constant 0 : index
      %c0_57 = arith.constant 0 : index
      %102 = vector.load %arg15[%c0_56, %c0_57] : memref<1x128xf32, #tpu.memory_space<vmem>>, vector<1x128xf32>
      %103 = vector.broadcast %102 : vector<1x128xf32> to vector<128x128xf32>
      %104 = arith.mulf %101, %103 : vector<128x128xf32>
      %c0_58 = arith.constant 0 : index
      %c0_59 = arith.constant 0 : index
      %105 = vector.load %arg16[%c0_58, %c0_59] : memref<1x128xf32, #tpu.memory_space<vmem>>, vector<1x128xf32>
      %106 = vector.broadcast %105 : vector<1x128xf32> to vector<128x128xf32>
      %107 = arith.addf %104, %106 : vector<128x128xf32>
      %108 = arith.truncf %107 : vector<128x128xf32> to vector<128x128xbf16>
      %c0_60 = arith.constant 0 : index
      %c0_61 = arith.constant 0 : index
      %109 = vector.load %arg17[%c0_60, %c0_61] : memref<128x128xbf16, #tpu.memory_space<vmem>>, vector<128x128xbf16>
      %cst_62 = arith.constant dense<0.000000e+00> : vector<128x128xf32>
      %110 = tpu.matmul %108, %109, %cst_62 {dimension_numbers = #tpu.dot_dimension_numbers<[1], [0], [0], [1], [0, 0, 1, 1], [], []>} : vector<128x128xbf16>, vector<128x128xbf16>, vector<128x128xf32> -> vector<128x128xf32>
      %c0_63 = arith.constant 0 : index
      %c0_64 = arith.constant 0 : index
      %111 = vector.load %arg18[%c0_63, %c0_64] : memref<1x128xf32, #tpu.memory_space<vmem>>, vector<1x128xf32>
      %112 = vector.broadcast %111 : vector<1x128xf32> to vector<128x128xf32>
      %113 = arith.addf %110, %112 : vector<128x128xf32>
      %c0_65 = arith.constant 0 : index
      %c0_66 = arith.constant 0 : index
      %114 = vector.load %arg19[%c0_65, %c0_66] : memref<128x128xf32, #tpu.memory_space<vmem>>, vector<128x128xf32>
      tpu.vector_store %arg19[%c0_65, %c0_66], %113 {strides = array<i32>} : memref<128x128xf32, #tpu.memory_space<vmem>>, vector<128x128xf32>,
    } else {
    }
    return
  }
  func.func @transform_0(%arg0: i32, %arg1: i32) -> (i32, i32) {
    %c0_i32 = arith.constant 0 : i32
    %c0_i32_0 = arith.constant 0 : i32
    return %arg0, %c0_i32 : i32, i32
  }
  func.func @transform_1(%arg0: i32, %arg1: i32) -> (i32, i32) {
    %c0_i32 = arith.constant 0 : i32
    %c0_i32_0 = arith.constant 0 : i32
    return %arg1, %c0_i32 : i32, i32
  }
  func.func @transform_2(%arg0: i32, %arg1: i32) -> (i32, i32) {
    %c0_i32 = arith.constant 0 : i32
    %c0_i32_0 = arith.constant 0 : i32
    return %arg0, %c0_i32 : i32, i32
  }
  func.func @transform_3(%arg0: i32, %arg1: i32) -> (i32, i32) {
    %c0_i32 = arith.constant 0 : i32
    %c0_i32_0 = arith.constant 0 : i32
    return %arg1, %c0_i32 : i32, i32
  }
  func.func @transform_4(%arg0: i32, %arg1: i32) -> (i32, i32) {
    %c0_i32 = arith.constant 0 : i32
    %c0_i32_0 = arith.constant 0 : i32
    return %arg0, %c0_i32 : i32, i32
  }
  func.func @transform_5(%arg0: i32, %arg1: i32) -> (i32, i32) {
    %c0_i32 = arith.constant 0 : i32
    %c0_i32_0 = arith.constant 0 : i32
    %c0_i32_1 = arith.constant 0 : i32
    return %c0_i32, %c0_i32_0 : i32, i32
  }
  func.func @transform_6(%arg0: i32, %arg1: i32) -> (i32, i32) {
    %c0_i32 = arith.constant 0 : i32
    %c0_i32_0 = arith.constant 0 : i32
    %c0_i32_1 = arith.constant 0 : i32
    return %c0_i32, %c0_i32_0 : i32, i32
  }
  func.func @transform_7(%arg0: i32, %arg1: i32) -> (i32, i32) {
    %c0_i32 = arith.constant 0 : i32
    %c0_i32_0 = arith.constant 0 : i32
    %c0_i32_1 = arith.constant 0 : i32
    return %c0_i32, %c0_i32_0 : i32, i32
  }
  func.func @transform_8(%arg0: i32, %arg1: i32) -> (i32, i32) {
    %c0_i32 = arith.constant 0 : i32
    %c0_i32_0 = arith.constant 0 : i32
    %c0_i32_1 = arith.constant 0 : i32
    return %c0_i32, %c0_i32_0 : i32, i32
  }
  func.func @transform_9(%arg0: i32, %arg1: i32) -> (i32, i32) {
    %c0_i32 = arith.constant 0 : i32
    %c0_i32_0 = arith.constant 0 : i32
    %c0_i32_1 = arith.constant 0 : i32
    return %c0_i32, %c0_i32_0 : i32, i32
  }
  func.func @transform_10(%arg0: i32, %arg1: i32) -> (i32, i32) {
    %c0_i32 = arith.constant 0 : i32
    %c0_i32_0 = arith.constant 0 : i32
    %c0_i32_1 = arith.constant 0 : i32
    return %c0_i32, %c0_i32_0 : i32, i32
  }
  func.func @transform_11(%arg0: i32, %arg1: i32) -> (i32, i32) {
    %c0_i32 = arith.constant 0 : i32
    %c0_i32_0 = arith.constant 0 : i32
    %c0_i32_1 = arith.constant 0 : i32
    return %c0_i32, %c0_i32_0 : i32, i32
  }
  func.func @transform_12(%arg0: i32, %arg1: i32) -> (i32, i32) {
    %c0_i32 = arith.constant 0 : i32
    %c0_i32_0 = arith.constant 0 : i32
    %c0_i32_1 = arith.constant 0 : i32
    return %c0_i32, %c0_i32_0 : i32, i32
  }
  func.func @transform_13(%arg0: i32, %arg1: i32) -> (i32, i32) {
    %c0_i32 = arith.constant 0 : i32
    %c0_i32_0 = arith.constant 0 : i32
    %c0_i32_1 = arith.constant 0 : i32
    return %c0_i32, %c0_i32_0 : i32, i32
  }
  func.func @transform_14(%arg0: i32, %arg1: i32) -> (i32, i32) {
    %c0_i32 = arith.constant 0 : i32
    %c0_i32_0 = arith.constant 0 : i32
    %c0_i32_1 = arith.constant 0 : i32
    return %c0_i32, %c0_i32_0 : i32, i32
  }
  func.func @transform_15(%arg0: i32, %arg1: i32) -> (i32, i32) {
    %c0_i32 = arith.constant 0 : i32
    %c0_i32_0 = arith.constant 0 : i32
    %c0_i32_1 = arith.constant 0 : i32
    return %c0_i32, %c0_i32_0 : i32, i32
  }
  func.func @transform_16(%arg0: i32, %arg1: i32) -> (i32, i32) {
    %c0_i32 = arith.constant 0 : i32
    %c0_i32_0 = arith.constant 0 : i32
    %c0_i32_1 = arith.constant 0 : i32
    return %c0_i32, %c0_i32_0 : i32, i32
  }
  func.func @transform_17(%arg0: i32, %arg1: i32) -> (i32, i32) {
    %c0_i32 = arith.constant 0 : i32
    %c0_i32_0 = arith.constant 0 : i32
    return %arg0, %c0_i32 : i32, i32
  }
}

</mosaic_0001>

<llo_original>
// kernel: _lambda_.2
$region0: #{_lambda_.2}
  #allocation0 [shape = 'u32[]', space=smem, size = 0x4, offset = 0x4, fixed_abs, tag = 'smem constant byte address 0x4 - core index']
  #allocation1 [shape = 'u32[144,128]{1,0:T(1,128)}', space=vmem, size = 0x12000, scoped, tag = 'internal scratch']
  #allocation2 [shape = 'f32[128,128]{1,0:T(8,128)}', space=vmem, size = 0x10000, scoped, tag = 'scratch operand']
  %s0 = inlined_call_operand.vmem [shape: f32[256,128], index: 0, kind: input, shape index: {}]
  %s1 = inlined_call_operand.hbm [shape: bf16[39936,128], index: 1, kind: input, shape index: {}]
  %s2 = inlined_call_operand.vmem [shape: s32[1,39936], index: 2, kind: input, shape index: {}]
  %s3 = inlined_call_operand.vmem [shape: bf16[128,128], index: 3, kind: input, shape index: {}]
  %s4 = inlined_call_operand.vmem [shape: f32[1,128], index: 4, kind: input, shape index: {}]
  %s5 = inlined_call_operand.vmem [shape: bf16[256,128], index: 5, kind: input, shape index: {}]
  %s6 = inlined_call_operand.vmem [shape: f32[1,128], index: 6, kind: input, shape index: {}]
  %s7 = inlined_call_operand.vmem [shape: bf16[128,128], index: 7, kind: input, shape index: {}]
  %s8 = inlined_call_operand.vmem [shape: f32[1,128], index: 8, kind: input, shape index: {}]
  %s9 = inlined_call_operand.vmem [shape: f32[256,128], index: 9, kind: output, shape index: {}]
  %s10 = sld [smem:[#allocation0]]
  $region81: #{_lambda_.2} parent=0
    _
  %s12 = ssub.s32 1, %s10
  %s13 = scalar_select 0, %s12, %s10
  $region1: #{_lambda_.2} parent=0
    #allocation3 [shape = 'u8[131072]{0}', space=vmem, size = 0x20000, scoped, tag = 'input window, operand 1']
    #allocation4 [shape = 's32[2]{0}', space=sflag, size = 0x8, scoped, tag = 'scoped memory for _lambda_.2']
    %14 = vsyncpa [#allocation4], 0
    %s15 = scalar_lea.sflag [#allocation4], 1
    %16 = vsyncpa %s15, 0
    loop: start=0, step=1, limit=314
    $region2: #{_lambda_.2} parent=1 // loop_pre_header
      _
    $region3: #{_lambda_.2} parent=1 // loop_header
      %s18 = sphi 0, %s22
      %p19 = scmp.ge.s32.totalorder %s18, 314
      %s25 = sphi 0, %s37
      %s26 = sphi 0, %s33
      %s27 = sphi 0, %s25
      %s28 = sphi 0, %s26
      %s29 = sphi 0, %s27
      %s30 = sphi 0, %s28
      %s40 = sphi 0, %s42
      %s43 = sphi 0, %s40
      %s44 = sphi 0, %s43
      %s60 = sphi 0, %s44
      %s66 = sphi 0, %s68
      %s69 = sphi 0, %s66
      %s70 = sphi 0, %s69
      %s86 = sphi 0, %s70
      %s92 = sphi 0, %s94
      %s95 = sphi 0, %s92
      %s96 = sphi 0, %s95
      %s112 = sphi 0, %s96
      %s116 = sphi 0, %s116
      %s118 = sphi 0, %s116
      %s119 = sphi 0, %s118
      %s133 = sphi 0, %s119
      %s137 = sphi 0, %s137
      %s139 = sphi 0, %s137
      %s140 = sphi 0, %s139
      %s154 = sphi 0, %s140
      %s158 = sphi 0, %s158
      %s160 = sphi 0, %s158
      %s161 = sphi 0, %s160
      %s175 = sphi 0, %s161
      %s179 = sphi 0, %s179
      %s181 = sphi 0, %s179
      %s182 = sphi 0, %s181
      %s196 = sphi 0, %s182
      %s200 = sphi 0, %s200
      %s202 = sphi 0, %s200
      %s203 = sphi 0, %s202
      %s217 = sphi 0, %s203
      %s221 = sphi 0, %s221
      %s223 = sphi 0, %s221
      %s224 = sphi 0, %s223
      %s238 = sphi 0, %s224
      %s244 = sphi 0, %s246
      %s247 = sphi 0, %s244
      %s248 = sphi 0, %s247
      %s264 = sphi 0, %s248
    $region4: #{_lambda_.2} parent=1 // loop_header_branch
      %21 = sbr.rel (%p19) target = $region8
    $region5: #{_lambda_.2} parent=1 // loop_body
      %s23 = ssub.s32 %s18, 1
      %s24 = ssub.s32 %s18, 2
      %s31 = sadd.s32 1, %s26
      %p32 = scmp.ge.s32.totalorder %s31, 156
      %s33 = scalar_select %p32, 0, %s31
      %s34 = sadd.s32 1, %s25
      %s35 = scalar_select %p32, %s34, %s25
      %p36 = scmp.ge.s32.totalorder %s35, 2
      %s37 = scalar_select %p36, 0, %s35
      %s38 = ssub.s32 %s25, %s37
      %p39 = scmp.eq.s32.totalorder %s38, 0
      %s41 = sadd.s32 %s40, 1
      %s42 = scalar_select %p39, %s40, %s41
      %p45 = pneg %p39
      %p46 = scmp.eq.s32.totalorder %s18, 311
      %p47 = por %p45, %p46
      %p48 = scmp.ne.s32.totalorder %s40, %s43
      %p49 = scmp.eq.s32.totalorder %s18, 0
      %p50 = por %p48, %p49
      %p51 = scmp.ne.s32.totalorder %s40, %s43
      %p52 = scmp.eq.s32.totalorder %s23, 311
      %p53 = por %p51, %p52
      %p54 = scmp.ne.s32.totalorder %s43, %s44
      %p55 = scmp.eq.s32.totalorder %s23, 0
      %p56 = por %p54, %p55
      %p57 = scmp.ne.s32.totalorder %s43, %s44
      %p58 = scmp.eq.s32.totalorder %s24, 311
      %p59 = por %p57, %p58
      %p61 = scmp.ne.s32.totalorder %s44, %s60
      %p62 = scmp.eq.s32.totalorder %s24, 0
      %p63 = por %p61, %p62
      %s64 = ssub.s32 %s26, %s33
      %p65 = scmp.eq.s32.totalorder %s64, 0
      %s67 = sadd.s32 %s66, 1
      %s68 = scalar_select %p65, %s66, %s67
      %p71 = pneg %p65
      %p72 = scmp.eq.s32.totalorder %s18, 311
      %p73 = por %p71, %p72
      %p74 = scmp.ne.s32.totalorder %s66, %s69
      %p75 = scmp.eq.s32.totalorder %s18, 0
      %p76 = por %p74, %p75
      %p77 = scmp.ne.s32.totalorder %s66, %s69
      %p78 = scmp.eq.s32.totalorder %s23, 311
      %p79 = por %p77, %p78
      %p80 = scmp.ne.s32.totalorder %s69, %s70
      %p81 = scmp.eq.s32.totalorder %s23, 0
      %p82 = por %p80, %p81
      %p83 = scmp.ne.s32.totalorder %s69, %s70
      %p84 = scmp.eq.s32.totalorder %s24, 311
      %p85 = por %p83, %p84
      %p87 = scmp.ne.s32.totalorder %s70, %s86
      %p88 = scmp.eq.s32.totalorder %s24, 0
      %p89 = por %p87, %p88
      %s90 = ssub.s32 %s26, %s33
      %p91 = scmp.eq.s32.totalorder %s90, 0
      %s93 = sadd.s32 %s92, 1
      %s94 = scalar_select %p91, %s92, %s93
      %p97 = pneg %p91
      %p98 = scmp.eq.s32.totalorder %s18, 311
      %p99 = por %p97, %p98
      %p100 = scmp.ne.s32.totalorder %s92, %s95
      %p101 = scmp.eq.s32.totalorder %s18, 0
      %p102 = por %p100, %p101
      %p103 = scmp.ne.s32.totalorder %s92, %s95
      %p104 = scmp.eq.s32.totalorder %s23, 311
      %p105 = por %p103, %p104
      %p106 = scmp.ne.s32.totalorder %s95, %s96
      %p107 = scmp.eq.s32.totalorder %s23, 0
      %p108 = por %p106, %p107
      %p109 = scmp.ne.s32.totalorder %s95, %s96
      %p110 = scmp.eq.s32.totalorder %s24, 311
      %p111 = por %p109, %p110
      %p113 = scmp.ne.s32.totalorder %s96, %s112
      %p114 = scmp.eq.s32.totalorder %s24, 0
      %p115 = por %p113, %p114
      %s117 = sadd.s32 %s116, 1
      %p120 = scmp.eq.s32.totalorder %s18, 311
      %p121 = scmp.ne.s32.totalorder %s116, %s118
      %p122 = scmp.eq.s32.totalorder %s18, 0
      %p123 = por %p121, %p122
      %p124 = scmp.ne.s32.totalorder %s116, %s118
      %p125 = scmp.eq.s32.totalorder %s23, 311
      %p126 = por %p124, %p125
      %p127 = scmp.ne.s32.totalorder %s118, %s119
      %p128 = scmp.eq.s32.totalorder %s23, 0
      %p129 = por %p127, %p128
      %p130 = scmp.ne.s32.totalorder %s118, %s119
      %p131 = scmp.eq.s32.totalorder %s24, 311
      %p132 = por %p130, %p131
      %p134 = scmp.ne.s32.totalorder %s119, %s133
      %p135 = scmp.eq.s32.totalorder %s24, 0
      %p136 = por %p134, %p135
      %s138 = sadd.s32 %s137, 1
      %p141 = scmp.eq.s32.totalorder %s18, 311
      %p142 = scmp.ne.s32.totalorder %s137, %s139
      %p143 = scmp.eq.s32.totalorder %s18, 0
      %p144 = por %p142, %p143
      %p145 = scmp.ne.s32.totalorder %s137, %s139
      %p146 = scmp.eq.s32.totalorder %s23, 311
      %p147 = por %p145, %p146
      %p148 = scmp.ne.s32.totalorder %s139, %s140
      %p149 = scmp.eq.s32.totalorder %s23, 0
      %p150 = por %p148, %p149
      %p151 = scmp.ne.s32.totalorder %s139, %s140
      %p152 = scmp.eq.s32.totalorder %s24, 311
      %p153 = por %p151, %p152
      %p155 = scmp.ne.s32.totalorder %s140, %s154
      %p156 = scmp.eq.s32.totalorder %s24, 0
      %p157 = por %p155, %p156
      %s159 = sadd.s32 %s158, 1
      %p162 = scmp.eq.s32.totalorder %s18, 311
      %p163 = scmp.ne.s32.totalorder %s158, %s160
      %p164 = scmp.eq.s32.totalorder %s18, 0
      %p165 = por %p163, %p164
      %p166 = scmp.ne.s32.totalorder %s158, %s160
      %p167 = scmp.eq.s32.totalorder %s23, 311
      %p168 = por %p166, %p167
      %p169 = scmp.ne.s32.totalorder %s160, %s161
      %p170 = scmp.eq.s32.totalorder %s23, 0
      %p171 = por %p169, %p170
      %p172 = scmp.ne.s32.totalorder %s160, %s161
      %p173 = scmp.eq.s32.totalorder %s24, 311
      %p174 = por %p172, %p173
      %p176 = scmp.ne.s32.totalorder %s161, %s175
      %p177 = scmp.eq.s32.totalorder %s24, 0
      %p178 = por %p176, %p177
      %s180 = sadd.s32 %s179, 1
      %p183 = scmp.eq.s32.totalorder %s18, 311
      %p184 = scmp.ne.s32.totalorder %s179, %s181
      %p185 = scmp.eq.s32.totalorder %s18, 0
      %p186 = por %p184, %p185
      %p187 = scmp.ne.s32.totalorder %s179, %s181
      %p188 = scmp.eq.s32.totalorder %s23, 311
      %p189 = por %p187, %p188
      %p190 = scmp.ne.s32.totalorder %s181, %s182
      %p191 = scmp.eq.s32.totalorder %s23, 0
      %p192 = por %p190, %p191
      %p193 = scmp.ne.s32.totalorder %s181, %s182
      %p194 = scmp.eq.s32.totalorder %s24, 311
      %p195 = por %p193, %p194
      %p197 = scmp.ne.s32.totalorder %s182, %s196
      %p198 = scmp.eq.s32.totalorder %s24, 0
      %p199 = por %p197, %p198
      %s201 = sadd.s32 %s200, 1
      %p204 = scmp.eq.s32.totalorder %s18, 311
      %p205 = scmp.ne.s32.totalorder %s200, %s202
      %p206 = scmp.eq.s32.totalorder %s18, 0
      %p207 = por %p205, %p206
      %p208 = scmp.ne.s32.totalorder %s200, %s202
      %p209 = scmp.eq.s32.totalorder %s23, 311
      %p210 = por %p208, %p209
      %p211 = scmp.ne.s32.totalorder %s202, %s203
      %p212 = scmp.eq.s32.totalorder %s23, 0
      %p213 = por %p211, %p212
      %p214 = scmp.ne.s32.totalorder %s202, %s203
      %p215 = scmp.eq.s32.totalorder %s24, 311
      %p216 = por %p214, %p215
      %p218 = scmp.ne.s32.totalorder %s203, %s217
      %p219 = scmp.eq.s32.totalorder %s24, 0
      %p220 = por %p218, %p219
      %s222 = sadd.s32 %s221, 1
      %p225 = scmp.eq.s32.totalorder %s18, 311
      %p226 = scmp.ne.s32.totalorder %s221, %s223
      %p227 = scmp.eq.s32.totalorder %s18, 0
      %p228 = por %p226, %p227
      %p229 = scmp.ne.s32.totalorder %s221, %s223
      %p230 = scmp.eq.s32.totalorder %s23, 311
      %p231 = por %p229, %p230
      %p232 = scmp.ne.s32.totalorder %s223, %s224
      %p233 = scmp.eq.s32.totalorder %s23, 0
      %p234 = por %p232, %p233
      %p235 = scmp.ne.s32.totalorder %s223, %s224
      %p236 = scmp.eq.s32.totalorder %s24, 311
      %p237 = por %p235, %p236
      %p239 = scmp.ne.s32.totalorder %s224, %s238
      %p240 = scmp.eq.s32.totalorder %s24, 0
      %p241 = por %p239, %p240
      %s242 = ssub.s32 %s25, %s37
      %p243 = scmp.eq.s32.totalorder %s242, 0
      %s245 = sadd.s32 %s244, 1
      %s246 = scalar_select %p243, %s244, %s245
      %p249 = pneg %p243
      %p250 = scmp.eq.s32.totalorder %s18, 311
      %p251 = por %p249, %p250
      %p252 = scmp.ne.s32.totalorder %s244, %s247
      %p253 = scmp.eq.s32.totalorder %s18, 0
      %p254 = por %p252, %p253
      %p255 = scmp.ne.s32.totalorder %s244, %s247
      %p256 = scmp.eq.s32.totalorder %s23, 311
      %p257 = por %p255, %p256
      %p258 = scmp.ne.s32.totalorder %s247, %s248
      %p259 = scmp.eq.s32.totalorder %s23, 0
      %p260 = por %p258, %p259
      %p261 = scmp.ne.s32.totalorder %s247, %s248
      %p262 = scmp.eq.s32.totalorder %s24, 311
      %p263 = por %p261, %p262
      %p265 = scmp.ne.s32.totalorder %s248, %s264
      %p266 = scmp.eq.s32.totalorder %s24, 0
      %p267 = por %p265, %p266
      %p268 = scmp.le.s32.totalorder 1, %s18
      %p269 = scmp.lt.s32.totalorder %s18, 313
      %p270 = pnand %p268, %p269
      %p271 = pneg %p270
      // Predicated region
      $region9: #{_lambda_.2} parent=5 // pred_check
        _
      $region10: #{_lambda_.2} parent=5 // pred_check_branch
        %273 = sbr.rel (%p270) target = $region12
      $region11: #{_lambda_.2} parent=5 // pred_region
        %s274 = ssub.s32 %s18, 1
        // Predicated region
        $region13: #{_lambda_.2} parent=11 // pred_check
          %p275 = pneg %p129
        $region14: #{_lambda_.2} parent=11 // pred_check_branch
          %277 = sbr.rel (%p275) target = $region16
        $region15: #{_lambda_.2} parent=11 // pred_region
          _
        $region16: #{_lambda_.2} parent=11 // pred_fallthru
          _
        // Predicated region
        $region17: #{_lambda_.2} parent=11 // pred_check
          %p278 = pneg %p150
        $region18: #{_lambda_.2} parent=11 // pred_check_branch
          %280 = sbr.rel (%p278) target = $region20
        $region19: #{_lambda_.2} parent=11 // pred_region
          _
        $region20: #{_lambda_.2} parent=11 // pred_fallthru
          _
        // Predicated region
        $region21: #{_lambda_.2} parent=11 // pred_check
          %p281 = pneg %p171
        $region22: #{_lambda_.2} parent=11 // pred_check_branch
          %283 = sbr.rel (%p281) target = $region24
        $region23: #{_lambda_.2} parent=11 // pred_region
          _
        $region24: #{_lambda_.2} parent=11 // pred_fallthru
          _
        // Predicated region
        $region25: #{_lambda_.2} parent=11 // pred_check
          %p284 = pneg %p192
        $region26: #{_lambda_.2} parent=11 // pred_check_branch
          %286 = sbr.rel (%p284) target = $region28
        $region27: #{_lambda_.2} parent=11 // pred_region
          _
        $region28: #{_lambda_.2} parent=11 // pred_fallthru
          _
        // Predicated region
        $region29: #{_lambda_.2} parent=11 // pred_check
          %p287 = pneg %p213
        $region30: #{_lambda_.2} parent=11 // pred_check_branch
          %289 = sbr.rel (%p287) target = $region32
        $region31: #{_lambda_.2} parent=11 // pred_region
          _
        $region32: #{_lambda_.2} parent=11 // pred_fallthru
          _
        // Predicated region
        $region33: #{_lambda_.2} parent=11 // pred_check
          %p290 = pneg %p234
        $region34: #{_lambda_.2} parent=11 // pred_check_branch
          %292 = sbr.rel (%p290) target = $region36
        $region35: #{_lambda_.2} parent=11 // pred_region
          _
        $region36: #{_lambda_.2} parent=11 // pred_fallthru
          _
      $region12: #{_lambda_.2} parent=5 // pred_fallthru
        _
      %p293 = scmp.lt.s32.totalorder %s18, 312
      // Predicated region
      $region37: #{_lambda_.2} parent=5 // pred_check
        %p294 = pneg %p293
      $region38: #{_lambda_.2} parent=5 // pred_check_branch
        %296 = sbr.rel (%p294) target = $region40
      $region39: #{_lambda_.2} parent=5 // pred_region
        // Predicated region
        $region41: #{_lambda_.2} parent=39 // pred_check
          %p297 = pneg %p50
        $region42: #{_lambda_.2} parent=39 // pred_check_branch
          %299 = sbr.rel (%p297) target = $region44
        $region43: #{_lambda_.2} parent=39 // pred_region
          %s300 = smul.u32 16, %s25
          %p301 = scmp.lt.s32.totalorder %s300, 31
          %s302 = scalar_select %p301, %s300, 31
          %s303 = smul.addr %s302, 8
          %s304 = scalar_lea.vmem %s0, %s303
          %s305 = smul.u32 16, %s25
        $region44: #{_lambda_.2} parent=39 // pred_fallthru
          _
        // Predicated region
        $region45: #{_lambda_.2} parent=39 // pred_check
          %p306 = pneg %p76
        $region46: #{_lambda_.2} parent=39 // pred_check_branch
          %308 = sbr.rel (%p306) target = $region48
        $region47: #{_lambda_.2} parent=39 // pred_region
          %s309 = sand.u32 %s66, 1
          %s310 = scalar_lea.sflag [#allocation4], %s309
          %s311 = sand.u32 %s66, 1
          %s312 = smul.addr %s311, 128
          %s313 = scalar_lea.vmem [#allocation3], %s312
          %s314 = smul.u32 32, %s26
          %s316 = ssub.s32 2048, 2048
          %317 = vsyncadd %s310, %s316
          %s318 = smul.addr %s314, 64
          %s319 = scalar_lea.hbm %s1, %s318
          %s320 = sshll.u32 %s313, 4
          %s321 = int_to_ptr.vmem [resolvable:$true] %s320
          %326 = dma.hbm_to_vmem [thread:$0]  %s319, 2048, %s321, %s310, 64, 64, 4
        $region48: #{_lambda_.2} parent=39 // pred_fallthru
          _
        // Predicated region
        $region49: #{_lambda_.2} parent=39 // pred_check
          %p327 = pneg %p102
        $region50: #{_lambda_.2} parent=39 // pred_check_branch
          %329 = sbr.rel (%p327) target = $region52
        $region51: #{_lambda_.2} parent=39 // pred_region
          %s330 = smul.u32 2, %s26
          %p331 = scmp.lt.s32.totalorder %s330, 311
          %s332 = scalar_select %p331, %s330, 311
          %s333 = scalar_lea.vmem %s2, %s332
          %s334 = smul.u32 2, %s26
        $region52: #{_lambda_.2} parent=39 // pred_fallthru
          _
      $region40: #{_lambda_.2} parent=5 // pred_fallthru
        _
      %p335 = scmp.le.s32.totalorder 1, %s18
      %p336 = scmp.lt.s32.totalorder %s18, 313
      %p337 = pnand %p335, %p336
      %p338 = pneg %p337
      // Predicated region
      $region53: #{_lambda_.2} parent=5 // pred_check
        _
      $region54: #{_lambda_.2} parent=5 // pred_check_branch
        %340 = sbr.rel (%p337) target = $region56
      $region55: #{_lambda_.2} parent=5 // pred_region
        %s341 = ssub.s32 %s18, 1
        %s342 = sand.u32 %s69, 1
        %s343 = scalar_lea.sflag [#allocation4], %s342
        %s344 = sand.u32 %s69, 1
        %s345 = smul.addr %s344, 128
        %s346 = scalar_lea.vmem [#allocation3], %s345
        // Predicated region
        $region57: #{_lambda_.2} parent=55 // pred_check
          %p347 = pneg %p82
        $region58: #{_lambda_.2} parent=55 // pred_check_branch
          %349 = sbr.rel (%p347) target = $region60
        $region59: #{_lambda_.2} parent=55 // pred_region
          %350 = dma.done %s343, 2048
        $region60: #{_lambda_.2} parent=55 // pred_fallthru
          _
        %s351 = smul.u32 16, %s27
        %p352 = scmp.lt.s32.totalorder %s351, 31
        %s353 = scalar_select %p352, %s351, 31
        %s354 = smul.addr %s353, 8
        %s355 = scalar_lea.vmem %s0, %s354
        %p356 = pneg %p56
        %p357 = pneg %p53
        %s358 = sand.u32 %s69, 1
        %s359 = scalar_lea.sflag [#allocation4], %s358
        %s360 = sand.u32 %s69, 1
        %s361 = smul.addr %s360, 128
        %s362 = scalar_lea.vmem [#allocation3], %s361
        %p363 = pneg %p82
        %p364 = pneg %p79
        %s365 = smul.u32 2, %s28
        %p366 = scmp.lt.s32.totalorder %s365, 311
        %s367 = scalar_select %p366, %s365, 311
        %s368 = scalar_lea.vmem %s2, %s367
        %p369 = pneg %p108
        %p370 = pneg %p105
        %p371 = pneg %p129
        %p372 = pneg %p126
        %p373 = pneg %p150
        %p374 = pneg %p147
        %p375 = pneg %p171
        %p376 = pneg %p168
        %p377 = pneg %p192
        %p378 = pneg %p189
        %p379 = pneg %p213
        %p380 = pneg %p210
        %p381 = pneg %p234
        %p382 = pneg %p231
        %p383 = pneg %p260
        %p384 = pneg %p257
        %s385 = smul.u32 16, %s27
        %p386 = scmp.lt.s32.totalorder %s385, 31
        %s387 = scalar_select %p386, %s385, 31
        %s388 = smul.addr %s387, 8
        %s389 = scalar_lea.vmem %s9, %s388
        %s390 = smul.u32 16, %s27
        %p391 = scmp.lt.s32.totalorder %s390, 31
        %s392 = scalar_select %p391, %s390, 31
        %s393 = smul.addr %s392, 8
        %s394 = scalar_lea.vmem %s0, %s393
        %s395 = smul.u32 16, %s27
        %s396 = smul.u32 32, %s28
        %s397 = smul.u32 2, %s28
        %p398 = scmp.lt.s32.totalorder %s397, 311
        %s399 = scalar_select %p398, %s397, 311
        %s400 = scalar_lea.vmem %s2, %s399
        %s401 = smul.u32 2, %s28
        %s402 = smul.u32 16, %s27
        %p403 = scmp.lt.s32.totalorder %s402, 31
        %s404 = scalar_select %p403, %s402, 31
        %s405 = smul.addr %s404, 8
        %s406 = scalar_lea.vmem %s9, %s405
        %s407 = smul.u32 16, %s27
        %p409 = scmp.eq.s32.totalorder %s28, 0
        // Predicated region
        $region61: #{_lambda_.2} parent=55 // pred_check
          %p410 = pneg %p409
        $region62: #{_lambda_.2} parent=55 // pred_check_branch
          %412 = sbr.rel (%p410) target = $region64
        $region63: #{_lambda_.2} parent=55 // pred_region
          %413 = vst [vmem:[#allocation2] sm:$0xff] 0.0
          %414 = vst [vmem:[#allocation2 + $0x8] sm:$0xff] 0.0
          %415 = vst [vmem:[#allocation2 + $0x10] sm:$0xff] 0.0
          %416 = vst [vmem:[#allocation2 + $0x18] sm:$0xff] 0.0
          %417 = vst [vmem:[#allocation2 + $0x20] sm:$0xff] 0.0
          %418 = vst [vmem:[#allocation2 + $0x28] sm:$0xff] 0.0
          %419 = vst [vmem:[#allocation2 + $0x30] sm:$0xff] 0.0
          %420 = vst [vmem:[#allocation2 + $0x38] sm:$0xff] 0.0
          %421 = vst [vmem:[#allocation2 + $0x40] sm:$0xff] 0.0
          %422 = vst [vmem:[#allocation2 + $0x48] sm:$0xff] 0.0
          %423 = vst [vmem:[#allocation2 + $0x50] sm:$0xff] 0.0
          %424 = vst [vmem:[#allocation2 + $0x58] sm:$0xff] 0.0
          %425 = vst [vmem:[#allocation2 + $0x60] sm:$0xff] 0.0
          %426 = vst [vmem:[#allocation2 + $0x68] sm:$0xff] 0.0
          %427 = vst [vmem:[#allocation2 + $0x70] sm:$0xff] 0.0
          %428 = vst [vmem:[#allocation2 + $0x78] sm:$0xff] 0.0
        $region64: #{_lambda_.2} parent=55 // pred_fallthru
          _
        %v429 = vld [vmem:[%s346] sm:$0xf]
        %v430 = vld [vmem:[%s346 + $0x4] sm:$0xf]
        %v431 = vld [vmem:[%s346 + $0x8] sm:$0xf]
        %v432 = vld [vmem:[%s346 + $0xc] sm:$0xf]
        %v433 = vld [vmem:[%s346 + $0x10] sm:$0xf]
        %v434 = vld [vmem:[%s346 + $0x14] sm:$0xf]
        %v435 = vld [vmem:[%s346 + $0x18] sm:$0xf]
        %v436 = vld [vmem:[%s346 + $0x1c] sm:$0xf]
        %v437 = vld [vmem:[%s346 + $0x20] sm:$0xf]
        %v438 = vld [vmem:[%s346 + $0x24] sm:$0xf]
        %v439 = vld [vmem:[%s346 + $0x28] sm:$0xf]
        %v440 = vld [vmem:[%s346 + $0x2c] sm:$0xf]
        %v441 = vld [vmem:[%s346 + $0x30] sm:$0xf]
        %v442 = vld [vmem:[%s346 + $0x34] sm:$0xf]
        %v443 = vld [vmem:[%s346 + $0x38] sm:$0xf]
        %v444 = vld [vmem:[%s346 + $0x3c] sm:$0xf]
        %v445 = vld [vmem:[%s346 + $0x40] sm:$0xf]
        %v446 = vld [vmem:[%s346 + $0x44] sm:$0xf]
        %v447 = vld [vmem:[%s346 + $0x48] sm:$0xf]
        %v448 = vld [vmem:[%s346 + $0x4c] sm:$0xf]
        %v449 = vld [vmem:[%s346 + $0x50] sm:$0xf]
        %v450 = vld [vmem:[%s346 + $0x54] sm:$0xf]
        %v451 = vld [vmem:[%s346 + $0x58] sm:$0xf]
        %v452 = vld [vmem:[%s346 + $0x5c] sm:$0xf]
        %v453 = vld [vmem:[%s346 + $0x60] sm:$0xf]
        %v454 = vld [vmem:[%s346 + $0x64] sm:$0xf]
        %v455 = vld [vmem:[%s346 + $0x68] sm:$0xf]
        %v456 = vld [vmem:[%s346 + $0x6c] sm:$0xf]
        %v457 = vld [vmem:[%s346 + $0x70] sm:$0xf]
        %v458 = vld [vmem:[%s346 + $0x74] sm:$0xf]
        %v459 = vld [vmem:[%s346 + $0x78] sm:$0xf]
        %v460 = vld [vmem:[%s346 + $0x7c] sm:$0xf]
        %v461 = vunpack.c.l.bf16 %v429
        %v462 = vunpack.c.l.bf16 %v430
        %v463 = vunpack.c.l.bf16 %v431
        %v464 = vunpack.c.l.bf16 %v432
        %v465 = vunpack.c.l.bf16 %v433
        %v466 = vunpack.c.l.bf16 %v434
        %v467 = vunpack.c.l.bf16 %v435
        %v468 = vunpack.c.l.bf16 %v436
        %v469 = vunpack.c.l.bf16 %v437
        %v470 = vunpack.c.l.bf16 %v438
        %v471 = vunpack.c.l.bf16 %v439
        %v472 = vunpack.c.l.bf16 %v440
        %v473 = vunpack.c.l.bf16 %v441
        %v474 = vunpack.c.l.bf16 %v442
        %v475 = vunpack.c.l.bf16 %v443
        %v476 = vunpack.c.l.bf16 %v444
        %v477 = vunpack.c.l.bf16 %v445
        %v478 = vunpack.c.l.bf16 %v446
        %v479 = vunpack.c.l.bf16 %v447
        %v480 = vunpack.c.l.bf16 %v448
        %v481 = vunpack.c.l.bf16 %v449
        %v482 = vunpack.c.l.bf16 %v450
        %v483 = vunpack.c.l.bf16 %v451
        %v484 = vunpack.c.l.bf16 %v452
        %v485 = vunpack.c.l.bf16 %v453
        %v486 = vunpack.c.l.bf16 %v454
        %v487 = vunpack.c.l.bf16 %v455
        %v488 = vunpack.c.l.bf16 %v456
        %v489 = vunpack.c.l.bf16 %v457
        %v490 = vunpack.c.l.bf16 %v458
        %v491 = vunpack.c.l.bf16 %v459
        %v492 = vunpack.c.l.bf16 %v460
        %v493 = vxor.u32 %v461, 2147483648
        %v494 = vxor.u32 %v462, 2147483648
        %v495 = vxor.u32 %v463, 2147483648
        %v496 = vxor.u32 %v464, 2147483648
        %v497 = vxor.u32 %v465, 2147483648
        %v498 = vxor.u32 %v466, 2147483648
        %v499 = vxor.u32 %v467, 2147483648
        %v500 = vxor.u32 %v468, 2147483648
        %v501 = vxor.u32 %v469, 2147483648
        %v502 = vxor.u32 %v470, 2147483648
        %v503 = vxor.u32 %v471, 2147483648
        %v504 = vxor.u32 %v472, 2147483648
        %v505 = vxor.u32 %v473, 2147483648
        %v506 = vxor.u32 %v474, 2147483648
        %v507 = vxor.u32 %v475, 2147483648
        %v508 = vxor.u32 %v476, 2147483648
        %v509 = vxor.u32 %v477, 2147483648
        %v510 = vxor.u32 %v478, 2147483648
        %v511 = vxor.u32 %v479, 2147483648
        %v512 = vxor.u32 %v480, 2147483648
        %v513 = vxor.u32 %v481, 2147483648
        %v514 = vxor.u32 %v482, 2147483648
        %v515 = vxor.u32 %v483, 2147483648
        %v516 = vxor.u32 %v484, 2147483648
        %v517 = vxor.u32 %v485, 2147483648
        %v518 = vxor.u32 %v486, 2147483648
        %v519 = vxor.u32 %v487, 2147483648
        %v520 = vxor.u32 %v488, 2147483648
        %v521 = vxor.u32 %v489, 2147483648
        %v522 = vxor.u32 %v490, 2147483648
        %v523 = vxor.u32 %v491, 2147483648
        %v524 = vxor.u32 %v492, 2147483648
        %v525 = vmul.f32 %v493, 1.442695
        %v526 = vpow.pop %v525
        %v527 = vmul.f32 %v494, 1.442695
        %v528 = vpow.pop %v527
        %v529 = vmul.f32 %v495, 1.442695
        %v530 = vpow.pop %v529
        %v531 = vmul.f32 %v496, 1.442695
        %v532 = vpow.pop %v531
        %v533 = vmul.f32 %v497, 1.442695
        %v534 = vpow.pop %v533
        %v535 = vmul.f32 %v498, 1.442695
        %v536 = vpow.pop %v535
        %v537 = vmul.f32 %v499, 1.442695
        %v538 = vpow.pop %v537
        %v539 = vmul.f32 %v500, 1.442695
        %v540 = vpow.pop %v539
        %v541 = vmul.f32 %v501, 1.442695
        %v542 = vpow.pop %v541
        %v543 = vmul.f32 %v502, 1.442695
        %v544 = vpow.pop %v543
        %v545 = vmul.f32 %v503, 1.442695
        %v546 = vpow.pop %v545
        %v547 = vmul.f32 %v504, 1.442695
        %v548 = vpow.pop %v547
        %v549 = vmul.f32 %v505, 1.442695
        %v550 = vpow.pop %v549
        %v551 = vmul.f32 %v506, 1.442695
        %v552 = vpow.pop %v551
        %v553 = vmul.f32 %v507, 1.442695
        %v554 = vpow.pop %v553
        %v555 = vmul.f32 %v508, 1.442695
        %v556 = vpow.pop %v555
        %v557 = vmul.f32 %v509, 1.442695
        %v558 = vpow.pop %v557
        %v559 = vmul.f32 %v510, 1.442695
        %v560 = vpow.pop %v559
        %v561 = vmul.f32 %v511, 1.442695
        %v562 = vpow.pop %v561
        %v563 = vmul.f32 %v512, 1.442695
        %v564 = vpow.pop %v563
        %v565 = vmul.f32 %v513, 1.442695
        %v566 = vpow.pop %v565
        %v567 = vmul.f32 %v514, 1.442695
        %v568 = vpow.pop %v567
        %v569 = vmul.f32 %v515, 1.442695
        %v570 = vpow.pop %v569
        %v571 = vmul.f32 %v516, 1.442695
        %v572 = vpow.pop %v571
        %v573 = vmul.f32 %v517, 1.442695
        %v574 = vpow.pop %v573
        %v575 = vmul.f32 %v518, 1.442695
        %v576 = vpow.pop %v575
        %v577 = vmul.f32 %v519, 1.442695
        %v578 = vpow.pop %v577
        %v579 = vmul.f32 %v520, 1.442695
        %v580 = vpow.pop %v579
        %v581 = vmul.f32 %v521, 1.442695
        %v582 = vpow.pop %v581
        %v583 = vmul.f32 %v522, 1.442695
        %v584 = vpow.pop %v583
        %v585 = vmul.f32 %v523, 1.442695
        %v586 = vpow.pop %v585
        %v587 = vmul.f32 %v524, 1.442695
        %v588 = vpow.pop %v587
        %v589 = vadd.f32 %v526, 1.0
        %v590 = vadd.f32 %v528, 1.0
        %v591 = vadd.f32 %v530, 1.0
        %v592 = vadd.f32 %v532, 1.0
        %v593 = vadd.f32 %v534, 1.0
        %v594 = vadd.f32 %v536, 1.0
        %v595 = vadd.f32 %v538, 1.0
        %v596 = vadd.f32 %v540, 1.0
        %v597 = vadd.f32 %v542, 1.0
        %v598 = vadd.f32 %v544, 1.0
        %v599 = vadd.f32 %v546, 1.0
        %v600 = vadd.f32 %v548, 1.0
        %v601 = vadd.f32 %v550, 1.0
        %v602 = vadd.f32 %v552, 1.0
        %v603 = vadd.f32 %v554, 1.0
        %v604 = vadd.f32 %v556, 1.0
        %v605 = vadd.f32 %v558, 1.0
        %v606 = vadd.f32 %v560, 1.0
        %v607 = vadd.f32 %v562, 1.0
        %v608 = vadd.f32 %v564, 1.0
        %v609 = vadd.f32 %v566, 1.0
        %v610 = vadd.f32 %v568, 1.0
        %v611 = vadd.f32 %v570, 1.0
        %v612 = vadd.f32 %v572, 1.0
        %v613 = vadd.f32 %v574, 1.0
        %v614 = vadd.f32 %v576, 1.0
        %v615 = vadd.f32 %v578, 1.0
        %v616 = vadd.f32 %v580, 1.0
        %v617 = vadd.f32 %v582, 1.0
        %v618 = vadd.f32 %v584, 1.0
        %v619 = vadd.f32 %v586, 1.0
        %v620 = vadd.f32 %v588, 1.0
        %v621 = vrcp.pop %v589
        %v622 = vmul.f32 1.0, %v621
        %v623 = vrcp.pop %v590
        %v624 = vmul.f32 1.0, %v623
        %v625 = vrcp.pop %v591
        %v626 = vmul.f32 1.0, %v625
        %v627 = vrcp.pop %v592
        %v628 = vmul.f32 1.0, %v627
        %v629 = vrcp.pop %v593
        %v630 = vmul.f32 1.0, %v629
        %v631 = vrcp.pop %v594
        %v632 = vmul.f32 1.0, %v631
        %v633 = vrcp.pop %v595
        %v634 = vmul.f32 1.0, %v633
        %v635 = vrcp.pop %v596
        %v636 = vmul.f32 1.0, %v635
        %v637 = vrcp.pop %v597
        %v638 = vmul.f32 1.0, %v637
        %v639 = vrcp.pop %v598
        %v640 = vmul.f32 1.0, %v639
        %v641 = vrcp.pop %v599
        %v642 = vmul.f32 1.0, %v641
        %v643 = vrcp.pop %v600
        %v644 = vmul.f32 1.0, %v643
        %v645 = vrcp.pop %v601
        %v646 = vmul.f32 1.0, %v645
        %v647 = vrcp.pop %v602
        %v648 = vmul.f32 1.0, %v647
        %v649 = vrcp.pop %v603
        %v650 = vmul.f32 1.0, %v649
        %v651 = vrcp.pop %v604
        %v652 = vmul.f32 1.0, %v651
        %v653 = vrcp.pop %v605
        %v654 = vmul.f32 1.0, %v653
        %v655 = vrcp.pop %v606
        %v656 = vmul.f32 1.0, %v655
        %v657 = vrcp.pop %v607
        %v658 = vmul.f32 1.0, %v657
        %v659 = vrcp.pop %v608
        %v660 = vmul.f32 1.0, %v659
        %v661 = vrcp.pop %v609
        %v662 = vmul.f32 1.0, %v661
        %v663 = vrcp.pop %v610
        %v664 = vmul.f32 1.0, %v663
        %v665 = vrcp.pop %v611
        %v666 = vmul.f32 1.0, %v665
        %v667 = vrcp.pop %v612
        %v668 = vmul.f32 1.0, %v667
        %v669 = vrcp.pop %v613
        %v670 = vmul.f32 1.0, %v669
        %v671 = vrcp.pop %v614
        %v672 = vmul.f32 1.0, %v671
        %v673 = vrcp.pop %v615
        %v674 = vmul.f32 1.0, %v673
        %v675 = vrcp.pop %v616
        %v676 = vmul.f32 1.0, %v675
        %v677 = vrcp.pop %v617
        %v678 = vmul.f32 1.0, %v677
        %v679 = vrcp.pop %v618
        %v680 = vmul.f32 1.0, %v679
        %v681 = vrcp.pop %v619
        %v682 = vmul.f32 1.0, %v681
        %v683 = vrcp.pop %v620
        %v684 = vmul.f32 1.0, %v683
        %v685 = vmul.f32 %v461, %v622
        %v686 = vmul.f32 %v462, %v624
        %v687 = vmul.f32 %v463, %v626
        %v688 = vmul.f32 %v464, %v628
        %v689 = vmul.f32 %v465, %v630
        %v690 = vmul.f32 %v466, %v632
        %v691 = vmul.f32 %v467, %v634
        %v692 = vmul.f32 %v468, %v636
        %v693 = vmul.f32 %v469, %v638
        %v694 = vmul.f32 %v470, %v640
        %v695 = vmul.f32 %v471, %v642
        %v696 = vmul.f32 %v472, %v644
        %v697 = vmul.f32 %v473, %v646
        %v698 = vmul.f32 %v474, %v648
        %v699 = vmul.f32 %v475, %v650
        %v700 = vmul.f32 %v476, %v652
        %v701 = vmul.f32 %v477, %v654
        %v702 = vmul.f32 %v478, %v656
        %v703 = vmul.f32 %v479, %v658
        %v704 = vmul.f32 %v480, %v660
        %v705 = vmul.f32 %v481, %v662
        %v706 = vmul.f32 %v482, %v664
        %v707 = vmul.f32 %v483, %v666
        %v708 = vmul.f32 %v484, %v668
        %v709 = vmul.f32 %v485, %v670
        %v710 = vmul.f32 %v486, %v672
        %v711 = vmul.f32 %v487, %v674
        %v712 = vmul.f32 %v488, %v676
        %v713 = vmul.f32 %v489, %v678
        %v714 = vmul.f32 %v490, %v680
        %v715 = vmul.f32 %v491, %v682
        %v716 = vmul.f32 %v492, %v684
        %v717 = vpack.c.bf16 %v686, %v685
        %v718 = vpack.c.bf16 %v688, %v687
        %v719 = vpack.c.bf16 %v690, %v689
        %v720 = vpack.c.bf16 %v692, %v691
        %v721 = vpack.c.bf16 %v694, %v693
        %v722 = vpack.c.bf16 %v696, %v695
        %v723 = vpack.c.bf16 %v698, %v697
        %v724 = vpack.c.bf16 %v700, %v699
        %v725 = vpack.c.bf16 %v702, %v701
        %v726 = vpack.c.bf16 %v704, %v703
        %v727 = vpack.c.bf16 %v706, %v705
        %v728 = vpack.c.bf16 %v708, %v707
        %v729 = vpack.c.bf16 %v710, %v709
        %v730 = vpack.c.bf16 %v712, %v711
        %v731 = vpack.c.bf16 %v714, %v713
        %v732 = vpack.c.bf16 %v716, %v715
        %v733 = vld [vmem:[%s3] sm:$0xf]
        %v734 = vld [vmem:[%s3 + $0x4] sm:$0xf]
        %v735 = vld [vmem:[%s3 + $0x8] sm:$0xf]
        %v736 = vld [vmem:[%s3 + $0xc] sm:$0xf]
        %v737 = vld [vmem:[%s3 + $0x10] sm:$0xf]
        %v738 = vld [vmem:[%s3 + $0x14] sm:$0xf]
        %v739 = vld [vmem:[%s3 + $0x18] sm:$0xf]
        %v740 = vld [vmem:[%s3 + $0x1c] sm:$0xf]
        %v741 = vld [vmem:[%s3 + $0x20] sm:$0xf]
        %v742 = vld [vmem:[%s3 + $0x24] sm:$0xf]
        %v743 = vld [vmem:[%s3 + $0x28] sm:$0xf]
        %v744 = vld [vmem:[%s3 + $0x2c] sm:$0xf]
        %v745 = vld [vmem:[%s3 + $0x30] sm:$0xf]
        %v746 = vld [vmem:[%s3 + $0x34] sm:$0xf]
        %v747 = vld [vmem:[%s3 + $0x38] sm:$0xf]
        %v748 = vld [vmem:[%s3 + $0x3c] sm:$0xf]
        %v749 = vld [vmem:[%s4] sm:$0x1]
        %v751 = vlaneseq
        %v752 = vshrl.u32 %v751, 7
        %v753 = vsub.s32 0, %v752
        %v754 = vrot.slane %v749, %v753
        %v772 = vunpack.c.l.b16 %v733
        %v773 = vunpack.c.l.b16 %v734
        %v774 = vunpack.c.l.b16 %v735
        %v775 = vunpack.c.l.b16 %v736
        %v776 = vunpack.c.l.b16 %v737
        %v777 = vunpack.c.l.b16 %v738
        %v778 = vunpack.c.l.b16 %v739
        %v779 = vunpack.c.l.b16 %v740
        %v780 = vunpack.c.l.b16 %v741
        %v781 = vunpack.c.l.b16 %v742
        %v782 = vunpack.c.l.b16 %v743
        %v783 = vunpack.c.l.b16 %v744
        %v784 = vunpack.c.l.b16 %v745
        %v785 = vunpack.c.l.b16 %v746
        %v786 = vunpack.c.l.b16 %v747
        %v787 = vunpack.c.l.b16 %v748
        %v788 = vpack.c.b16 %v773, %v772
        %v789 = vpack.c.b16 %v775, %v774
        %v790 = vpack.c.b16 %v777, %v776
        %v791 = vpack.c.b16 %v779, %v778
        %v792 = vpack.c.b16 %v781, %v780
        %v793 = vpack.c.b16 %v783, %v782
        %v794 = vpack.c.b16 %v785, %v784
        %v795 = vpack.c.b16 %v787, %v786
        %804 = vmatprep.subr.bf16.mxu0 0
        %805 = vmatpush1.bf16.msra.mxu0 %v788
        %806 = vmatprep.subr.bf16.mxu0 0
        %807 = vmatpush1.bf16.msra.mxu0 %v789
        %808 = vmatprep.subr.bf16.mxu0 0
        %809 = vmatpush1.bf16.msra.mxu0 %v790
        %810 = vmatprep.subr.bf16.mxu0 0
        %811 = vmatpush1.bf16.msra.mxu0 %v791
        %812 = vmatprep.subr.bf16.mxu0 0
        %813 = vmatpush1.bf16.msra.mxu0 %v792
        %814 = vmatprep.subr.bf16.mxu0 0
        %815 = vmatpush1.bf16.msra.mxu0 %v793
        %816 = vmatprep.subr.bf16.mxu0 0
        %817 = vmatpush1.bf16.msra.mxu0 %v794
        %818 = vmatprep.subr.bf16.mxu0 0
        %819 = vmatpush1.bf16.msra.mxu0 %v795
        %820 = vmatprep.subr.bf16.mxu0 0
        %821 = vmatpush1.bf16.msra.mxu0 0
        %822 = vmatprep.subr.bf16.mxu0 0
        %823 = vmatpush1.bf16.msra.mxu0 0
        %824 = vmatprep.subr.bf16.mxu0 0
        %825 = vmatpush1.bf16.msra.mxu0 0
        %826 = vmatprep.subr.bf16.mxu0 0
        %827 = vmatpush1.bf16.msra.mxu0 0
        %828 = vmatprep.subr.bf16.mxu0 0
        %829 = vmatpush1.bf16.msra.mxu0 0
        %830 = vmatprep.subr.bf16.mxu0 0
        %831 = vmatpush1.bf16.msra.mxu0 0
        %832 = vmatprep.subr.bf16.mxu0 0
        %833 = vmatpush1.bf16.msra.mxu0 0
        %834 = vmatprep.subr.bf16.mxu0 0
        %835 = vmatpush1.bf16.msra.mxu0 0
        %836 = vmatprep.mubr.bf16.mxu0 0
        %837 = vmatmul.mubr.bf16.gmra.mrb[0].mxu0 %v717
        %v838 = vpop.f32.mrb[0].mxu0
        %v839 = vadd.f32 %v754, %v838
        %v840 = vpop.f32.mrb[0].mxu0
        %v841 = vpop.f32.mrb[0].mxu0
        %v842 = vadd.f32 %v754, %v841
        %v843 = vpop.f32.mrb[0].mxu0
        %844 = vmatprep.mubr.bf16.mxu0 0
        %845 = vmatmul.mubr.bf16.gmra.mrb[0].mxu0 %v718
        %v846 = vpop.f32.mrb[0].mxu0
        %v847 = vadd.f32 %v754, %v846
        %v848 = vpop.f32.mrb[0].mxu0
        %v849 = vpop.f32.mrb[0].mxu0
        %v850 = vadd.f32 %v754, %v849
        %v851 = vpop.f32.mrb[0].mxu0
        %852 = vmatprep.mubr.bf16.mxu0 0
        %853 = vmatmul.mubr.bf16.gmra.mrb[0].mxu0 %v719
        %v854 = vpop.f32.mrb[0].mxu0
        %v855 = vadd.f32 %v754, %v854
        %v856 = vpop.f32.mrb[0].mxu0
        %v857 = vpop.f32.mrb[0].mxu0
        %v858 = vadd.f32 %v754, %v857
        %v859 = vpop.f32.mrb[0].mxu0
        %860 = vmatprep.mubr.bf16.mxu0 0
        %861 = vmatmul.mubr.bf16.gmra.mrb[0].mxu0 %v720
        %v862 = vpop.f32.mrb[0].mxu0
        %v863 = vadd.f32 %v754, %v862
        %v864 = vpop.f32.mrb[0].mxu0
        %v865 = vpop.f32.mrb[0].mxu0
        %v866 = vadd.f32 %v754, %v865
        %v867 = vpop.f32.mrb[0].mxu0
        %868 = vmatprep.mubr.bf16.mxu0 0
        %869 = vmatmul.mubr.bf16.gmra.mrb[0].mxu0 %v721
        %v870 = vpop.f32.mrb[0].mxu0
        %v871 = vadd.f32 %v754, %v870
        %v872 = vpop.f32.mrb[0].mxu0
        %v873 = vpop.f32.mrb[0].mxu0
        %v874 = vadd.f32 %v754, %v873
        %v875 = vpop.f32.mrb[0].mxu0
        %876 = vmatprep.mubr.bf16.mxu0 0
        %877 = vmatmul.mubr.bf16.gmra.mrb[0].mxu0 %v722
        %v878 = vpop.f32.mrb[0].mxu0
        %v879 = vadd.f32 %v754, %v878
        %v880 = vpop.f32.mrb[0].mxu0
        %v881 = vpop.f32.mrb[0].mxu0
        %v882 = vadd.f32 %v754, %v881
        %v883 = vpop.f32.mrb[0].mxu0
        %884 = vmatprep.mubr.bf16.mxu0 0
        %885 = vmatmul.mubr.bf16.gmra.mrb[0].mxu0 %v723
        %v886 = vpop.f32.mrb[0].mxu0
        %v887 = vadd.f32 %v754, %v886
        %v888 = vpop.f32.mrb[0].mxu0
        %v889 = vpop.f32.mrb[0].mxu0
        %v890 = vadd.f32 %v754, %v889
        %v891 = vpop.f32.mrb[0].mxu0
        %892 = vmatprep.mubr.bf16.mxu0 0
        %893 = vmatmul.mubr.bf16.gmra.mrb[0].mxu0 %v724
        %v894 = vpop.f32.mrb[0].mxu0
        %v895 = vadd.f32 %v754, %v894
        %v896 = vpop.f32.mrb[0].mxu0
        %v897 = vpop.f32.mrb[0].mxu0
        %v898 = vadd.f32 %v754, %v897
        %v899 = vpop.f32.mrb[0].mxu0
        %900 = vmatprep.mubr.bf16.mxu0 0
        %901 = vmatmul.mubr.bf16.gmra.mrb[0].mxu0 %v725
        %v902 = vpop.f32.mrb[0].mxu0
        %v903 = vadd.f32 %v754, %v902
        %v904 = vpop.f32.mrb[0].mxu0
        %v905 = vpop.f32.mrb[0].mxu0
        %v906 = vadd.f32 %v754, %v905
        %v907 = vpop.f32.mrb[0].mxu0
        %908 = vmatprep.mubr.bf16.mxu0 0
        %909 = vmatmul.mubr.bf16.gmra.mrb[0].mxu0 %v726
        %v910 = vpop.f32.mrb[0].mxu0
        %v911 = vadd.f32 %v754, %v910
        %v912 = vpop.f32.mrb[0].mxu0
        %v913 = vpop.f32.mrb[0].mxu0
        %v914 = vadd.f32 %v754, %v913
        %v915 = vpop.f32.mrb[0].mxu0
        %916 = vmatprep.mubr.bf16.mxu0 0
        %917 = vmatmul.mubr.bf16.gmra.mrb[0].mxu0 %v727
        %v918 = vpop.f32.mrb[0].mxu0
        %v919 = vadd.f32 %v754, %v918
        %v920 = vpop.f32.mrb[0].mxu0
        %v921 = vpop.f32.mrb[0].mxu0
        %v922 = vadd.f32 %v754, %v921
        %v923 = vpop.f32.mrb[0].mxu0
        %924 = vmatprep.mubr.bf16.mxu0 0
        %925 = vmatmul.mubr.bf16.gmra.mrb[0].mxu0 %v728
        %v926 = vpop.f32.mrb[0].mxu0
        %v927 = vadd.f32 %v754, %v926
        %v928 = vpop.f32.mrb[0].mxu0
        %v929 = vpop.f32.mrb[0].mxu0
        %v930 = vadd.f32 %v754, %v929
        %v931 = vpop.f32.mrb[0].mxu0
        %932 = vmatprep.mubr.bf16.mxu0 0
        %933 = vmatmul.mubr.bf16.gmra.mrb[0].mxu0 %v729
        %v934 = vpop.f32.mrb[0].mxu0
        %v935 = vadd.f32 %v754, %v934
        %v936 = vpop.f32.mrb[0].mxu0
        %v937 = vpop.f32.mrb[0].mxu0
        %v938 = vadd.f32 %v754, %v937
        %v939 = vpop.f32.mrb[0].mxu0
        %940 = vmatprep.mubr.bf16.mxu0 0
        %941 = vmatmul.mubr.bf16.gmra.mrb[0].mxu0 %v730
        %v942 = vpop.f32.mrb[0].mxu0
        %v943 = vadd.f32 %v754, %v942
        %v944 = vpop.f32.mrb[0].mxu0
        %v945 = vpop.f32.mrb[0].mxu0
        %v946 = vadd.f32 %v754, %v945
        %v947 = vpop.f32.mrb[0].mxu0
        %948 = vmatprep.mubr.bf16.mxu0 0
        %949 = vmatmul.mubr.bf16.gmra.mrb[0].mxu0 %v731
        %v950 = vpop.f32.mrb[0].mxu0
        %v951 = vadd.f32 %v754, %v950
        %v952 = vpop.f32.mrb[0].mxu0
        %v953 = vpop.f32.mrb[0].mxu0
        %v954 = vadd.f32 %v754, %v953
        %v955 = vpop.f32.mrb[0].mxu0
        %956 = vmatprep.mubr.bf16.mxu0 0
        %957 = vmatmul.mubr.bf16.gmra.mrb[0].mxu0 %v732
        %v958 = vpop.f32.mrb[0].mxu0
        %v959 = vadd.f32 %v754, %v958
        %v960 = vpop.f32.mrb[0].mxu0
        %v961 = vpop.f32.mrb[0].mxu0
        %v962 = vadd.f32 %v754, %v961
        %v963 = vpop.f32.mrb[0].mxu0
        %964 = vdwg.mxu0
        %v965 = vxor.u32 %v839, 2147483648
        %v966 = vxor.u32 %v842, 2147483648
        %v967 = vxor.u32 %v847, 2147483648
        %v968 = vxor.u32 %v850, 2147483648
        %v969 = vxor.u32 %v855, 2147483648
        %v970 = vxor.u32 %v858, 2147483648
        %v971 = vxor.u32 %v863, 2147483648
        %v972 = vxor.u32 %v866, 2147483648
        %v973 = vxor.u32 %v871, 2147483648
        %v974 = vxor.u32 %v874, 2147483648
        %v975 = vxor.u32 %v879, 2147483648
        %v976 = vxor.u32 %v882, 2147483648
        %v977 = vxor.u32 %v887, 2147483648
        %v978 = vxor.u32 %v890, 2147483648
        %v979 = vxor.u32 %v895, 2147483648
        %v980 = vxor.u32 %v898, 2147483648
        %v981 = vxor.u32 %v903, 2147483648
        %v982 = vxor.u32 %v906, 2147483648
        %v983 = vxor.u32 %v911, 2147483648
        %v984 = vxor.u32 %v914, 2147483648
        %v985 = vxor.u32 %v919, 2147483648
        %v986 = vxor.u32 %v922, 2147483648
        %v987 = vxor.u32 %v927, 2147483648
        %v988 = vxor.u32 %v930, 2147483648
        %v989 = vxor.u32 %v935, 2147483648
        %v990 = vxor.u32 %v938, 2147483648
        %v991 = vxor.u32 %v943, 2147483648
        %v992 = vxor.u32 %v946, 2147483648
        %v993 = vxor.u32 %v951, 2147483648
        %v994 = vxor.u32 %v954, 2147483648
        %v995 = vxor.u32 %v959, 2147483648
        %v996 = vxor.u32 %v962, 2147483648
        %v997 = vmul.f32 %v965, 1.442695
        %v998 = vpow.pop %v997
        %v999 = vmul.f32 %v966, 1.442695
        %v1000 = vpow.pop %v999
        %v1001 = vmul.f32 %v967, 1.442695
        %v1002 = vpow.pop %v1001
        %v1003 = vmul.f32 %v968, 1.442695
        %v1004 = vpow.pop %v1003
        %v1005 = vmul.f32 %v969, 1.442695
        %v1006 = vpow.pop %v1005
        %v1007 = vmul.f32 %v970, 1.442695
        %v1008 = vpow.pop %v1007
        %v1009 = vmul.f32 %v971, 1.442695
        %v1010 = vpow.pop %v1009
        %v1011 = vmul.f32 %v972, 1.442695
        %v1012 = vpow.pop %v1011
        %v1013 = vmul.f32 %v973, 1.442695
        %v1014 = vpow.pop %v1013
        %v1015 = vmul.f32 %v974, 1.442695
        %v1016 = vpow.pop %v1015
        %v1017 = vmul.f32 %v975, 1.442695
        %v1018 = vpow.pop %v1017
        %v1019 = vmul.f32 %v976, 1.442695
        %v1020 = vpow.pop %v1019
        %v1021 = vmul.f32 %v977, 1.442695
        %v1022 = vpow.pop %v1021
        %v1023 = vmul.f32 %v978, 1.442695
        %v1024 = vpow.pop %v1023
        %v1025 = vmul.f32 %v979, 1.442695
        %v1026 = vpow.pop %v1025
        %v1027 = vmul.f32 %v980, 1.442695
        %v1028 = vpow.pop %v1027
        %v1029 = vmul.f32 %v981, 1.442695
        %v1030 = vpow.pop %v1029
        %v1031 = vmul.f32 %v982, 1.442695
        %v1032 = vpow.pop %v1031
        %v1033 = vmul.f32 %v983, 1.442695
        %v1034 = vpow.pop %v1033
        %v1035 = vmul.f32 %v984, 1.442695
        %v1036 = vpow.pop %v1035
        %v1037 = vmul.f32 %v985, 1.442695
        %v1038 = vpow.pop %v1037
        %v1039 = vmul.f32 %v986, 1.442695
        %v1040 = vpow.pop %v1039
        %v1041 = vmul.f32 %v987, 1.442695
        %v1042 = vpow.pop %v1041
        %v1043 = vmul.f32 %v988, 1.442695
        %v1044 = vpow.pop %v1043
        %v1045 = vmul.f32 %v989, 1.442695
        %v1046 = vpow.pop %v1045
        %v1047 = vmul.f32 %v990, 1.442695
        %v1048 = vpow.pop %v1047
        %v1049 = vmul.f32 %v991, 1.442695
        %v1050 = vpow.pop %v1049
        %v1051 = vmul.f32 %v992, 1.442695
        %v1052 = vpow.pop %v1051
        %v1053 = vmul.f32 %v993, 1.442695
        %v1054 = vpow.pop %v1053
        %v1055 = vmul.f32 %v994, 1.442695
        %v1056 = vpow.pop %v1055
        %v1057 = vmul.f32 %v995, 1.442695
        %v1058 = vpow.pop %v1057
        %v1059 = vmul.f32 %v996, 1.442695
        %v1060 = vpow.pop %v1059
        %v1061 = vadd.f32 %v998, 1.0
        %v1062 = vadd.f32 %v1000, 1.0
        %v1063 = vadd.f32 %v1002, 1.0
        %v1064 = vadd.f32 %v1004, 1.0
        %v1065 = vadd.f32 %v1006, 1.0
        %v1066 = vadd.f32 %v1008, 1.0
        %v1067 = vadd.f32 %v1010, 1.0
        %v1068 = vadd.f32 %v1012, 1.0
        %v1069 = vadd.f32 %v1014, 1.0
        %v1070 = vadd.f32 %v1016, 1.0
        %v1071 = vadd.f32 %v1018, 1.0
        %v1072 = vadd.f32 %v1020, 1.0
        %v1073 = vadd.f32 %v1022, 1.0
        %v1074 = vadd.f32 %v1024, 1.0
        %v1075 = vadd.f32 %v1026, 1.0
        %v1076 = vadd.f32 %v1028, 1.0
        %v1077 = vadd.f32 %v1030, 1.0
        %v1078 = vadd.f32 %v1032, 1.0
        %v1079 = vadd.f32 %v1034, 1.0
        %v1080 = vadd.f32 %v1036, 1.0
        %v1081 = vadd.f32 %v1038, 1.0
        %v1082 = vadd.f32 %v1040, 1.0
        %v1083 = vadd.f32 %v1042, 1.0
        %v1084 = vadd.f32 %v1044, 1.0
        %v1085 = vadd.f32 %v1046, 1.0
        %v1086 = vadd.f32 %v1048, 1.0
        %v1087 = vadd.f32 %v1050, 1.0
        %v1088 = vadd.f32 %v1052, 1.0
        %v1089 = vadd.f32 %v1054, 1.0
        %v1090 = vadd.f32 %v1056, 1.0
        %v1091 = vadd.f32 %v1058, 1.0
        %v1092 = vadd.f32 %v1060, 1.0
        %v1093 = vrcp.pop %v1061
        %v1094 = vmul.f32 1.0, %v1093
        %v1095 = vrcp.pop %v1062
        %v1096 = vmul.f32 1.0, %v1095
        %v1097 = vrcp.pop %v1063
        %v1098 = vmul.f32 1.0, %v1097
        %v1099 = vrcp.pop %v1064
        %v1100 = vmul.f32 1.0, %v1099
        %v1101 = vrcp.pop %v1065
        %v1102 = vmul.f32 1.0, %v1101
        %v1103 = vrcp.pop %v1066
        %v1104 = vmul.f32 1.0, %v1103
        %v1105 = vrcp.pop %v1067
        %v1106 = vmul.f32 1.0, %v1105
        %v1107 = vrcp.pop %v1068
        %v1108 = vmul.f32 1.0, %v1107
        %v1109 = vrcp.pop %v1069
        %v1110 = vmul.f32 1.0, %v1109
        %v1111 = vrcp.pop %v1070
        %v1112 = vmul.f32 1.0, %v1111
        %v1113 = vrcp.pop %v1071
        %v1114 = vmul.f32 1.0, %v1113
        %v1115 = vrcp.pop %v1072
        %v1116 = vmul.f32 1.0, %v1115
        %v1117 = vrcp.pop %v1073
        %v1118 = vmul.f32 1.0, %v1117
        %v1119 = vrcp.pop %v1074
        %v1120 = vmul.f32 1.0, %v1119
        %v1121 = vrcp.pop %v1075
        %v1122 = vmul.f32 1.0, %v1121
        %v1123 = vrcp.pop %v1076
        %v1124 = vmul.f32 1.0, %v1123
        %v1125 = vrcp.pop %v1077
        %v1126 = vmul.f32 1.0, %v1125
        %v1127 = vrcp.pop %v1078
        %v1128 = vmul.f32 1.0, %v1127
        %v1129 = vrcp.pop %v1079
        %v1130 = vmul.f32 1.0, %v1129
        %v1131 = vrcp.pop %v1080
        %v1132 = vmul.f32 1.0, %v1131
        %v1133 = vrcp.pop %v1081
        %v1134 = vmul.f32 1.0, %v1133
        %v1135 = vrcp.pop %v1082
        %v1136 = vmul.f32 1.0, %v1135
        %v1137 = vrcp.pop %v1083
        %v1138 = vmul.f32 1.0, %v1137
        %v1139 = vrcp.pop %v1084
        %v1140 = vmul.f32 1.0, %v1139
        %v1141 = vrcp.pop %v1085
        %v1142 = vmul.f32 1.0, %v1141
        %v1143 = vrcp.pop %v1086
        %v1144 = vmul.f32 1.0, %v1143
        %v1145 = vrcp.pop %v1087
        %v1146 = vmul.f32 1.0, %v1145
        %v1147 = vrcp.pop %v1088
        %v1148 = vmul.f32 1.0, %v1147
        %v1149 = vrcp.pop %v1089
        %v1150 = vmul.f32 1.0, %v1149
        %v1151 = vrcp.pop %v1090
        %v1152 = vmul.f32 1.0, %v1151
        %v1153 = vrcp.pop %v1091
        %v1154 = vmul.f32 1.0, %v1153
        %v1155 = vrcp.pop %v1092
        %v1156 = vmul.f32 1.0, %v1155
        %v1157 = vmul.f32 %v839, %v1094
        %v1158 = vmul.f32 %v842, %v1096
        %v1159 = vmul.f32 %v847, %v1098
        %v1160 = vmul.f32 %v850, %v1100
        %v1161 = vmul.f32 %v855, %v1102
        %v1162 = vmul.f32 %v858, %v1104
        %v1163 = vmul.f32 %v863, %v1106
        %v1164 = vmul.f32 %v866, %v1108
        %v1165 = vmul.f32 %v871, %v1110
        %v1166 = vmul.f32 %v874, %v1112
        %v1167 = vmul.f32 %v879, %v1114
        %v1168 = vmul.f32 %v882, %v1116
        %v1169 = vmul.f32 %v887, %v1118
        %v1170 = vmul.f32 %v890, %v1120
        %v1171 = vmul.f32 %v895, %v1122
        %v1172 = vmul.f32 %v898, %v1124
        %v1173 = vmul.f32 %v903, %v1126
        %v1174 = vmul.f32 %v906, %v1128
        %v1175 = vmul.f32 %v911, %v1130
        %v1176 = vmul.f32 %v914, %v1132
        %v1177 = vmul.f32 %v919, %v1134
        %v1178 = vmul.f32 %v922, %v1136
        %v1179 = vmul.f32 %v927, %v1138
        %v1180 = vmul.f32 %v930, %v1140
        %v1181 = vmul.f32 %v935, %v1142
        %v1182 = vmul.f32 %v938, %v1144
        %v1183 = vmul.f32 %v943, %v1146
        %v1184 = vmul.f32 %v946, %v1148
        %v1185 = vmul.f32 %v951, %v1150
        %v1186 = vmul.f32 %v954, %v1152
        %v1187 = vmul.f32 %v959, %v1154
        %v1188 = vmul.f32 %v962, %v1156
        %v1189 = vlaneseq
        %v1190 = vshrl.u32 %v1189, 7
        %v1191 = vadd.s32 %v1190, 8
        %v1192 = vadd.s32 %v1190, 16
        %v1193 = vadd.s32 %v1190, 24
        %v1194 = vadd.s32 %v1190, 32
        %v1195 = vadd.s32 %v1190, 40
        %v1196 = vadd.s32 %v1190, 48
        %v1197 = vadd.s32 %v1190, 56
        %v1198 = vadd.s32 %v1190, 64
        %v1199 = vadd.s32 %v1190, 72
        %v1200 = vadd.s32 %v1190, 80
        %v1201 = vadd.s32 %v1190, 88
        %v1202 = vadd.s32 %v1190, 96
        %v1203 = vadd.s32 %v1190, 104
        %v1204 = vadd.s32 %v1190, 112
        %v1205 = vadd.s32 %v1190, 120
        %s1206 = smul.u32 %s27, 128
        %v1207 = vstv %s1206
        %v1208 = vadd.s32 %v1190, %v1207
        %v1209 = vadd.s32 %v1191, %v1207
        %v1210 = vadd.s32 %v1192, %v1207
        %v1211 = vadd.s32 %v1193, %v1207
        %v1212 = vadd.s32 %v1194, %v1207
        %v1213 = vadd.s32 %v1195, %v1207
        %v1214 = vadd.s32 %v1196, %v1207
        %v1215 = vadd.s32 %v1197, %v1207
        %v1216 = vadd.s32 %v1198, %v1207
        %v1217 = vadd.s32 %v1199, %v1207
        %v1218 = vadd.s32 %v1200, %v1207
        %v1219 = vadd.s32 %v1201, %v1207
        %v1220 = vadd.s32 %v1202, %v1207
        %v1221 = vadd.s32 %v1203, %v1207
        %v1222 = vadd.s32 %v1204, %v1207
        %v1223 = vadd.s32 %v1205, %v1207
        %v1224 = vld [vmem:[%s400] sm:$0x3]
        %v1225 = vlaneseq
        %v1226 = vshrl.u32 %v1225, 7
        %v1227 = vsub.s32 0, %v1226
        %v1228 = vrot.slane %v1224, %v1227
        %v1229 = vlaneseq
        %v1230 = vshrl.u32 %v1229, 7
        %v1231 = vsub.s32 1, %v1230
        %v1232 = vrot.slane %v1224, %v1231
        %vm1233 = vcmp.eq.s32.totalorder %v1208, %v1228
        %vm1234 = vcmp.eq.s32.totalorder %v1208, %v1232
        %vm1235 = vcmp.eq.s32.totalorder %v1209, %v1228
        %vm1236 = vcmp.eq.s32.totalorder %v1209, %v1232
        %vm1237 = vcmp.eq.s32.totalorder %v1210, %v1228
        %vm1238 = vcmp.eq.s32.totalorder %v1210, %v1232
        %vm1239 = vcmp.eq.s32.totalorder %v1211, %v1228
        %vm1240 = vcmp.eq.s32.totalorder %v1211, %v1232
        %vm1241 = vcmp.eq.s32.totalorder %v1212, %v1228
        %vm1242 = vcmp.eq.s32.totalorder %v1212, %v1232
        %vm1243 = vcmp.eq.s32.totalorder %v1213, %v1228
        %vm1244 = vcmp.eq.s32.totalorder %v1213, %v1232
        %vm1245 = vcmp.eq.s32.totalorder %v1214, %v1228
        %vm1246 = vcmp.eq.s32.totalorder %v1214, %v1232
        %vm1247 = vcmp.eq.s32.totalorder %v1215, %v1228
        %vm1248 = vcmp.eq.s32.totalorder %v1215, %v1232
        %vm1249 = vcmp.eq.s32.totalorder %v1216, %v1228
        %vm1250 = vcmp.eq.s32.totalorder %v1216, %v1232
        %vm1251 = vcmp.eq.s32.totalorder %v1217, %v1228
        %vm1252 = vcmp.eq.s32.totalorder %v1217, %v1232
        %vm1253 = vcmp.eq.s32.totalorder %v1218, %v1228
        %vm1254 = vcmp.eq.s32.totalorder %v1218, %v1232
        %vm1255 = vcmp.eq.s32.totalorder %v1219, %v1228
        %vm1256 = vcmp.eq.s32.totalorder %v1219, %v1232
        %vm1257 = vcmp.eq.s32.totalorder %v1220, %v1228
        %vm1258 = vcmp.eq.s32.totalorder %v1220, %v1232
        %vm1259 = vcmp.eq.s32.totalorder %v1221, %v1228
        %vm1260 = vcmp.eq.s32.totalorder %v1221, %v1232
        %vm1261 = vcmp.eq.s32.totalorder %v1222, %v1228
        %vm1262 = vcmp.eq.s32.totalorder %v1222, %v1232
        %vm1263 = vcmp.eq.s32.totalorder %v1223, %v1228
        %vm1264 = vcmp.eq.s32.totalorder %v1223, %v1232
        %v1265 = vsel %vm1233, 1, 0
        %v1266 = vsel %vm1234, 1, 0
        %v1267 = vsel %vm1235, 1, 0
        %v1268 = vsel %vm1236, 1, 0
        %v1269 = vsel %vm1237, 1, 0
        %v1270 = vsel %vm1238, 1, 0
        %v1271 = vsel %vm1239, 1, 0
        %v1272 = vsel %vm1240, 1, 0
        %v1273 = vsel %vm1241, 1, 0
        %v1274 = vsel %vm1242, 1, 0
        %v1275 = vsel %vm1243, 1, 0
        %v1276 = vsel %vm1244, 1, 0
        %v1277 = vsel %vm1245, 1, 0
        %v1278 = vsel %vm1246, 1, 0
        %v1279 = vsel %vm1247, 1, 0
        %v1280 = vsel %vm1248, 1, 0
        %v1281 = vsel %vm1249, 1, 0
        %v1282 = vsel %vm1250, 1, 0
        %v1283 = vsel %vm1251, 1, 0
        %v1284 = vsel %vm1252, 1, 0
        %v1285 = vsel %vm1253, 1, 0
        %v1286 = vsel %vm1254, 1, 0
        %v1287 = vsel %vm1255, 1, 0
        %v1288 = vsel %vm1256, 1, 0
        %v1289 = vsel %vm1257, 1, 0
        %v1290 = vsel %vm1258, 1, 0
        %v1291 = vsel %vm1259, 1, 0
        %v1292 = vsel %vm1260, 1, 0
        %v1293 = vsel %vm1261, 1, 0
        %v1294 = vsel %vm1262, 1, 0
        %v1295 = vsel %vm1263, 1, 0
        %v1296 = vsel %vm1264, 1, 0
        %v1297 = vcvt.s32.f32 %v1265
        %v1298 = vcvt.s32.f32 %v1266
        %v1299 = vcvt.s32.f32 %v1267
        %v1300 = vcvt.s32.f32 %v1268
        %v1301 = vcvt.s32.f32 %v1269
        %v1302 = vcvt.s32.f32 %v1270
        %v1303 = vcvt.s32.f32 %v1271
        %v1304 = vcvt.s32.f32 %v1272
        %v1305 = vcvt.s32.f32 %v1273
        %v1306 = vcvt.s32.f32 %v1274
        %v1307 = vcvt.s32.f32 %v1275
        %v1308 = vcvt.s32.f32 %v1276
        %v1309 = vcvt.s32.f32 %v1277
        %v1310 = vcvt.s32.f32 %v1278
        %v1311 = vcvt.s32.f32 %v1279
        %v1312 = vcvt.s32.f32 %v1280
        %v1313 = vcvt.s32.f32 %v1281
        %v1314 = vcvt.s32.f32 %v1282
        %v1315 = vcvt.s32.f32 %v1283
        %v1316 = vcvt.s32.f32 %v1284
        %v1317 = vcvt.s32.f32 %v1285
        %v1318 = vcvt.s32.f32 %v1286
        %v1319 = vcvt.s32.f32 %v1287
        %v1320 = vcvt.s32.f32 %v1288
        %v1321 = vcvt.s32.f32 %v1289
        %v1322 = vcvt.s32.f32 %v1290
        %v1323 = vcvt.s32.f32 %v1291
        %v1324 = vcvt.s32.f32 %v1292
        %v1325 = vcvt.s32.f32 %v1293
        %v1326 = vcvt.s32.f32 %v1294
        %v1327 = vcvt.s32.f32 %v1295
        %v1328 = vcvt.s32.f32 %v1296
        %v1329 = vpack.c.bf16 %v1299, %v1297
        %v1330 = vpack.c.bf16 %v1300, %v1298
        %v1331 = vpack.c.bf16 %v1303, %v1301
        %v1332 = vpack.c.bf16 %v1304, %v1302
        %v1333 = vpack.c.bf16 %v1307, %v1305
        %v1334 = vpack.c.bf16 %v1308, %v1306
        %v1335 = vpack.c.bf16 %v1311, %v1309
        %v1336 = vpack.c.bf16 %v1312, %v1310
        %v1337 = vpack.c.bf16 %v1315, %v1313
        %v1338 = vpack.c.bf16 %v1316, %v1314
        %v1339 = vpack.c.bf16 %v1319, %v1317
        %v1340 = vpack.c.bf16 %v1320, %v1318
        %v1341 = vpack.c.bf16 %v1323, %v1321
        %v1342 = vpack.c.bf16 %v1324, %v1322
        %v1343 = vpack.c.bf16 %v1327, %v1325
        %v1344 = vpack.c.bf16 %v1328, %v1326
        %v1345 = vld [vmem:[#allocation2] sm:$0xff]
        %v1346 = vld [vmem:[#allocation2 + $0x8] sm:$0xff]
        %v1347 = vld [vmem:[#allocation2 + $0x10] sm:$0xff]
        %v1348 = vld [vmem:[#allocation2 + $0x18] sm:$0xff]
        %v1349 = vld [vmem:[#allocation2 + $0x20] sm:$0xff]
        %v1350 = vld [vmem:[#allocation2 + $0x28] sm:$0xff]
        %v1351 = vld [vmem:[#allocation2 + $0x30] sm:$0xff]
        %v1352 = vld [vmem:[#allocation2 + $0x38] sm:$0xff]
        %v1353 = vld [vmem:[#allocation2 + $0x40] sm:$0xff]
        %v1354 = vld [vmem:[#allocation2 + $0x48] sm:$0xff]
        %v1355 = vld [vmem:[#allocation2 + $0x50] sm:$0xff]
        %v1356 = vld [vmem:[#allocation2 + $0x58] sm:$0xff]
        %v1357 = vld [vmem:[#allocation2 + $0x60] sm:$0xff]
        %v1358 = vld [vmem:[#allocation2 + $0x68] sm:$0xff]
        %v1359 = vld [vmem:[#allocation2 + $0x70] sm:$0xff]
        %v1360 = vld [vmem:[#allocation2 + $0x78] sm:$0xff]
        %v1361 = vpack.c.bf16 %v1158, %v1157
        %v1362 = vpack.c.bf16 %v1160, %v1159
        %v1363 = vpack.c.bf16 %v1162, %v1161
        %v1364 = vpack.c.bf16 %v1164, %v1163
        %v1365 = vpack.c.bf16 %v1166, %v1165
        %v1366 = vpack.c.bf16 %v1168, %v1167
        %v1367 = vpack.c.bf16 %v1170, %v1169
        %v1368 = vpack.c.bf16 %v1172, %v1171
        %v1369 = vpack.c.bf16 %v1174, %v1173
        %v1370 = vpack.c.bf16 %v1176, %v1175
        %v1371 = vpack.c.bf16 %v1178, %v1177
        %v1372 = vpack.c.bf16 %v1180, %v1179
        %v1373 = vpack.c.bf16 %v1182, %v1181
        %v1374 = vpack.c.bf16 %v1184, %v1183
        %v1375 = vpack.c.bf16 %v1186, %v1185
        %v1376 = vpack.c.bf16 %v1188, %v1187
        %1377 = vmatprep.subr.bf16.mxu0 0
        %1378 = vmatpush1.bf16.msra.mxu0 %v1361
        %1379 = vmatprep.subr.bf16.mxu0 0
        %1380 = vmatpush1.bf16.msra.mxu0 %v1362
        %1381 = vmatprep.subr.bf16.mxu0 0
        %1382 = vmatpush1.bf16.msra.mxu0 %v1363
        %1383 = vmatprep.subr.bf16.mxu0 0
        %1384 = vmatpush1.bf16.msra.mxu0 %v1364
        %1385 = vmatprep.subr.bf16.mxu0 0
        %1386 = vmatpush1.bf16.msra.mxu0 %v1365
        %1387 = vmatprep.subr.bf16.mxu0 0
        %1388 = vmatpush1.bf16.msra.mxu0 %v1366
        %1389 = vmatprep.subr.bf16.mxu0 0
        %1390 = vmatpush1.bf16.msra.mxu0 %v1367
        %1391 = vmatprep.subr.bf16.mxu0 0
        %1392 = vmatpush1.bf16.msra.mxu0 %v1368
        %1393 = vmatprep.subr.bf16.mxu0 0
        %1394 = vmatpush1.bf16.msra.mxu0 %v1369
        %1395 = vmatprep.subr.bf16.mxu0 0
        %1396 = vmatpush1.bf16.msra.mxu0 %v1370
        %1397 = vmatprep.subr.bf16.mxu0 0
        %1398 = vmatpush1.bf16.msra.mxu0 %v1371
        %1399 = vmatprep.subr.bf16.mxu0 0
        %1400 = vmatpush1.bf16.msra.mxu0 %v1372
        %1401 = vmatprep.subr.bf16.mxu0 0
        %1402 = vmatpush1.bf16.msra.mxu0 %v1373
        %1403 = vmatprep.subr.bf16.mxu0 0
        %1404 = vmatpush1.bf16.msra.mxu0 %v1374
        %1405 = vmatprep.subr.bf16.mxu0 0
        %1406 = vmatpush1.bf16.msra.mxu0 %v1375
        %1407 = vmatprep.subr.bf16.mxu0 0
        %1408 = vmatpush1.bf16.msra.mxu0 %v1376
        %1409 = vmatprep.mubr.bf16.mxu0 %v1330
        %1410 = vmatmul.mubr.bf16.gmra.mrb[0].mxu0 %v1329
        %v1411 = vpop.f32.mrb[0].mxu0
        %v1412 = vadd.f32 0.0, %v1411
        %v1413 = vpop.f32.mrb[0].mxu0
        %v1414 = vpop.f32.mrb[0].mxu0
        %v1415 = vadd.f32 0.0, %v1414
        %v1416 = vpop.f32.mrb[0].mxu0
        %1417 = vmatprep.mubr.bf16.mxu0 %v1332
        %1418 = vmatmul.mubr.bf16.gmra.mrb[0].mxu0 %v1331
        %v1419 = vpop.f32.mrb[0].mxu0
        %v1420 = vadd.f32 0.0, %v1419
        %v1421 = vpop.f32.mrb[0].mxu0
        %v1422 = vpop.f32.mrb[0].mxu0
        %v1423 = vadd.f32 0.0, %v1422
        %v1424 = vpop.f32.mrb[0].mxu0
        %1425 = vmatprep.mubr.bf16.mxu0 %v1334
        %1426 = vmatmul.mubr.bf16.gmra.mrb[0].mxu0 %v1333
        %v1427 = vpop.f32.mrb[0].mxu0
        %v1428 = vadd.f32 0.0, %v1427
        %v1429 = vpop.f32.mrb[0].mxu0
        %v1430 = vpop.f32.mrb[0].mxu0
        %v1431 = vadd.f32 0.0, %v1430
        %v1432 = vpop.f32.mrb[0].mxu0
        %1433 = vmatprep.mubr.bf16.mxu0 %v1336
        %1434 = vmatmul.mubr.bf16.gmra.mrb[0].mxu0 %v1335
        %v1435 = vpop.f32.mrb[0].mxu0
        %v1436 = vadd.f32 0.0, %v1435
        %v1437 = vpop.f32.mrb[0].mxu0
        %v1438 = vpop.f32.mrb[0].mxu0
        %v1439 = vadd.f32 0.0, %v1438
        %v1440 = vpop.f32.mrb[0].mxu0
        %1441 = vmatprep.mubr.bf16.mxu0 %v1338
        %1442 = vmatmul.mubr.bf16.gmra.mrb[0].mxu0 %v1337
        %v1443 = vpop.f32.mrb[0].mxu0
        %v1444 = vadd.f32 0.0, %v1443
        %v1445 = vpop.f32.mrb[0].mxu0
        %v1446 = vpop.f32.mrb[0].mxu0
        %v1447 = vadd.f32 0.0, %v1446
        %v1448 = vpop.f32.mrb[0].mxu0
        %1449 = vmatprep.mubr.bf16.mxu0 %v1340
        %1450 = vmatmul.mubr.bf16.gmra.mrb[0].mxu0 %v1339
        %v1451 = vpop.f32.mrb[0].mxu0
        %v1452 = vadd.f32 0.0, %v1451
        %v1453 = vpop.f32.mrb[0].mxu0
        %v1454 = vpop.f32.mrb[0].mxu0
        %v1455 = vadd.f32 0.0, %v1454
        %v1456 = vpop.f32.mrb[0].mxu0
        %1457 = vmatprep.mubr.bf16.mxu0 %v1342
        %1458 = vmatmul.mubr.bf16.gmra.mrb[0].mxu0 %v1341
        %v1459 = vpop.f32.mrb[0].mxu0
        %v1460 = vadd.f32 0.0, %v1459
        %v1461 = vpop.f32.mrb[0].mxu0
        %v1462 = vpop.f32.mrb[0].mxu0
        %v1463 = vadd.f32 0.0, %v1462
        %v1464 = vpop.f32.mrb[0].mxu0
        %1465 = vmatprep.mubr.bf16.mxu0 %v1344
        %1466 = vmatmul.mubr.bf16.gmra.mrb[0].mxu0 %v1343
        %v1467 = vpop.f32.mrb[0].mxu0
        %v1468 = vadd.f32 0.0, %v1467
        %v1469 = vpop.f32.mrb[0].mxu0
        %v1470 = vpop.f32.mrb[0].mxu0
        %v1471 = vadd.f32 0.0, %v1470
        %v1472 = vpop.f32.mrb[0].mxu0
        %1473 = vdwg.mxu0
        %v1474 = vadd.f32 %v1345, %v1412
        %v1475 = vadd.f32 %v1346, %v1415
        %v1476 = vadd.f32 %v1347, %v1420
        %v1477 = vadd.f32 %v1348, %v1423
        %v1478 = vadd.f32 %v1349, %v1428
        %v1479 = vadd.f32 %v1350, %v1431
        %v1480 = vadd.f32 %v1351, %v1436
        %v1481 = vadd.f32 %v1352, %v1439
        %v1482 = vadd.f32 %v1353, %v1444
        %v1483 = vadd.f32 %v1354, %v1447
        %v1484 = vadd.f32 %v1355, %v1452
        %v1485 = vadd.f32 %v1356, %v1455
        %v1486 = vadd.f32 %v1357, %v1460
        %v1487 = vadd.f32 %v1358, %v1463
        %v1488 = vadd.f32 %v1359, %v1468
        %v1489 = vadd.f32 %v1360, %v1471
        %1490 = vst [vmem:[#allocation2] sm:$0xff] %v1474
        %1491 = vst [vmem:[#allocation2 + $0x8] sm:$0xff] %v1475
        %1492 = vst [vmem:[#allocation2 + $0x10] sm:$0xff] %v1476
        %1493 = vst [vmem:[#allocation2 + $0x18] sm:$0xff] %v1477
        %1494 = vst [vmem:[#allocation2 + $0x20] sm:$0xff] %v1478
        %1495 = vst [vmem:[#allocation2 + $0x28] sm:$0xff] %v1479
        %1496 = vst [vmem:[#allocation2 + $0x30] sm:$0xff] %v1480
        %1497 = vst [vmem:[#allocation2 + $0x38] sm:$0xff] %v1481
        %1498 = vst [vmem:[#allocation2 + $0x40] sm:$0xff] %v1482
        %1499 = vst [vmem:[#allocation2 + $0x48] sm:$0xff] %v1483
        %1500 = vst [vmem:[#allocation2 + $0x50] sm:$0xff] %v1484
        %1501 = vst [vmem:[#allocation2 + $0x58] sm:$0xff] %v1485
        %1502 = vst [vmem:[#allocation2 + $0x60] sm:$0xff] %v1486
        %1503 = vst [vmem:[#allocation2 + $0x68] sm:$0xff] %v1487
        %1504 = vst [vmem:[#allocation2 + $0x70] sm:$0xff] %v1488
        %1505 = vst [vmem:[#allocation2 + $0x78] sm:$0xff] %v1489
        %p1506 = scmp.eq.s32.totalorder %s28, 155
        // Predicated region
        $region65: #{_lambda_.2} parent=55 // pred_check
          %p1507 = pneg %p1506
        $region66: #{_lambda_.2} parent=55 // pred_check_branch
          %1509 = sbr.rel (%p1507) target = $region68
        $region67: #{_lambda_.2} parent=55 // pred_region
          %v1510 = vld [vmem:[%s394] sm:$0xff]
          %v1511 = vld [vmem:[%s394 + $0x8] sm:$0xff]
          %v1512 = vld [vmem:[%s394 + $0x10] sm:$0xff]
          %v1513 = vld [vmem:[%s394 + $0x18] sm:$0xff]
          %v1514 = vld [vmem:[%s394 + $0x20] sm:$0xff]
          %v1515 = vld [vmem:[%s394 + $0x28] sm:$0xff]
          %v1516 = vld [vmem:[%s394 + $0x30] sm:$0xff]
          %v1517 = vld [vmem:[%s394 + $0x38] sm:$0xff]
          %v1518 = vld [vmem:[%s394 + $0x40] sm:$0xff]
          %v1519 = vld [vmem:[%s394 + $0x48] sm:$0xff]
          %v1520 = vld [vmem:[%s394 + $0x50] sm:$0xff]
          %v1521 = vld [vmem:[%s394 + $0x58] sm:$0xff]
          %v1522 = vld [vmem:[%s394 + $0x60] sm:$0xff]
          %v1523 = vld [vmem:[%s394 + $0x68] sm:$0xff]
          %v1524 = vld [vmem:[%s394 + $0x70] sm:$0xff]
          %v1525 = vld [vmem:[%s394 + $0x78] sm:$0xff]
          %v1526 = vld [vmem:[#allocation2] sm:$0xff]
          %v1527 = vld [vmem:[#allocation2 + $0x8] sm:$0xff]
          %v1528 = vld [vmem:[#allocation2 + $0x10] sm:$0xff]
          %v1529 = vld [vmem:[#allocation2 + $0x18] sm:$0xff]
          %v1530 = vld [vmem:[#allocation2 + $0x20] sm:$0xff]
          %v1531 = vld [vmem:[#allocation2 + $0x28] sm:$0xff]
          %v1532 = vld [vmem:[#allocation2 + $0x30] sm:$0xff]
          %v1533 = vld [vmem:[#allocation2 + $0x38] sm:$0xff]
          %v1534 = vld [vmem:[#allocation2 + $0x40] sm:$0xff]
          %v1535 = vld [vmem:[#allocation2 + $0x48] sm:$0xff]
          %v1536 = vld [vmem:[#allocation2 + $0x50] sm:$0xff]
          %v1537 = vld [vmem:[#allocation2 + $0x58] sm:$0xff]
          %v1538 = vld [vmem:[#allocation2 + $0x60] sm:$0xff]
          %v1539 = vld [vmem:[#allocation2 + $0x68] sm:$0xff]
          %v1540 = vld [vmem:[#allocation2 + $0x70] sm:$0xff]
          %v1541 = vld [vmem:[#allocation2 + $0x78] sm:$0xff]
          %v1542 = vpack.c.bf16 %v1511, %v1510
          %v1543 = vpack.c.bf16 %v1527, %v1526
          %v1544 = vpack.c.bf16 %v1513, %v1512
          %v1545 = vpack.c.bf16 %v1529, %v1528
          %v1546 = vpack.c.bf16 %v1515, %v1514
          %v1547 = vpack.c.bf16 %v1531, %v1530
          %v1548 = vpack.c.bf16 %v1517, %v1516
          %v1549 = vpack.c.bf16 %v1533, %v1532
          %v1550 = vpack.c.bf16 %v1519, %v1518
          %v1551 = vpack.c.bf16 %v1535, %v1534
          %v1552 = vpack.c.bf16 %v1521, %v1520
          %v1553 = vpack.c.bf16 %v1537, %v1536
          %v1554 = vpack.c.bf16 %v1523, %v1522
          %v1555 = vpack.c.bf16 %v1539, %v1538
          %v1556 = vpack.c.bf16 %v1525, %v1524
          %v1557 = vpack.c.bf16 %v1541, %v1540
          %v1558 = vld [vmem:[%s5] sm:$0xf]
          %v1559 = vld [vmem:[%s5 + $0x4] sm:$0xf]
          %v1560 = vld [vmem:[%s5 + $0x8] sm:$0xf]
          %v1561 = vld [vmem:[%s5 + $0xc] sm:$0xf]
          %v1562 = vld [vmem:[%s5 + $0x10] sm:$0xf]
          %v1563 = vld [vmem:[%s5 + $0x14] sm:$0xf]
          %v1564 = vld [vmem:[%s5 + $0x18] sm:$0xf]
          %v1565 = vld [vmem:[%s5 + $0x1c] sm:$0xf]
          %v1566 = vld [vmem:[%s5 + $0x20] sm:$0xf]
          %v1567 = vld [vmem:[%s5 + $0x24] sm:$0xf]
          %v1568 = vld [vmem:[%s5 + $0x28] sm:$0xf]
          %v1569 = vld [vmem:[%s5 + $0x2c] sm:$0xf]
          %v1570 = vld [vmem:[%s5 + $0x30] sm:$0xf]
          %v1571 = vld [vmem:[%s5 + $0x34] sm:$0xf]
          %v1572 = vld [vmem:[%s5 + $0x38] sm:$0xf]
          %v1573 = vld [vmem:[%s5 + $0x3c] sm:$0xf]
          %v1574 = vld [vmem:[%s5 + $0x40] sm:$0xf]
          %v1575 = vld [vmem:[%s5 + $0x44] sm:$0xf]
          %v1576 = vld [vmem:[%s5 + $0x48] sm:$0xf]
          %v1577 = vld [vmem:[%s5 + $0x4c] sm:$0xf]
          %v1578 = vld [vmem:[%s5 + $0x50] sm:$0xf]
          %v1579 = vld [vmem:[%s5 + $0x54] sm:$0xf]
          %v1580 = vld [vmem:[%s5 + $0x58] sm:$0xf]
          %v1581 = vld [vmem:[%s5 + $0x5c] sm:$0xf]
          %v1582 = vld [vmem:[%s5 + $0x60] sm:$0xf]
          %v1583 = vld [vmem:[%s5 + $0x64] sm:$0xf]
          %v1584 = vld [vmem:[%s5 + $0x68] sm:$0xf]
          %v1585 = vld [vmem:[%s5 + $0x6c] sm:$0xf]
          %v1586 = vld [vmem:[%s5 + $0x70] sm:$0xf]
          %v1587 = vld [vmem:[%s5 + $0x74] sm:$0xf]
          %v1588 = vld [vmem:[%s5 + $0x78] sm:$0xf]
          %v1589 = vld [vmem:[%s5 + $0x7c] sm:$0xf]
          %v1590 = vld [vmem:[%s6] sm:$0x1]
          %v1592 = vlaneseq
          %v1593 = vshrl.u32 %v1592, 7
          %v1594 = vsub.s32 0, %v1593
          %v1595 = vrot.slane %v1590, %v1594
          %v1629 = vunpack.c.l.b16 %v1558
          %v1630 = vunpack.c.l.b16 %v1559
          %v1631 = vunpack.c.l.b16 %v1560
          %v1632 = vunpack.c.l.b16 %v1561
          %v1633 = vunpack.c.l.b16 %v1562
          %v1634 = vunpack.c.l.b16 %v1563
          %v1635 = vunpack.c.l.b16 %v1564
          %v1636 = vunpack.c.l.b16 %v1565
          %v1637 = vunpack.c.l.b16 %v1566
          %v1638 = vunpack.c.l.b16 %v1567
          %v1639 = vunpack.c.l.b16 %v1568
          %v1640 = vunpack.c.l.b16 %v1569
          %v1641 = vunpack.c.l.b16 %v1570
          %v1642 = vunpack.c.l.b16 %v1571
          %v1643 = vunpack.c.l.b16 %v1572
          %v1644 = vunpack.c.l.b16 %v1573
          %v1645 = vunpack.c.l.b16 %v1574
          %v1646 = vunpack.c.l.b16 %v1575
          %v1647 = vunpack.c.l.b16 %v1576
          %v1648 = vunpack.c.l.b16 %v1577
          %v1649 = vunpack.c.l.b16 %v1578
          %v1650 = vunpack.c.l.b16 %v1579
          %v1651 = vunpack.c.l.b16 %v1580
          %v1652 = vunpack.c.l.b16 %v1581
          %v1653 = vunpack.c.l.b16 %v1582
          %v1654 = vunpack.c.l.b16 %v1583
          %v1655 = vunpack.c.l.b16 %v1584
          %v1656 = vunpack.c.l.b16 %v1585
          %v1657 = vunpack.c.l.b16 %v1586
          %v1658 = vunpack.c.l.b16 %v1587
          %v1659 = vunpack.c.l.b16 %v1588
          %v1660 = vunpack.c.l.b16 %v1589
          %v1661 = vpack.c.b16 %v1630, %v1629
          %v1662 = vpack.c.b16 %v1632, %v1631
          %v1663 = vpack.c.b16 %v1634, %v1633
          %v1664 = vpack.c.b16 %v1636, %v1635
          %v1665 = vpack.c.b16 %v1638, %v1637
          %v1666 = vpack.c.b16 %v1640, %v1639
          %v1667 = vpack.c.b16 %v1642, %v1641
          %v1668 = vpack.c.b16 %v1644, %v1643
          %v1669 = vpack.c.b16 %v1646, %v1645
          %v1670 = vpack.c.b16 %v1648, %v1647
          %v1671 = vpack.c.b16 %v1650, %v1649
          %v1672 = vpack.c.b16 %v1652, %v1651
          %v1673 = vpack.c.b16 %v1654, %v1653
          %v1674 = vpack.c.b16 %v1656, %v1655
          %v1675 = vpack.c.b16 %v1658, %v1657
          %v1676 = vpack.c.b16 %v1660, %v1659
          %1693 = vmatprep.subr.bf16.mxu0 0
          %1694 = vmatpush1.bf16.msra.mxu0 %v1661
          %1695 = vmatprep.subr.bf16.mxu0 0
          %1696 = vmatpush1.bf16.msra.mxu0 %v1662
          %1697 = vmatprep.subr.bf16.mxu0 0
          %1698 = vmatpush1.bf16.msra.mxu0 %v1663
          %1699 = vmatprep.subr.bf16.mxu0 0
          %1700 = vmatpush1.bf16.msra.mxu0 %v1664
          %1701 = vmatprep.subr.bf16.mxu0 0
          %1702 = vmatpush1.bf16.msra.mxu0 %v1665
          %1703 = vmatprep.subr.bf16.mxu0 0
          %1704 = vmatpush1.bf16.msra.mxu0 %v1666
          %1705 = vmatprep.subr.bf16.mxu0 0
          %1706 = vmatpush1.bf16.msra.mxu0 %v1667
          %1707 = vmatprep.subr.bf16.mxu0 0
          %1708 = vmatpush1.bf16.msra.mxu0 %v1668
          %1709 = vmatprep.subr.bf16.mxu0 0
          %1710 = vmatpush1.bf16.msra.mxu0 %v1669
          %1711 = vmatprep.subr.bf16.mxu0 0
          %1712 = vmatpush1.bf16.msra.mxu0 %v1670
          %1713 = vmatprep.subr.bf16.mxu0 0
          %1714 = vmatpush1.bf16.msra.mxu0 %v1671
          %1715 = vmatprep.subr.bf16.mxu0 0
          %1716 = vmatpush1.bf16.msra.mxu0 %v1672
          %1717 = vmatprep.subr.bf16.mxu0 0
          %1718 = vmatpush1.bf16.msra.mxu0 %v1673
          %1719 = vmatprep.subr.bf16.mxu0 0
          %1720 = vmatpush1.bf16.msra.mxu0 %v1674
          %1721 = vmatprep.subr.bf16.mxu0 0
          %1722 = vmatpush1.bf16.msra.mxu0 %v1675
          %1723 = vmatprep.subr.bf16.mxu0 0
          %1724 = vmatpush1.bf16.msra.mxu0 %v1676
          %1725 = vmatprep.mubr.bf16.mxu0 %v1543
          %1726 = vmatmul.mubr.bf16.gmra.mrb[0].mxu0 %v1542
          %v1727 = vpop.f32.mrb[0].mxu0
          %v1728 = vadd.f32 %v1595, %v1727
          %v1729 = vpop.f32.mrb[0].mxu0
          %v1730 = vpop.f32.mrb[0].mxu0
          %v1731 = vadd.f32 %v1595, %v1730
          %v1732 = vpop.f32.mrb[0].mxu0
          %1733 = vmatprep.mubr.bf16.mxu0 %v1545
          %1734 = vmatmul.mubr.bf16.gmra.mrb[0].mxu0 %v1544
          %v1735 = vpop.f32.mrb[0].mxu0
          %v1736 = vadd.f32 %v1595, %v1735
          %v1737 = vpop.f32.mrb[0].mxu0
          %v1738 = vpop.f32.mrb[0].mxu0
          %v1739 = vadd.f32 %v1595, %v1738
          %v1740 = vpop.f32.mrb[0].mxu0
          %1741 = vmatprep.mubr.bf16.mxu0 %v1547
          %1742 = vmatmul.mubr.bf16.gmra.mrb[0].mxu0 %v1546
          %v1743 = vpop.f32.mrb[0].mxu0
          %v1744 = vadd.f32 %v1595, %v1743
          %v1745 = vpop.f32.mrb[0].mxu0
          %v1746 = vpop.f32.mrb[0].mxu0
          %v1747 = vadd.f32 %v1595, %v1746
          %v1748 = vpop.f32.mrb[0].mxu0
          %1749 = vmatprep.mubr.bf16.mxu0 %v1549
          %1750 = vmatmul.mubr.bf16.gmra.mrb[0].mxu0 %v1548
          %v1751 = vpop.f32.mrb[0].mxu0
          %v1752 = vadd.f32 %v1595, %v1751
          %v1753 = vpop.f32.mrb[0].mxu0
          %v1754 = vpop.f32.mrb[0].mxu0
          %v1755 = vadd.f32 %v1595, %v1754
          %v1756 = vpop.f32.mrb[0].mxu0
          %1757 = vmatprep.mubr.bf16.mxu0 %v1551
          %1758 = vmatmul.mubr.bf16.gmra.mrb[0].mxu0 %v1550
          %v1759 = vpop.f32.mrb[0].mxu0
          %v1760 = vadd.f32 %v1595, %v1759
          %v1761 = vpop.f32.mrb[0].mxu0
          %v1762 = vpop.f32.mrb[0].mxu0
          %v1763 = vadd.f32 %v1595, %v1762
          %v1764 = vpop.f32.mrb[0].mxu0
          %1765 = vmatprep.mubr.bf16.mxu0 %v1553
          %1766 = vmatmul.mubr.bf16.gmra.mrb[0].mxu0 %v1552
          %v1767 = vpop.f32.mrb[0].mxu0
          %v1768 = vadd.f32 %v1595, %v1767
          %v1769 = vpop.f32.mrb[0].mxu0
          %v1770 = vpop.f32.mrb[0].mxu0
          %v1771 = vadd.f32 %v1595, %v1770
          %v1772 = vpop.f32.mrb[0].mxu0
          %1773 = vmatprep.mubr.bf16.mxu0 %v1555
          %1774 = vmatmul.mubr.bf16.gmra.mrb[0].mxu0 %v1554
          %v1775 = vpop.f32.mrb[0].mxu0
          %v1776 = vadd.f32 %v1595, %v1775
          %v1777 = vpop.f32.mrb[0].mxu0
          %v1778 = vpop.f32.mrb[0].mxu0
          %v1779 = vadd.f32 %v1595, %v1778
          %v1780 = vpop.f32.mrb[0].mxu0
          %1781 = vmatprep.mubr.bf16.mxu0 %v1557
          %1782 = vmatmul.mubr.bf16.gmra.mrb[0].mxu0 %v1556
          %v1783 = vpop.f32.mrb[0].mxu0
          %v1784 = vadd.f32 %v1595, %v1783
          %v1785 = vpop.f32.mrb[0].mxu0
          %v1786 = vpop.f32.mrb[0].mxu0
          %v1787 = vadd.f32 %v1595, %v1786
          %v1788 = vpop.f32.mrb[0].mxu0
          %1789 = vdwg.mxu0
          %v1790 = vxor.u32 %v1728, 2147483648
          %v1791 = vxor.u32 %v1731, 2147483648
          %v1792 = vxor.u32 %v1736, 2147483648
          %v1793 = vxor.u32 %v1739, 2147483648
          %v1794 = vxor.u32 %v1744, 2147483648
          %v1795 = vxor.u32 %v1747, 2147483648
          %v1796 = vxor.u32 %v1752, 2147483648
          %v1797 = vxor.u32 %v1755, 2147483648
          %v1798 = vxor.u32 %v1760, 2147483648
          %v1799 = vxor.u32 %v1763, 2147483648
          %v1800 = vxor.u32 %v1768, 2147483648
          %v1801 = vxor.u32 %v1771, 2147483648
          %v1802 = vxor.u32 %v1776, 2147483648
          %v1803 = vxor.u32 %v1779, 2147483648
          %v1804 = vxor.u32 %v1784, 2147483648
          %v1805 = vxor.u32 %v1787, 2147483648
          %v1806 = vmul.f32 %v1790, 1.442695
          %v1807 = vpow.pop %v1806
          %v1808 = vmul.f32 %v1791, 1.442695
          %v1809 = vpow.pop %v1808
          %v1810 = vmul.f32 %v1792, 1.442695
          %v1811 = vpow.pop %v1810
          %v1812 = vmul.f32 %v1793, 1.442695
          %v1813 = vpow.pop %v1812
          %v1814 = vmul.f32 %v1794, 1.442695
          %v1815 = vpow.pop %v1814
          %v1816 = vmul.f32 %v1795, 1.442695
          %v1817 = vpow.pop %v1816
          %v1818 = vmul.f32 %v1796, 1.442695
          %v1819 = vpow.pop %v1818
          %v1820 = vmul.f32 %v1797, 1.442695
          %v1821 = vpow.pop %v1820
          %v1822 = vmul.f32 %v1798, 1.442695
          %v1823 = vpow.pop %v1822
          %v1824 = vmul.f32 %v1799, 1.442695
          %v1825 = vpow.pop %v1824
          %v1826 = vmul.f32 %v1800, 1.442695
          %v1827 = vpow.pop %v1826
          %v1828 = vmul.f32 %v1801, 1.442695
          %v1829 = vpow.pop %v1828
          %v1830 = vmul.f32 %v1802, 1.442695
          %v1831 = vpow.pop %v1830
          %v1832 = vmul.f32 %v1803, 1.442695
          %v1833 = vpow.pop %v1832
          %v1834 = vmul.f32 %v1804, 1.442695
          %v1835 = vpow.pop %v1834
          %v1836 = vmul.f32 %v1805, 1.442695
          %v1837 = vpow.pop %v1836
          %v1838 = vadd.f32 %v1807, 1.0
          %v1839 = vadd.f32 %v1809, 1.0
          %v1840 = vadd.f32 %v1811, 1.0
          %v1841 = vadd.f32 %v1813, 1.0
          %v1842 = vadd.f32 %v1815, 1.0
          %v1843 = vadd.f32 %v1817, 1.0
          %v1844 = vadd.f32 %v1819, 1.0
          %v1845 = vadd.f32 %v1821, 1.0
          %v1846 = vadd.f32 %v1823, 1.0
          %v1847 = vadd.f32 %v1825, 1.0
          %v1848 = vadd.f32 %v1827, 1.0
          %v1849 = vadd.f32 %v1829, 1.0
          %v1850 = vadd.f32 %v1831, 1.0
          %v1851 = vadd.f32 %v1833, 1.0
          %v1852 = vadd.f32 %v1835, 1.0
          %v1853 = vadd.f32 %v1837, 1.0
          %v1854 = vrcp.pop %v1838
          %v1855 = vmul.f32 1.0, %v1854
          %v1856 = vrcp.pop %v1839
          %v1857 = vmul.f32 1.0, %v1856
          %v1858 = vrcp.pop %v1840
          %v1859 = vmul.f32 1.0, %v1858
          %v1860 = vrcp.pop %v1841
          %v1861 = vmul.f32 1.0, %v1860
          %v1862 = vrcp.pop %v1842
          %v1863 = vmul.f32 1.0, %v1862
          %v1864 = vrcp.pop %v1843
          %v1865 = vmul.f32 1.0, %v1864
          %v1866 = vrcp.pop %v1844
          %v1867 = vmul.f32 1.0, %v1866
          %v1868 = vrcp.pop %v1845
          %v1869 = vmul.f32 1.0, %v1868
          %v1870 = vrcp.pop %v1846
          %v1871 = vmul.f32 1.0, %v1870
          %v1872 = vrcp.pop %v1847
          %v1873 = vmul.f32 1.0, %v1872
          %v1874 = vrcp.pop %v1848
          %v1875 = vmul.f32 1.0, %v1874
          %v1876 = vrcp.pop %v1849
          %v1877 = vmul.f32 1.0, %v1876
          %v1878 = vrcp.pop %v1850
          %v1879 = vmul.f32 1.0, %v1878
          %v1880 = vrcp.pop %v1851
          %v1881 = vmul.f32 1.0, %v1880
          %v1882 = vrcp.pop %v1852
          %v1883 = vmul.f32 1.0, %v1882
          %v1884 = vrcp.pop %v1853
          %v1885 = vmul.f32 1.0, %v1884
          %v1886 = vmul.f32 %v1728, %v1855
          %v1887 = vmul.f32 %v1731, %v1857
          %v1888 = vmul.f32 %v1736, %v1859
          %v1889 = vmul.f32 %v1739, %v1861
          %v1890 = vmul.f32 %v1744, %v1863
          %v1891 = vmul.f32 %v1747, %v1865
          %v1892 = vmul.f32 %v1752, %v1867
          %v1893 = vmul.f32 %v1755, %v1869
          %v1894 = vmul.f32 %v1760, %v1871
          %v1895 = vmul.f32 %v1763, %v1873
          %v1896 = vmul.f32 %v1768, %v1875
          %v1897 = vmul.f32 %v1771, %v1877
          %v1898 = vmul.f32 %v1776, %v1879
          %v1899 = vmul.f32 %v1779, %v1881
          %v1900 = vmul.f32 %v1784, %v1883
          %v1901 = vmul.f32 %v1787, %v1885
          %v1902 = vpack.c.bf16 %v1887, %v1886
          %v1903 = vpack.c.bf16 %v1889, %v1888
          %v1904 = vpack.c.bf16 %v1891, %v1890
          %v1905 = vpack.c.bf16 %v1893, %v1892
          %v1906 = vpack.c.bf16 %v1895, %v1894
          %v1907 = vpack.c.bf16 %v1897, %v1896
          %v1908 = vpack.c.bf16 %v1899, %v1898
          %v1909 = vpack.c.bf16 %v1901, %v1900
          %v1910 = vld [vmem:[%s7] sm:$0xf]
          %v1911 = vld [vmem:[%s7 + $0x4] sm:$0xf]
          %v1912 = vld [vmem:[%s7 + $0x8] sm:$0xf]
          %v1913 = vld [vmem:[%s7 + $0xc] sm:$0xf]
          %v1914 = vld [vmem:[%s7 + $0x10] sm:$0xf]
          %v1915 = vld [vmem:[%s7 + $0x14] sm:$0xf]
          %v1916 = vld [vmem:[%s7 + $0x18] sm:$0xf]
          %v1917 = vld [vmem:[%s7 + $0x1c] sm:$0xf]
          %v1918 = vld [vmem:[%s7 + $0x20] sm:$0xf]
          %v1919 = vld [vmem:[%s7 + $0x24] sm:$0xf]
          %v1920 = vld [vmem:[%s7 + $0x28] sm:$0xf]
          %v1921 = vld [vmem:[%s7 + $0x2c] sm:$0xf]
          %v1922 = vld [vmem:[%s7 + $0x30] sm:$0xf]
          %v1923 = vld [vmem:[%s7 + $0x34] sm:$0xf]
          %v1924 = vld [vmem:[%s7 + $0x38] sm:$0xf]
          %v1925 = vld [vmem:[%s7 + $0x3c] sm:$0xf]
          %v1926 = vld [vmem:[%s8] sm:$0x1]
          %v1928 = vlaneseq
          %v1929 = vshrl.u32 %v1928, 7
          %v1930 = vsub.s32 0, %v1929
          %v1931 = vrot.slane %v1926, %v1930
          %v1949 = vunpack.c.l.b16 %v1910
          %v1950 = vunpack.c.l.b16 %v1911
          %v1951 = vunpack.c.l.b16 %v1912
          %v1952 = vunpack.c.l.b16 %v1913
          %v1953 = vunpack.c.l.b16 %v1914
          %v1954 = vunpack.c.l.b16 %v1915
          %v1955 = vunpack.c.l.b16 %v1916
          %v1956 = vunpack.c.l.b16 %v1917
          %v1957 = vunpack.c.l.b16 %v1918
          %v1958 = vunpack.c.l.b16 %v1919
          %v1959 = vunpack.c.l.b16 %v1920
          %v1960 = vunpack.c.l.b16 %v1921
          %v1961 = vunpack.c.l.b16 %v1922
          %v1962 = vunpack.c.l.b16 %v1923
          %v1963 = vunpack.c.l.b16 %v1924
          %v1964 = vunpack.c.l.b16 %v1925
          %v1965 = vpack.c.b16 %v1950, %v1949
          %v1966 = vpack.c.b16 %v1952, %v1951
          %v1967 = vpack.c.b16 %v1954, %v1953
          %v1968 = vpack.c.b16 %v1956, %v1955
          %v1969 = vpack.c.b16 %v1958, %v1957
          %v1970 = vpack.c.b16 %v1960, %v1959
          %v1971 = vpack.c.b16 %v1962, %v1961
          %v1972 = vpack.c.b16 %v1964, %v1963
          %1981 = vmatprep.subr.bf16.mxu0 0
          %1982 = vmatpush1.bf16.msra.mxu0 %v1965
          %1983 = vmatprep.subr.bf16.mxu0 0
          %1984 = vmatpush1.bf16.msra.mxu0 %v1966
          %1985 = vmatprep.subr.bf16.mxu0 0
          %1986 = vmatpush1.bf16.msra.mxu0 %v1967
          %1987 = vmatprep.subr.bf16.mxu0 0
          %1988 = vmatpush1.bf16.msra.mxu0 %v1968
          %1989 = vmatprep.subr.bf16.mxu0 0
          %1990 = vmatpush1.bf16.msra.mxu0 %v1969
          %1991 = vmatprep.subr.bf16.mxu0 0
          %1992 = vmatpush1.bf16.msra.mxu0 %v1970
          %1993 = vmatprep.subr.bf16.mxu0 0
          %1994 = vmatpush1.bf16.msra.mxu0 %v1971
          %1995 = vmatprep.subr.bf16.mxu0 0
          %1996 = vmatpush1.bf16.msra.mxu0 %v1972
          %1997 = vmatprep.subr.bf16.mxu0 0
          %1998 = vmatpush1.bf16.msra.mxu0 0
          %1999 = vmatprep.subr.bf16.mxu0 0
          %2000 = vmatpush1.bf16.msra.mxu0 0
          %2001 = vmatprep.subr.bf16.mxu0 0
          %2002 = vmatpush1.bf16.msra.mxu0 0
          %2003 = vmatprep.subr.bf16.mxu0 0
          %2004 = vmatpush1.bf16.msra.mxu0 0
          %2005 = vmatprep.subr.bf16.mxu0 0
          %2006 = vmatpush1.bf16.msra.mxu0 0
          %2007 = vmatprep.subr.bf16.mxu0 0
          %2008 = vmatpush1.bf16.msra.mxu0 0
          %2009 = vmatprep.subr.bf16.mxu0 0
          %2010 = vmatpush1.bf16.msra.mxu0 0
          %2011 = vmatprep.subr.bf16.mxu0 0
          %2012 = vmatpush1.bf16.msra.mxu0 0
          %2013 = vmatprep.mubr.bf16.mxu0 0
          %2014 = vmatmul.mubr.bf16.gmra.mrb[0].mxu0 %v1902
          %v2015 = vpop.f32.mrb[0].mxu0
          %v2016 = vadd.f32 %v1931, %v2015
          %v2017 = vpop.f32.mrb[0].mxu0
          %v2018 = vpop.f32.mrb[0].mxu0
          %v2019 = vadd.f32 %v1931, %v2018
          %v2020 = vpop.f32.mrb[0].mxu0
          %2021 = vmatprep.mubr.bf16.mxu0 0
          %2022 = vmatmul.mubr.bf16.gmra.mrb[0].mxu0 %v1903
          %v2023 = vpop.f32.mrb[0].mxu0
          %v2024 = vadd.f32 %v1931, %v2023
          %v2025 = vpop.f32.mrb[0].mxu0
          %v2026 = vpop.f32.mrb[0].mxu0
          %v2027 = vadd.f32 %v1931, %v2026
          %v2028 = vpop.f32.mrb[0].mxu0
          %2029 = vmatprep.mubr.bf16.mxu0 0
          %2030 = vmatmul.mubr.bf16.gmra.mrb[0].mxu0 %v1904
          %v2031 = vpop.f32.mrb[0].mxu0
          %v2032 = vadd.f32 %v1931, %v2031
          %v2033 = vpop.f32.mrb[0].mxu0
          %v2034 = vpop.f32.mrb[0].mxu0
          %v2035 = vadd.f32 %v1931, %v2034
          %v2036 = vpop.f32.mrb[0].mxu0
          %2037 = vmatprep.mubr.bf16.mxu0 0
          %2038 = vmatmul.mubr.bf16.gmra.mrb[0].mxu0 %v1905
          %v2039 = vpop.f32.mrb[0].mxu0
          %v2040 = vadd.f32 %v1931, %v2039
          %v2041 = vpop.f32.mrb[0].mxu0
          %v2042 = vpop.f32.mrb[0].mxu0
          %v2043 = vadd.f32 %v1931, %v2042
          %v2044 = vpop.f32.mrb[0].mxu0
          %2045 = vmatprep.mubr.bf16.mxu0 0
          %2046 = vmatmul.mubr.bf16.gmra.mrb[0].mxu0 %v1906
          %v2047 = vpop.f32.mrb[0].mxu0
          %v2048 = vadd.f32 %v1931, %v2047
          %v2049 = vpop.f32.mrb[0].mxu0
          %v2050 = vpop.f32.mrb[0].mxu0
          %v2051 = vadd.f32 %v1931, %v2050
          %v2052 = vpop.f32.mrb[0].mxu0
          %2053 = vmatprep.mubr.bf16.mxu0 0
          %2054 = vmatmul.mubr.bf16.gmra.mrb[0].mxu0 %v1907
          %v2055 = vpop.f32.mrb[0].mxu0
          %v2056 = vadd.f32 %v1931, %v2055
          %v2057 = vpop.f32.mrb[0].mxu0
          %v2058 = vpop.f32.mrb[0].mxu0
          %v2059 = vadd.f32 %v1931, %v2058
          %v2060 = vpop.f32.mrb[0].mxu0
          %2061 = vmatprep.mubr.bf16.mxu0 0
          %2062 = vmatmul.mubr.bf16.gmra.mrb[0].mxu0 %v1908
          %v2063 = vpop.f32.mrb[0].mxu0
          %v2064 = vadd.f32 %v1931, %v2063
          %v2065 = vpop.f32.mrb[0].mxu0
          %v2066 = vpop.f32.mrb[0].mxu0
          %v2067 = vadd.f32 %v1931, %v2066
          %v2068 = vpop.f32.mrb[0].mxu0
          %2069 = vmatprep.mubr.bf16.mxu0 0
          %2070 = vmatmul.mubr.bf16.gmra.mrb[0].mxu0 %v1909
          %v2071 = vpop.f32.mrb[0].mxu0
          %v2072 = vadd.f32 %v1931, %v2071
          %v2073 = vpop.f32.mrb[0].mxu0
          %v2074 = vpop.f32.mrb[0].mxu0
          %v2075 = vadd.f32 %v1931, %v2074
          %v2076 = vpop.f32.mrb[0].mxu0
          %2077 = vdwg.mxu0
          %v2078 = vadd.f32 %v1510, %v2016
          %v2079 = vadd.f32 %v1511, %v2019
          %v2080 = vadd.f32 %v1512, %v2024
          %v2081 = vadd.f32 %v1513, %v2027
          %v2082 = vadd.f32 %v1514, %v2032
          %v2083 = vadd.f32 %v1515, %v2035
          %v2084 = vadd.f32 %v1516, %v2040
          %v2085 = vadd.f32 %v1517, %v2043
          %v2086 = vadd.f32 %v1518, %v2048
          %v2087 = vadd.f32 %v1519, %v2051
          %v2088 = vadd.f32 %v1520, %v2056
          %v2089 = vadd.f32 %v1521, %v2059
          %v2090 = vadd.f32 %v1522, %v2064
          %v2091 = vadd.f32 %v1523, %v2067
          %v2092 = vadd.f32 %v1524, %v2072
          %v2093 = vadd.f32 %v1525, %v2075
          %2094 = vst [vmem:[%s406] sm:$0xff] %v2078
          %2095 = vst [vmem:[%s406 + $0x8] sm:$0xff] %v2079
          %2096 = vst [vmem:[%s406 + $0x10] sm:$0xff] %v2080
          %2097 = vst [vmem:[%s406 + $0x18] sm:$0xff] %v2081
          %2098 = vst [vmem:[%s406 + $0x20] sm:$0xff] %v2082
          %2099 = vst [vmem:[%s406 + $0x28] sm:$0xff] %v2083
          %2100 = vst [vmem:[%s406 + $0x30] sm:$0xff] %v2084
          %2101 = vst [vmem:[%s406 + $0x38] sm:$0xff] %v2085
          %2102 = vst [vmem:[%s406 + $0x40] sm:$0xff] %v2086
          %2103 = vst [vmem:[%s406 + $0x48] sm:$0xff] %v2087
          %2104 = vst [vmem:[%s406 + $0x50] sm:$0xff] %v2088
          %2105 = vst [vmem:[%s406 + $0x58] sm:$0xff] %v2089
          %2106 = vst [vmem:[%s406 + $0x60] sm:$0xff] %v2090
          %2107 = vst [vmem:[%s406 + $0x68] sm:$0xff] %v2091
          %2108 = vst [vmem:[%s406 + $0x70] sm:$0xff] %v2092
          %2109 = vst [vmem:[%s406 + $0x78] sm:$0xff] %v2093
        $region68: #{_lambda_.2} parent=55 // pred_fallthru
          _
        %s2110 = smul.u32 16, %s27
        %p2111 = scmp.lt.s32.totalorder %s2110, 31
        %s2112 = scalar_select %p2111, %s2110, 31
        %s2113 = smul.addr %s2112, 8
        %s2114 = scalar_lea.vmem %s9, %s2113
        // Predicated region
        $region69: #{_lambda_.2} parent=55 // pred_check
          %p2115 = pneg %p257
        $region70: #{_lambda_.2} parent=55 // pred_check_branch
          %2117 = sbr.rel (%p2115) target = $region72
        $region71: #{_lambda_.2} parent=55 // pred_region
          %s2118 = smul.u32 16, %s27
        $region72: #{_lambda_.2} parent=55 // pred_fallthru
          _
      $region56: #{_lambda_.2} parent=5 // pred_fallthru
        _
      %p2119 = scmp.le.s32.totalorder 2, %s18
      // Predicated region
      $region73: #{_lambda_.2} parent=5 // pred_check
        %p2120 = pneg %p2119
      $region74: #{_lambda_.2} parent=5 // pred_check_branch
        %2122 = sbr.rel (%p2120) target = $region76
      $region75: #{_lambda_.2} parent=5 // pred_region
        %s2123 = ssub.s32 %s18, 2
        // Predicated region
        $region77: #{_lambda_.2} parent=75 // pred_check
          %p2124 = pneg %p263
        $region78: #{_lambda_.2} parent=75 // pred_check_branch
          %2126 = sbr.rel (%p2124) target = $region80
        $region79: #{_lambda_.2} parent=75 // pred_region
          %s2127 = smul.u32 16, %s29
          %p2128 = scmp.lt.s32.totalorder %s2127, 31
          %s2129 = scalar_select %p2128, %s2127, 31
          %s2130 = smul.addr %s2129, 8
          %s2131 = scalar_lea.vmem %s9, %s2130
        $region80: #{_lambda_.2} parent=75 // pred_fallthru
          _
      $region76: #{_lambda_.2} parent=5 // pred_fallthru
        _
    $region6: #{_lambda_.2} parent=1 // loop_footer
      %s22 = sadd.s32 1, %s18
    $region7: #{_lambda_.2} parent=1 // loop_footer_branch
      %17 = sbr.rel target = $region3
    $region8: #{_lambda_.2} parent=1 // loop_exit
      _
    %2132 = vsyncpa [#allocation4], 1
    %s2133 = scalar_lea.sflag [#allocation4], 1
    %2134 = vsyncpa %s2133, 1

// kernel: _lambda_.3
$region0: #{_lambda_.3}
  #allocation0 [shape = 'u32[]', space=smem, size = 0x4, offset = 0x4, fixed_abs, tag = 'smem constant byte address 0x4 - core index']
  #allocation1 [shape = 'u32[144,128]{1,0:T(1,128)}', space=vmem, size = 0x12000, scoped, tag = 'internal scratch']
  #allocation2 [shape = 'f32[128,128]{1,0:T(8,128)}', space=vmem, size = 0x10000, scoped, tag = 'scratch operand']
  #allocation3 [shape = 'f32[128,1]{1,0:T(8,128)}', space=vmem, size = 0x10000, scoped, tag = 'scratch operand']
  #allocation4 [shape = 'f32[128,1]{1,0:T(8,128)}', space=vmem, size = 0x10000, scoped, tag = 'scratch operand']
  #allocation5 [shape = 'f32[128,128]{1,0:T(8,128)}', space=vmem, size = 0x10000, scoped, tag = 'scratch operand']
  %s0 = inlined_call_operand.vmem [shape: f32[256,128], index: 0, kind: input, shape index: {}, may-alias: {0,1}]
  %s1 = inlined_call_operand.vmem [shape: f32[256,128], index: 1, kind: input, shape index: {}, may-alias: {0,1}]
  %s2 = inlined_call_operand.vmem [shape: f32[256,128], index: 2, kind: input, shape index: {}]
  %s3 = inlined_call_operand.vmem [shape: f32[256,128], index: 3, kind: input, shape index: {}]
  %s4 = inlined_call_operand.vmem [shape: f32[256,128], index: 4, kind: input, shape index: {}]
  %s5 = inlined_call_operand.vmem [shape: bf16[128,128], index: 5, kind: input, shape index: {}]
  %s6 = inlined_call_operand.vmem [shape: f32[1,128], index: 6, kind: input, shape index: {}]
  %s7 = inlined_call_operand.vmem [shape: bf16[128,256], index: 7, kind: input, shape index: {}]
  %s8 = inlined_call_operand.vmem [shape: f32[1,256], index: 8, kind: input, shape index: {}]
  %s9 = inlined_call_operand.vmem [shape: bf16[128,128], index: 9, kind: input, shape index: {}]
  %s10 = inlined_call_operand.vmem [shape: f32[1,128], index: 10, kind: input, shape index: {}]
  %s11 = inlined_call_operand.vmem [shape: bf16[128,128], index: 11, kind: input, shape index: {}]
  %s12 = inlined_call_operand.vmem [shape: f32[1,128], index: 12, kind: input, shape index: {}]
  %s13 = inlined_call_operand.vmem [shape: f32[1,128], index: 13, kind: input, shape index: {}]
  %s14 = inlined_call_operand.vmem [shape: f32[1,128], index: 14, kind: input, shape index: {}]
  %s15 = inlined_call_operand.vmem [shape: bf16[128,128], index: 15, kind: input, shape index: {}]
  %s16 = inlined_call_operand.vmem [shape: f32[1,128], index: 16, kind: input, shape index: {}]
  %s17 = inlined_call_operand.vmem [shape: f32[256,128], index: 17, kind: output, shape index: {}]
  %s18 = sld [smem:[#allocation0]]
  $region109: #{_lambda_.3} parent=0
    _
  %s20 = ssub.s32 1, %s18
  %s21 = scalar_select 0, %s20, %s18
  loop: start=0, step=1, limit=6
  $region2: #{_lambda_.3} parent=0 // loop_pre_header
    _
  $region3: #{_lambda_.3} parent=0 // loop_header
    %s23 = sphi 0, %s27
    %p24 = scmp.ge.s32.totalorder %s23, 6
    %s30 = sphi 0, %s42
    %s31 = sphi 0, %s38
    %s32 = sphi 0, %s30
    %s33 = sphi 0, %s31
    %s34 = sphi 0, %s32
    %s35 = sphi 0, %s33
    %s45 = sphi 0, %s47
    %s48 = sphi 0, %s45
    %s49 = sphi 0, %s48
    %s65 = sphi 0, %s49
    %s71 = sphi 0, %s73
    %s74 = sphi 0, %s71
    %s75 = sphi 0, %s74
    %s91 = sphi 0, %s75
    %s97 = sphi 0, %s99
    %s100 = sphi 0, %s97
    %s101 = sphi 0, %s100
    %s117 = sphi 0, %s101
    %s123 = sphi 0, %s125
    %s126 = sphi 0, %s123
    %s127 = sphi 0, %s126
    %s143 = sphi 0, %s127
    %s149 = sphi 0, %s151
    %s152 = sphi 0, %s149
    %s153 = sphi 0, %s152
    %s169 = sphi 0, %s153
    %s173 = sphi 0, %s173
    %s175 = sphi 0, %s173
    %s176 = sphi 0, %s175
    %s190 = sphi 0, %s176
    %s194 = sphi 0, %s194
    %s196 = sphi 0, %s194
    %s197 = sphi 0, %s196
    %s211 = sphi 0, %s197
    %s215 = sphi 0, %s215
    %s217 = sphi 0, %s215
    %s218 = sphi 0, %s217
    %s232 = sphi 0, %s218
    %s236 = sphi 0, %s236
    %s238 = sphi 0, %s236
    %s239 = sphi 0, %s238
    %s253 = sphi 0, %s239
    %s257 = sphi 0, %s257
    %s259 = sphi 0, %s257
    %s260 = sphi 0, %s259
    %s274 = sphi 0, %s260
    %s278 = sphi 0, %s278
    %s280 = sphi 0, %s278
    %s281 = sphi 0, %s280
    %s295 = sphi 0, %s281
    %s299 = sphi 0, %s299
    %s301 = sphi 0, %s299
    %s302 = sphi 0, %s301
    %s316 = sphi 0, %s302
    %s320 = sphi 0, %s320
    %s322 = sphi 0, %s320
    %s323 = sphi 0, %s322
    %s337 = sphi 0, %s323
    %s341 = sphi 0, %s341
    %s343 = sphi 0, %s341
    %s344 = sphi 0, %s343
    %s358 = sphi 0, %s344
    %s362 = sphi 0, %s362
    %s364 = sphi 0, %s362
    %s365 = sphi 0, %s364
    %s379 = sphi 0, %s365
    %s383 = sphi 0, %s383
    %s385 = sphi 0, %s383
    %s386 = sphi 0, %s385
    %s400 = sphi 0, %s386
    %s404 = sphi 0, %s404
    %s406 = sphi 0, %s404
    %s407 = sphi 0, %s406
    %s421 = sphi 0, %s407
    %s427 = sphi 0, %s429
    %s430 = sphi 0, %s427
    %s431 = sphi 0, %s430
    %s447 = sphi 0, %s431
  $region4: #{_lambda_.3} parent=0 // loop_header_branch
    %26 = sbr.rel (%p24) target = $region8
  $region5: #{_lambda_.3} parent=0 // loop_body
    %s28 = ssub.s32 %s23, 1
    %s29 = ssub.s32 %s23, 2
    %s36 = sadd.s32 1, %s31
    %p37 = scmp.ge.s32.totalorder %s36, 2
    %s38 = scalar_select %p37, 0, %s36
    %s39 = sadd.s32 1, %s30
    %s40 = scalar_select %p37, %s39, %s30
    %p41 = scmp.ge.s32.totalorder %s40, 2
    %s42 = scalar_select %p41, 0, %s40
    %s43 = ssub.s32 %s30, %s42
    %p44 = scmp.eq.s32.totalorder %s43, 0
    %s46 = sadd.s32 %s45, 1
    %s47 = scalar_select %p44, %s45, %s46
    %p50 = pneg %p44
    %p51 = scmp.eq.s32.totalorder %s23, 3
    %p52 = por %p50, %p51
    %p53 = scmp.ne.s32.totalorder %s45, %s48
    %p54 = scmp.eq.s32.totalorder %s23, 0
    %p55 = por %p53, %p54
    %p56 = scmp.ne.s32.totalorder %s45, %s48
    %p57 = scmp.eq.s32.totalorder %s28, 3
    %p58 = por %p56, %p57
    %p59 = scmp.ne.s32.totalorder %s48, %s49
    %p60 = scmp.eq.s32.totalorder %s28, 0
    %p61 = por %p59, %p60
    %p62 = scmp.ne.s32.totalorder %s48, %s49
    %p63 = scmp.eq.s32.totalorder %s29, 3
    %p64 = por %p62, %p63
    %p66 = scmp.ne.s32.totalorder %s49, %s65
    %p67 = scmp.eq.s32.totalorder %s29, 0
    %p68 = por %p66, %p67
    %s69 = ssub.s32 %s31, %s38
    %p70 = scmp.eq.s32.totalorder %s69, 0
    %s72 = sadd.s32 %s71, 1
    %s73 = scalar_select %p70, %s71, %s72
    %p76 = pneg %p70
    %p77 = scmp.eq.s32.totalorder %s23, 3
    %p78 = por %p76, %p77
    %p79 = scmp.ne.s32.totalorder %s71, %s74
    %p80 = scmp.eq.s32.totalorder %s23, 0
    %p81 = por %p79, %p80
    %p82 = scmp.ne.s32.totalorder %s71, %s74
    %p83 = scmp.eq.s32.totalorder %s28, 3
    %p84 = por %p82, %p83
    %p85 = scmp.ne.s32.totalorder %s74, %s75
    %p86 = scmp.eq.s32.totalorder %s28, 0
    %p87 = por %p85, %p86
    %p88 = scmp.ne.s32.totalorder %s74, %s75
    %p89 = scmp.eq.s32.totalorder %s29, 3
    %p90 = por %p88, %p89
    %p92 = scmp.ne.s32.totalorder %s75, %s91
    %p93 = scmp.eq.s32.totalorder %s29, 0
    %p94 = por %p92, %p93
    %s95 = ssub.s32 %s30, %s42
    %p96 = scmp.eq.s32.totalorder %s95, 0
    %s98 = sadd.s32 %s97, 1
    %s99 = scalar_select %p96, %s97, %s98
    %p102 = pneg %p96
    %p103 = scmp.eq.s32.totalorder %s23, 3
    %p104 = por %p102, %p103
    %p105 = scmp.ne.s32.totalorder %s97, %s100
    %p106 = scmp.eq.s32.totalorder %s23, 0
    %p107 = por %p105, %p106
    %p108 = scmp.ne.s32.totalorder %s97, %s100
    %p109 = scmp.eq.s32.totalorder %s28, 3
    %p110 = por %p108, %p109
    %p111 = scmp.ne.s32.totalorder %s100, %s101
    %p112 = scmp.eq.s32.totalorder %s28, 0
    %p113 = por %p111, %p112
    %p114 = scmp.ne.s32.totalorder %s100, %s101
    %p115 = scmp.eq.s32.totalorder %s29, 3
    %p116 = por %p114, %p115
    %p118 = scmp.ne.s32.totalorder %s101, %s117
    %p119 = scmp.eq.s32.totalorder %s29, 0
    %p120 = por %p118, %p119
    %s121 = ssub.s32 %s31, %s38
    %p122 = scmp.eq.s32.totalorder %s121, 0
    %s124 = sadd.s32 %s123, 1
    %s125 = scalar_select %p122, %s123, %s124
    %p128 = pneg %p122
    %p129 = scmp.eq.s32.totalorder %s23, 3
    %p130 = por %p128, %p129
    %p131 = scmp.ne.s32.totalorder %s123, %s126
    %p132 = scmp.eq.s32.totalorder %s23, 0
    %p133 = por %p131, %p132
    %p134 = scmp.ne.s32.totalorder %s123, %s126
    %p135 = scmp.eq.s32.totalorder %s28, 3
    %p136 = por %p134, %p135
    %p137 = scmp.ne.s32.totalorder %s126, %s127
    %p138 = scmp.eq.s32.totalorder %s28, 0
    %p139 = por %p137, %p138
    %p140 = scmp.ne.s32.totalorder %s126, %s127
    %p141 = scmp.eq.s32.totalorder %s29, 3
    %p142 = por %p140, %p141
    %p144 = scmp.ne.s32.totalorder %s127, %s143
    %p145 = scmp.eq.s32.totalorder %s29, 0
    %p146 = por %p144, %p145
    %s147 = ssub.s32 %s30, %s42
    %p148 = scmp.eq.s32.totalorder %s147, 0
    %s150 = sadd.s32 %s149, 1
    %s151 = scalar_select %p148, %s149, %s150
    %p154 = pneg %p148
    %p155 = scmp.eq.s32.totalorder %s23, 3
    %p156 = por %p154, %p155
    %p157 = scmp.ne.s32.totalorder %s149, %s152
    %p158 = scmp.eq.s32.totalorder %s23, 0
    %p159 = por %p157, %p158
    %p160 = scmp.ne.s32.totalorder %s149, %s152
    %p161 = scmp.eq.s32.totalorder %s28, 3
    %p162 = por %p160, %p161
    %p163 = scmp.ne.s32.totalorder %s152, %s153
    %p164 = scmp.eq.s32.totalorder %s28, 0
    %p165 = por %p163, %p164
    %p166 = scmp.ne.s32.totalorder %s152, %s153
    %p167 = scmp.eq.s32.totalorder %s29, 3
    %p168 = por %p166, %p167
    %p170 = scmp.ne.s32.totalorder %s153, %s169
    %p171 = scmp.eq.s32.totalorder %s29, 0
    %p172 = por %p170, %p171
    %s174 = sadd.s32 %s173, 1
    %p177 = scmp.eq.s32.totalorder %s23, 3
    %p178 = scmp.ne.s32.totalorder %s173, %s175
    %p179 = scmp.eq.s32.totalorder %s23, 0
    %p180 = por %p178, %p179
    %p181 = scmp.ne.s32.totalorder %s173, %s175
    %p182 = scmp.eq.s32.totalorder %s28, 3
    %p183 = por %p181, %p182
    %p184 = scmp.ne.s32.totalorder %s175, %s176
    %p185 = scmp.eq.s32.totalorder %s28, 0
    %p186 = por %p184, %p185
    %p187 = scmp.ne.s32.totalorder %s175, %s176
    %p188 = scmp.eq.s32.totalorder %s29, 3
    %p189 = por %p187, %p188
    %p191 = scmp.ne.s32.totalorder %s176, %s190
    %p192 = scmp.eq.s32.totalorder %s29, 0
    %p193 = por %p191, %p192
    %s195 = sadd.s32 %s194, 1
    %p198 = scmp.eq.s32.totalorder %s23, 3
    %p199 = scmp.ne.s32.totalorder %s194, %s196
    %p200 = scmp.eq.s32.totalorder %s23, 0
    %p201 = por %p199, %p200
    %p202 = scmp.ne.s32.totalorder %s194, %s196
    %p203 = scmp.eq.s32.totalorder %s28, 3
    %p204 = por %p202, %p203
    %p205 = scmp.ne.s32.totalorder %s196, %s197
    %p206 = scmp.eq.s32.totalorder %s28, 0
    %p207 = por %p205, %p206
    %p208 = scmp.ne.s32.totalorder %s196, %s197
    %p209 = scmp.eq.s32.totalorder %s29, 3
    %p210 = por %p208, %p209
    %p212 = scmp.ne.s32.totalorder %s197, %s211
    %p213 = scmp.eq.s32.totalorder %s29, 0
    %p214 = por %p212, %p213
    %s216 = sadd.s32 %s215, 1
    %p219 = scmp.eq.s32.totalorder %s23, 3
    %p220 = scmp.ne.s32.totalorder %s215, %s217
    %p221 = scmp.eq.s32.totalorder %s23, 0
    %p222 = por %p220, %p221
    %p223 = scmp.ne.s32.totalorder %s215, %s217
    %p224 = scmp.eq.s32.totalorder %s28, 3
    %p225 = por %p223, %p224
    %p226 = scmp.ne.s32.totalorder %s217, %s218
    %p227 = scmp.eq.s32.totalorder %s28, 0
    %p228 = por %p226, %p227
    %p229 = scmp.ne.s32.totalorder %s217, %s218
    %p230 = scmp.eq.s32.totalorder %s29, 3
    %p231 = por %p229, %p230
    %p233 = scmp.ne.s32.totalorder %s218, %s232
    %p234 = scmp.eq.s32.totalorder %s29, 0
    %p235 = por %p233, %p234
    %s237 = sadd.s32 %s236, 1
    %p240 = scmp.eq.s32.totalorder %s23, 3
    %p241 = scmp.ne.s32.totalorder %s236, %s238
    %p242 = scmp.eq.s32.totalorder %s23, 0
    %p243 = por %p241, %p242
    %p244 = scmp.ne.s32.totalorder %s236, %s238
    %p245 = scmp.eq.s32.totalorder %s28, 3
    %p246 = por %p244, %p245
    %p247 = scmp.ne.s32.totalorder %s238, %s239
    %p248 = scmp.eq.s32.totalorder %s28, 0
    %p249 = por %p247, %p248
    %p250 = scmp.ne.s32.totalorder %s238, %s239
    %p251 = scmp.eq.s32.totalorder %s29, 3
    %p252 = por %p250, %p251
    %p254 = scmp.ne.s32.totalorder %s239, %s253
    %p255 = scmp.eq.s32.totalorder %s29, 0
    %p256 = por %p254, %p255
    %s258 = sadd.s32 %s257, 1
    %p261 = scmp.eq.s32.totalorder %s23, 3
    %p262 = scmp.ne.s32.totalorder %s257, %s259
    %p263 = scmp.eq.s32.totalorder %s23, 0
    %p264 = por %p262, %p263
    %p265 = scmp.ne.s32.totalorder %s257, %s259
    %p266 = scmp.eq.s32.totalorder %s28, 3
    %p267 = por %p265, %p266
    %p268 = scmp.ne.s32.totalorder %s259, %s260
    %p269 = scmp.eq.s32.totalorder %s28, 0
    %p270 = por %p268, %p269
    %p271 = scmp.ne.s32.totalorder %s259, %s260
    %p272 = scmp.eq.s32.totalorder %s29, 3
    %p273 = por %p271, %p272
    %p275 = scmp.ne.s32.totalorder %s260, %s274
    %p276 = scmp.eq.s32.totalorder %s29, 0
    %p277 = por %p275, %p276
    %s279 = sadd.s32 %s278, 1
    %p282 = scmp.eq.s32.totalorder %s23, 3
    %p283 = scmp.ne.s32.totalorder %s278, %s280
    %p284 = scmp.eq.s32.totalorder %s23, 0
    %p285 = por %p283, %p284
    %p286 = scmp.ne.s32.totalorder %s278, %s280
    %p287 = scmp.eq.s32.totalorder %s28, 3
    %p288 = por %p286, %p287
    %p289 = scmp.ne.s32.totalorder %s280, %s281
    %p290 = scmp.eq.s32.totalorder %s28, 0
    %p291 = por %p289, %p290
    %p292 = scmp.ne.s32.totalorder %s280, %s281
    %p293 = scmp.eq.s32.totalorder %s29, 3
    %p294 = por %p292, %p293
    %p296 = scmp.ne.s32.totalorder %s281, %s295
    %p297 = scmp.eq.s32.totalorder %s29, 0
    %p298 = por %p296, %p297
    %s300 = sadd.s32 %s299, 1
    %p303 = scmp.eq.s32.totalorder %s23, 3
    %p304 = scmp.ne.s32.totalorder %s299, %s301
    %p305 = scmp.eq.s32.totalorder %s23, 0
    %p306 = por %p304, %p305
    %p307 = scmp.ne.s32.totalorder %s299, %s301
    %p308 = scmp.eq.s32.totalorder %s28, 3
    %p309 = por %p307, %p308
    %p310 = scmp.ne.s32.totalorder %s301, %s302
    %p311 = scmp.eq.s32.totalorder %s28, 0
    %p312 = por %p310, %p311
    %p313 = scmp.ne.s32.totalorder %s301, %s302
    %p314 = scmp.eq.s32.totalorder %s29, 3
    %p315 = por %p313, %p314
    %p317 = scmp.ne.s32.totalorder %s302, %s316
    %p318 = scmp.eq.s32.totalorder %s29, 0
    %p319 = por %p317, %p318
    %s321 = sadd.s32 %s320, 1
    %p324 = scmp.eq.s32.totalorder %s23, 3
    %p325 = scmp.ne.s32.totalorder %s320, %s322
    %p326 = scmp.eq.s32.totalorder %s23, 0
    %p327 = por %p325, %p326
    %p328 = scmp.ne.s32.totalorder %s320, %s322
    %p329 = scmp.eq.s32.totalorder %s28, 3
    %p330 = por %p328, %p329
    %p331 = scmp.ne.s32.totalorder %s322, %s323
    %p332 = scmp.eq.s32.totalorder %s28, 0
    %p333 = por %p331, %p332
    %p334 = scmp.ne.s32.totalorder %s322, %s323
    %p335 = scmp.eq.s32.totalorder %s29, 3
    %p336 = por %p334, %p335
    %p338 = scmp.ne.s32.totalorder %s323, %s337
    %p339 = scmp.eq.s32.totalorder %s29, 0
    %p340 = por %p338, %p339
    %s342 = sadd.s32 %s341, 1
    %p345 = scmp.eq.s32.totalorder %s23, 3
    %p346 = scmp.ne.s32.totalorder %s341, %s343
    %p347 = scmp.eq.s32.totalorder %s23, 0
    %p348 = por %p346, %p347
    %p349 = scmp.ne.s32.totalorder %s341, %s343
    %p350 = scmp.eq.s32.totalorder %s28, 3
    %p351 = por %p349, %p350
    %p352 = scmp.ne.s32.totalorder %s343, %s344
    %p353 = scmp.eq.s32.totalorder %s28, 0
    %p354 = por %p352, %p353
    %p355 = scmp.ne.s32.totalorder %s343, %s344
    %p356 = scmp.eq.s32.totalorder %s29, 3
    %p357 = por %p355, %p356
    %p359 = scmp.ne.s32.totalorder %s344, %s358
    %p360 = scmp.eq.s32.totalorder %s29, 0
    %p361 = por %p359, %p360
    %s363 = sadd.s32 %s362, 1
    %p366 = scmp.eq.s32.totalorder %s23, 3
    %p367 = scmp.ne.s32.totalorder %s362, %s364
    %p368 = scmp.eq.s32.totalorder %s23, 0
    %p369 = por %p367, %p368
    %p370 = scmp.ne.s32.totalorder %s362, %s364
    %p371 = scmp.eq.s32.totalorder %s28, 3
    %p372 = por %p370, %p371
    %p373 = scmp.ne.s32.totalorder %s364, %s365
    %p374 = scmp.eq.s32.totalorder %s28, 0
    %p375 = por %p373, %p374
    %p376 = scmp.ne.s32.totalorder %s364, %s365
    %p377 = scmp.eq.s32.totalorder %s29, 3
    %p378 = por %p376, %p377
    %p380 = scmp.ne.s32.totalorder %s365, %s379
    %p381 = scmp.eq.s32.totalorder %s29, 0
    %p382 = por %p380, %p381
    %s384 = sadd.s32 %s383, 1
    %p387 = scmp.eq.s32.totalorder %s23, 3
    %p388 = scmp.ne.s32.totalorder %s383, %s385
    %p389 = scmp.eq.s32.totalorder %s23, 0
    %p390 = por %p388, %p389
    %p391 = scmp.ne.s32.totalorder %s383, %s385
    %p392 = scmp.eq.s32.totalorder %s28, 3
    %p393 = por %p391, %p392
    %p394 = scmp.ne.s32.totalorder %s385, %s386
    %p395 = scmp.eq.s32.totalorder %s28, 0
    %p396 = por %p394, %p395
    %p397 = scmp.ne.s32.totalorder %s385, %s386
    %p398 = scmp.eq.s32.totalorder %s29, 3
    %p399 = por %p397, %p398
    %p401 = scmp.ne.s32.totalorder %s386, %s400
    %p402 = scmp.eq.s32.totalorder %s29, 0
    %p403 = por %p401, %p402
    %s405 = sadd.s32 %s404, 1
    %p408 = scmp.eq.s32.totalorder %s23, 3
    %p409 = scmp.ne.s32.totalorder %s404, %s406
    %p410 = scmp.eq.s32.totalorder %s23, 0
    %p411 = por %p409, %p410
    %p412 = scmp.ne.s32.totalorder %s404, %s406
    %p413 = scmp.eq.s32.totalorder %s28, 3
    %p414 = por %p412, %p413
    %p415 = scmp.ne.s32.totalorder %s406, %s407
    %p416 = scmp.eq.s32.totalorder %s28, 0
    %p417 = por %p415, %p416
    %p418 = scmp.ne.s32.totalorder %s406, %s407
    %p419 = scmp.eq.s32.totalorder %s29, 3
    %p420 = por %p418, %p419
    %p422 = scmp.ne.s32.totalorder %s407, %s421
    %p423 = scmp.eq.s32.totalorder %s29, 0
    %p424 = por %p422, %p423
    %s425 = ssub.s32 %s30, %s42
    %p426 = scmp.eq.s32.totalorder %s425, 0
    %s428 = sadd.s32 %s427, 1
    %s429 = scalar_select %p426, %s427, %s428
    %p432 = pneg %p426
    %p433 = scmp.eq.s32.totalorder %s23, 3
    %p434 = por %p432, %p433
    %p435 = scmp.ne.s32.totalorder %s427, %s430
    %p436 = scmp.eq.s32.totalorder %s23, 0
    %p437 = por %p435, %p436
    %p438 = scmp.ne.s32.totalorder %s427, %s430
    %p439 = scmp.eq.s32.totalorder %s28, 3
    %p440 = por %p438, %p439
    %p441 = scmp.ne.s32.totalorder %s430, %s431
    %p442 = scmp.eq.s32.totalorder %s28, 0
    %p443 = por %p441, %p442
    %p444 = scmp.ne.s32.totalorder %s430, %s431
    %p445 = scmp.eq.s32.totalorder %s29, 3
    %p446 = por %p444, %p445
    %p448 = scmp.ne.s32.totalorder %s431, %s447
    %p449 = scmp.eq.s32.totalorder %s29, 0
    %p450 = por %p448, %p449
    %p451 = scmp.le.s32.totalorder 1, %s23
    %p452 = scmp.lt.s32.totalorder %s23, 5
    %p453 = pnand %p451, %p452
    %p454 = pneg %p453
    // Predicated region
    $region9: #{_lambda_.3} parent=5 // pred_check
      _
    $region10: #{_lambda_.3} parent=5 // pred_check_branch
      %456 = sbr.rel (%p453) target = $region12
    $region11: #{_lambda_.3} parent=5 // pred_region
      %s457 = ssub.s32 %s23, 1
      // Predicated region
      $region13: #{_lambda_.3} parent=11 // pred_check
        %p458 = pneg %p186
      $region14: #{_lambda_.3} parent=11 // pred_check_branch
        %460 = sbr.rel (%p458) target = $region16
      $region15: #{_lambda_.3} parent=11 // pred_region
        _
      $region16: #{_lambda_.3} parent=11 // pred_fallthru
        _
      // Predicated region
      $region17: #{_lambda_.3} parent=11 // pred_check
        %p461 = pneg %p207
      $region18: #{_lambda_.3} parent=11 // pred_check_branch
        %463 = sbr.rel (%p461) target = $region20
      $region19: #{_lambda_.3} parent=11 // pred_region
        _
      $region20: #{_lambda_.3} parent=11 // pred_fallthru
        _
      // Predicated region
      $region21: #{_lambda_.3} parent=11 // pred_check
        %p464 = pneg %p228
      $region22: #{_lambda_.3} parent=11 // pred_check_branch
        %466 = sbr.rel (%p464) target = $region24
      $region23: #{_lambda_.3} parent=11 // pred_region
        _
      $region24: #{_lambda_.3} parent=11 // pred_fallthru
        _
      // Predicated region
      $region25: #{_lambda_.3} parent=11 // pred_check
        %p467 = pneg %p249
      $region26: #{_lambda_.3} parent=11 // pred_check_branch
        %469 = sbr.rel (%p467) target = $region28
      $region27: #{_lambda_.3} parent=11 // pred_region
        _
      $region28: #{_lambda_.3} parent=11 // pred_fallthru
        _
      // Predicated region
      $region29: #{_lambda_.3} parent=11 // pred_check
        %p470 = pneg %p270
      $region30: #{_lambda_.3} parent=11 // pred_check_branch
        %472 = sbr.rel (%p470) target = $region32
      $region31: #{_lambda_.3} parent=11 // pred_region
        _
      $region32: #{_lambda_.3} parent=11 // pred_fallthru
        _
      // Predicated region
      $region33: #{_lambda_.3} parent=11 // pred_check
        %p473 = pneg %p291
      $region34: #{_lambda_.3} parent=11 // pred_check_branch
        %475 = sbr.rel (%p473) target = $region36
      $region35: #{_lambda_.3} parent=11 // pred_region
        _
      $region36: #{_lambda_.3} parent=11 // pred_fallthru
        _
      // Predicated region
      $region37: #{_lambda_.3} parent=11 // pred_check
        %p476 = pneg %p312
      $region38: #{_lambda_.3} parent=11 // pred_check_branch
        %478 = sbr.rel (%p476) target = $region40
      $region39: #{_lambda_.3} parent=11 // pred_region
        _
      $region40: #{_lambda_.3} parent=11 // pred_fallthru
        _
      // Predicated region
      $region41: #{_lambda_.3} parent=11 // pred_check
        %p479 = pneg %p333
      $region42: #{_lambda_.3} parent=11 // pred_check_branch
        %481 = sbr.rel (%p479) target = $region44
      $region43: #{_lambda_.3} parent=11 // pred_region
        _
      $region44: #{_lambda_.3} parent=11 // pred_fallthru
        _
      // Predicated region
      $region45: #{_lambda_.3} parent=11 // pred_check
        %p482 = pneg %p354
      $region46: #{_lambda_.3} parent=11 // pred_check_branch
        %484 = sbr.rel (%p482) target = $region48
      $region47: #{_lambda_.3} parent=11 // pred_region
        _
      $region48: #{_lambda_.3} parent=11 // pred_fallthru
        _
      // Predicated region
      $region49: #{_lambda_.3} parent=11 // pred_check
        %p485 = pneg %p375
      $region50: #{_lambda_.3} parent=11 // pred_check_branch
        %487 = sbr.rel (%p485) target = $region52
      $region51: #{_lambda_.3} parent=11 // pred_region
        _
      $region52: #{_lambda_.3} parent=11 // pred_fallthru
        _
      // Predicated region
      $region53: #{_lambda_.3} parent=11 // pred_check
        %p488 = pneg %p396
      $region54: #{_lambda_.3} parent=11 // pred_check_branch
        %490 = sbr.rel (%p488) target = $region56
      $region55: #{_lambda_.3} parent=11 // pred_region
        _
      $region56: #{_lambda_.3} parent=11 // pred_fallthru
        _
      // Predicated region
      $region57: #{_lambda_.3} parent=11 // pred_check
        %p491 = pneg %p417
      $region58: #{_lambda_.3} parent=11 // pred_check_branch
        %493 = sbr.rel (%p491) target = $region60
      $region59: #{_lambda_.3} parent=11 // pred_region
        _
      $region60: #{_lambda_.3} parent=11 // pred_fallthru
        _
    $region12: #{_lambda_.3} parent=5 // pred_fallthru
      _
    %p494 = scmp.lt.s32.totalorder %s23, 4
    // Predicated region
    $region61: #{_lambda_.3} parent=5 // pred_check
      %p495 = pneg %p494
    $region62: #{_lambda_.3} parent=5 // pred_check_branch
      %497 = sbr.rel (%p495) target = $region64
    $region63: #{_lambda_.3} parent=5 // pred_region
      // Predicated region
      $region65: #{_lambda_.3} parent=63 // pred_check
        %p498 = pneg %p55
      $region66: #{_lambda_.3} parent=63 // pred_check_branch
        %500 = sbr.rel (%p498) target = $region68
      $region67: #{_lambda_.3} parent=63 // pred_region
        %s501 = smul.u32 16, %s30
        %p502 = scmp.lt.s32.totalorder %s501, 31
        %s503 = scalar_select %p502, %s501, 31
        %s504 = smul.addr %s503, 8
        %s505 = scalar_lea.vmem %s0, %s504
        %s506 = smul.u32 16, %s30
      $region68: #{_lambda_.3} parent=63 // pred_fallthru
        _
      // Predicated region
      $region69: #{_lambda_.3} parent=63 // pred_check
        %p507 = pneg %p81
      $region70: #{_lambda_.3} parent=63 // pred_check_branch
        %509 = sbr.rel (%p507) target = $region72
      $region71: #{_lambda_.3} parent=63 // pred_region
        %s510 = smul.u32 16, %s31
        %p511 = scmp.lt.s32.totalorder %s510, 31
        %s512 = scalar_select %p511, %s510, 31
        %s513 = smul.addr %s512, 8
        %s514 = scalar_lea.vmem %s1, %s513
        %s515 = smul.u32 16, %s31
      $region72: #{_lambda_.3} parent=63 // pred_fallthru
        _
      // Predicated region
      $region73: #{_lambda_.3} parent=63 // pred_check
        %p516 = pneg %p107
      $region74: #{_lambda_.3} parent=63 // pred_check_branch
        %518 = sbr.rel (%p516) target = $region76
      $region75: #{_lambda_.3} parent=63 // pred_region
        %s519 = smul.u32 16, %s30
        %p520 = scmp.lt.s32.totalorder %s519, 31
        %s521 = scalar_select %p520, %s519, 31
        %s522 = smul.addr %s521, 8
        %s523 = scalar_lea.vmem %s2, %s522
        %s524 = smul.u32 16, %s30
      $region76: #{_lambda_.3} parent=63 // pred_fallthru
        _
      // Predicated region
      $region77: #{_lambda_.3} parent=63 // pred_check
        %p525 = pneg %p133
      $region78: #{_lambda_.3} parent=63 // pred_check_branch
        %527 = sbr.rel (%p525) target = $region80
      $region79: #{_lambda_.3} parent=63 // pred_region
        %s528 = smul.u32 16, %s31
        %p529 = scmp.lt.s32.totalorder %s528, 31
        %s530 = scalar_select %p529, %s528, 31
        %s531 = smul.addr %s530, 8
        %s532 = scalar_lea.vmem %s3, %s531
        %s533 = smul.u32 16, %s31
      $region80: #{_lambda_.3} parent=63 // pred_fallthru
        _
      // Predicated region
      $region81: #{_lambda_.3} parent=63 // pred_check
        %p534 = pneg %p159
      $region82: #{_lambda_.3} parent=63 // pred_check_branch
        %536 = sbr.rel (%p534) target = $region84
      $region83: #{_lambda_.3} parent=63 // pred_region
        %s537 = smul.u32 16, %s30
        %p538 = scmp.lt.s32.totalorder %s537, 31
        %s539 = scalar_select %p538, %s537, 31
        %s540 = smul.addr %s539, 8
        %s541 = scalar_lea.vmem %s4, %s540
        %s542 = smul.u32 16, %s30
      $region84: #{_lambda_.3} parent=63 // pred_fallthru
        _
    $region64: #{_lambda_.3} parent=5 // pred_fallthru
      _
    %p543 = scmp.le.s32.totalorder 1, %s23
    %p544 = scmp.lt.s32.totalorder %s23, 5
    %p545 = pnand %p543, %p544
    %p546 = pneg %p545
    // Predicated region
    $region85: #{_lambda_.3} parent=5 // pred_check
      _
    $region86: #{_lambda_.3} parent=5 // pred_check_branch
      %548 = sbr.rel (%p545) target = $region88
    $region87: #{_lambda_.3} parent=5 // pred_region
      %s549 = ssub.s32 %s23, 1
      %s550 = smul.u32 16, %s32
      %p551 = scmp.lt.s32.totalorder %s550, 31
      %s552 = scalar_select %p551, %s550, 31
      %s553 = smul.addr %s552, 8
      %s554 = scalar_lea.vmem %s0, %s553
      %p555 = pneg %p61
      %p556 = pneg %p58
      %s557 = smul.u32 16, %s33
      %p558 = scmp.lt.s32.totalorder %s557, 31
      %s559 = scalar_select %p558, %s557, 31
      %s560 = smul.addr %s559, 8
      %s561 = scalar_lea.vmem %s1, %s560
      %p562 = pneg %p87
      %p563 = pneg %p84
      %s564 = smul.u32 16, %s32
      %p565 = scmp.lt.s32.totalorder %s564, 31
      %s566 = scalar_select %p565, %s564, 31
      %s567 = smul.addr %s566, 8
      %s568 = scalar_lea.vmem %s2, %s567
      %p569 = pneg %p113
      %p570 = pneg %p110
      %s571 = smul.u32 16, %s33
      %p572 = scmp.lt.s32.totalorder %s571, 31
      %s573 = scalar_select %p572, %s571, 31
      %s574 = smul.addr %s573, 8
      %s575 = scalar_lea.vmem %s3, %s574
      %p576 = pneg %p139
      %p577 = pneg %p136
      %s578 = smul.u32 16, %s32
      %p579 = scmp.lt.s32.totalorder %s578, 31
      %s580 = scalar_select %p579, %s578, 31
      %s581 = smul.addr %s580, 8
      %s582 = scalar_lea.vmem %s4, %s581
      %p583 = pneg %p165
      %p584 = pneg %p162
      %p585 = pneg %p186
      %p586 = pneg %p183
      %p587 = pneg %p207
      %p588 = pneg %p204
      %p589 = pneg %p228
      %p590 = pneg %p225
      %p591 = pneg %p249
      %p592 = pneg %p246
      %p593 = pneg %p270
      %p594 = pneg %p267
      %p595 = pneg %p291
      %p596 = pneg %p288
      %p597 = pneg %p312
      %p598 = pneg %p309
      %p599 = pneg %p333
      %p600 = pneg %p330
      %p601 = pneg %p354
      %p602 = pneg %p351
      %p603 = pneg %p375
      %p604 = pneg %p372
      %p605 = pneg %p396
      %p606 = pneg %p393
      %p607 = pneg %p417
      %p608 = pneg %p414
      %p609 = pneg %p443
      %p610 = pneg %p440
      %s611 = smul.u32 16, %s32
      %p612 = scmp.lt.s32.totalorder %s611, 31
      %s613 = scalar_select %p612, %s611, 31
      %s614 = smul.addr %s613, 8
      %s615 = scalar_lea.vmem %s17, %s614
      %s616 = smul.u32 16, %s32
      %p617 = scmp.lt.s32.totalorder %s616, 31
      %s618 = scalar_select %p617, %s616, 31
      %s619 = smul.addr %s618, 8
      %s620 = scalar_lea.vmem %s0, %s619
      %s621 = smul.u32 16, %s32
      %s622 = smul.u32 16, %s33
      %p623 = scmp.lt.s32.totalorder %s622, 31
      %s624 = scalar_select %p623, %s622, 31
      %s625 = smul.addr %s624, 8
      %s626 = scalar_lea.vmem %s1, %s625
      %s627 = smul.u32 16, %s33
      %s628 = smul.u32 16, %s32
      %p629 = scmp.lt.s32.totalorder %s628, 31
      %s630 = scalar_select %p629, %s628, 31
      %s631 = smul.addr %s630, 8
      %s632 = scalar_lea.vmem %s2, %s631
      %s633 = smul.u32 16, %s32
      %s634 = smul.u32 16, %s33
      %p635 = scmp.lt.s32.totalorder %s634, 31
      %s636 = scalar_select %p635, %s634, 31
      %s637 = smul.addr %s636, 8
      %s638 = scalar_lea.vmem %s3, %s637
      %s639 = smul.u32 16, %s33
      %s640 = smul.u32 16, %s32
      %p641 = scmp.lt.s32.totalorder %s640, 31
      %s642 = scalar_select %p641, %s640, 31
      %s643 = smul.addr %s642, 8
      %s644 = scalar_lea.vmem %s4, %s643
      %s645 = smul.u32 16, %s32
      %s646 = smul.u32 16, %s32
      %p647 = scmp.lt.s32.totalorder %s646, 31
      %s648 = scalar_select %p647, %s646, 31
      %s649 = smul.addr %s648, 8
      %s650 = scalar_lea.vmem %s17, %s649
      %s651 = smul.u32 16, %s32
      %p653 = scmp.eq.s32.totalorder %s33, 0
      // Predicated region
      $region89: #{_lambda_.3} parent=87 // pred_check
        %p654 = pneg %p653
      $region90: #{_lambda_.3} parent=87 // pred_check_branch
        %656 = sbr.rel (%p654) target = $region92
      $region91: #{_lambda_.3} parent=87 // pred_region
        %v657 = vld [vmem:[%s620] sm:$0xff]
        %v658 = vld [vmem:[%s620 + $0x8] sm:$0xff]
        %v659 = vld [vmem:[%s620 + $0x10] sm:$0xff]
        %v660 = vld [vmem:[%s620 + $0x18] sm:$0xff]
        %v661 = vld [vmem:[%s620 + $0x20] sm:$0xff]
        %v662 = vld [vmem:[%s620 + $0x28] sm:$0xff]
        %v663 = vld [vmem:[%s620 + $0x30] sm:$0xff]
        %v664 = vld [vmem:[%s620 + $0x38] sm:$0xff]
        %v665 = vld [vmem:[%s620 + $0x40] sm:$0xff]
        %v666 = vld [vmem:[%s620 + $0x48] sm:$0xff]
        %v667 = vld [vmem:[%s620 + $0x50] sm:$0xff]
        %v668 = vld [vmem:[%s620 + $0x58] sm:$0xff]
        %v669 = vld [vmem:[%s620 + $0x60] sm:$0xff]
        %v670 = vld [vmem:[%s620 + $0x68] sm:$0xff]
        %v671 = vld [vmem:[%s620 + $0x70] sm:$0xff]
        %v672 = vld [vmem:[%s620 + $0x78] sm:$0xff]
        %v673 = vpack.c.bf16 %v658, %v657
        %v674 = vpack.c.bf16 %v660, %v659
        %v675 = vpack.c.bf16 %v662, %v661
        %v676 = vpack.c.bf16 %v664, %v663
        %v677 = vpack.c.bf16 %v666, %v665
        %v678 = vpack.c.bf16 %v668, %v667
        %v679 = vpack.c.bf16 %v670, %v669
        %v680 = vpack.c.bf16 %v672, %v671
        %v681 = vld [vmem:[%s5] sm:$0xf]
        %v682 = vld [vmem:[%s5 + $0x4] sm:$0xf]
        %v683 = vld [vmem:[%s5 + $0x8] sm:$0xf]
        %v684 = vld [vmem:[%s5 + $0xc] sm:$0xf]
        %v685 = vld [vmem:[%s5 + $0x10] sm:$0xf]
        %v686 = vld [vmem:[%s5 + $0x14] sm:$0xf]
        %v687 = vld [vmem:[%s5 + $0x18] sm:$0xf]
        %v688 = vld [vmem:[%s5 + $0x1c] sm:$0xf]
        %v689 = vld [vmem:[%s5 + $0x20] sm:$0xf]
        %v690 = vld [vmem:[%s5 + $0x24] sm:$0xf]
        %v691 = vld [vmem:[%s5 + $0x28] sm:$0xf]
        %v692 = vld [vmem:[%s5 + $0x2c] sm:$0xf]
        %v693 = vld [vmem:[%s5 + $0x30] sm:$0xf]
        %v694 = vld [vmem:[%s5 + $0x34] sm:$0xf]
        %v695 = vld [vmem:[%s5 + $0x38] sm:$0xf]
        %v696 = vld [vmem:[%s5 + $0x3c] sm:$0xf]
        %v697 = vld [vmem:[%s6] sm:$0x1]
        %v699 = vlaneseq
        %v700 = vshrl.u32 %v699, 7
        %v701 = vsub.s32 0, %v700
        %v702 = vrot.slane %v697, %v701
        %v720 = vunpack.c.l.b16 %v681
        %v721 = vunpack.c.l.b16 %v682
        %v722 = vunpack.c.l.b16 %v683
        %v723 = vunpack.c.l.b16 %v684
        %v724 = vunpack.c.l.b16 %v685
        %v725 = vunpack.c.l.b16 %v686
        %v726 = vunpack.c.l.b16 %v687
        %v727 = vunpack.c.l.b16 %v688
        %v728 = vunpack.c.l.b16 %v689
        %v729 = vunpack.c.l.b16 %v690
        %v730 = vunpack.c.l.b16 %v691
        %v731 = vunpack.c.l.b16 %v692
        %v732 = vunpack.c.l.b16 %v693
        %v733 = vunpack.c.l.b16 %v694
        %v734 = vunpack.c.l.b16 %v695
        %v735 = vunpack.c.l.b16 %v696
        %v736 = vpack.c.b16 %v721, %v720
        %v737 = vpack.c.b16 %v723, %v722
        %v738 = vpack.c.b16 %v725, %v724
        %v739 = vpack.c.b16 %v727, %v726
        %v740 = vpack.c.b16 %v729, %v728
        %v741 = vpack.c.b16 %v731, %v730
        %v742 = vpack.c.b16 %v733, %v732
        %v743 = vpack.c.b16 %v735, %v734
        %752 = vmatprep.subr.bf16.mxu0 0
        %753 = vmatpush1.bf16.msra.mxu0 %v736
        %754 = vmatprep.subr.bf16.mxu0 0
        %755 = vmatpush1.bf16.msra.mxu0 %v737
        %756 = vmatprep.subr.bf16.mxu0 0
        %757 = vmatpush1.bf16.msra.mxu0 %v738
        %758 = vmatprep.subr.bf16.mxu0 0
        %759 = vmatpush1.bf16.msra.mxu0 %v739
        %760 = vmatprep.subr.bf16.mxu0 0
        %761 = vmatpush1.bf16.msra.mxu0 %v740
        %762 = vmatprep.subr.bf16.mxu0 0
        %763 = vmatpush1.bf16.msra.mxu0 %v741
        %764 = vmatprep.subr.bf16.mxu0 0
        %765 = vmatpush1.bf16.msra.mxu0 %v742
        %766 = vmatprep.subr.bf16.mxu0 0
        %767 = vmatpush1.bf16.msra.mxu0 %v743
        %768 = vmatprep.subr.bf16.mxu0 0
        %769 = vmatpush1.bf16.msra.mxu0 0
        %770 = vmatprep.subr.bf16.mxu0 0
        %771 = vmatpush1.bf16.msra.mxu0 0
        %772 = vmatprep.subr.bf16.mxu0 0
        %773 = vmatpush1.bf16.msra.mxu0 0
        %774 = vmatprep.subr.bf16.mxu0 0
        %775 = vmatpush1.bf16.msra.mxu0 0
        %776 = vmatprep.subr.bf16.mxu0 0
        %777 = vmatpush1.bf16.msra.mxu0 0
        %778 = vmatprep.subr.bf16.mxu0 0
        %779 = vmatpush1.bf16.msra.mxu0 0
        %780 = vmatprep.subr.bf16.mxu0 0
        %781 = vmatpush1.bf16.msra.mxu0 0
        %782 = vmatprep.subr.bf16.mxu0 0
        %783 = vmatpush1.bf16.msra.mxu0 0
        %784 = vmatprep.mubr.bf16.mxu0 0
        %785 = vmatmul.mubr.bf16.gmra.mrb[0].mxu0 %v673
        %v786 = vpop.f32.mrb[0].mxu0
        %v787 = vadd.f32 %v702, %v786
        %v788 = vpop.f32.mrb[0].mxu0
        %v789 = vpop.f32.mrb[0].mxu0
        %v790 = vadd.f32 %v702, %v789
        %v791 = vpop.f32.mrb[0].mxu0
        %792 = vmatprep.mubr.bf16.mxu0 0
        %793 = vmatmul.mubr.bf16.gmra.mrb[0].mxu0 %v674
        %v794 = vpop.f32.mrb[0].mxu0
        %v795 = vadd.f32 %v702, %v794
        %v796 = vpop.f32.mrb[0].mxu0
        %v797 = vpop.f32.mrb[0].mxu0
        %v798 = vadd.f32 %v702, %v797
        %v799 = vpop.f32.mrb[0].mxu0
        %800 = vmatprep.mubr.bf16.mxu0 0
        %801 = vmatmul.mubr.bf16.gmra.mrb[0].mxu0 %v675
        %v802 = vpop.f32.mrb[0].mxu0
        %v803 = vadd.f32 %v702, %v802
        %v804 = vpop.f32.mrb[0].mxu0
        %v805 = vpop.f32.mrb[0].mxu0
        %v806 = vadd.f32 %v702, %v805
        %v807 = vpop.f32.mrb[0].mxu0
        %808 = vmatprep.mubr.bf16.mxu0 0
        %809 = vmatmul.mubr.bf16.gmra.mrb[0].mxu0 %v676
        %v810 = vpop.f32.mrb[0].mxu0
        %v811 = vadd.f32 %v702, %v810
        %v812 = vpop.f32.mrb[0].mxu0
        %v813 = vpop.f32.mrb[0].mxu0
        %v814 = vadd.f32 %v702, %v813
        %v815 = vpop.f32.mrb[0].mxu0
        %816 = vmatprep.mubr.bf16.mxu0 0
        %817 = vmatmul.mubr.bf16.gmra.mrb[0].mxu0 %v677
        %v818 = vpop.f32.mrb[0].mxu0
        %v819 = vadd.f32 %v702, %v818
        %v820 = vpop.f32.mrb[0].mxu0
        %v821 = vpop.f32.mrb[0].mxu0
        %v822 = vadd.f32 %v702, %v821
        %v823 = vpop.f32.mrb[0].mxu0
        %824 = vmatprep.mubr.bf16.mxu0 0
        %825 = vmatmul.mubr.bf16.gmra.mrb[0].mxu0 %v678
        %v826 = vpop.f32.mrb[0].mxu0
        %v827 = vadd.f32 %v702, %v826
        %v828 = vpop.f32.mrb[0].mxu0
        %v829 = vpop.f32.mrb[0].mxu0
        %v830 = vadd.f32 %v702, %v829
        %v831 = vpop.f32.mrb[0].mxu0
        %832 = vmatprep.mubr.bf16.mxu0 0
        %833 = vmatmul.mubr.bf16.gmra.mrb[0].mxu0 %v679
        %v834 = vpop.f32.mrb[0].mxu0
        %v835 = vadd.f32 %v702, %v834
        %v836 = vpop.f32.mrb[0].mxu0
        %v837 = vpop.f32.mrb[0].mxu0
        %v838 = vadd.f32 %v702, %v837
        %v839 = vpop.f32.mrb[0].mxu0
        %840 = vmatprep.mubr.bf16.mxu0 0
        %841 = vmatmul.mubr.bf16.gmra.mrb[0].mxu0 %v680
        %v842 = vpop.f32.mrb[0].mxu0
        %v843 = vadd.f32 %v702, %v842
        %v844 = vpop.f32.mrb[0].mxu0
        %v845 = vpop.f32.mrb[0].mxu0
        %v846 = vadd.f32 %v702, %v845
        %v847 = vpop.f32.mrb[0].mxu0
        %848 = vdwg.mxu0
        %849 = vst [vmem:[#allocation2] sm:$0xff] %v787
        %850 = vst [vmem:[#allocation2 + $0x8] sm:$0xff] %v790
        %851 = vst [vmem:[#allocation2 + $0x10] sm:$0xff] %v795
        %852 = vst [vmem:[#allocation2 + $0x18] sm:$0xff] %v798
        %853 = vst [vmem:[#allocation2 + $0x20] sm:$0xff] %v803
        %854 = vst [vmem:[#allocation2 + $0x28] sm:$0xff] %v806
        %855 = vst [vmem:[#allocation2 + $0x30] sm:$0xff] %v811
        %856 = vst [vmem:[#allocation2 + $0x38] sm:$0xff] %v814
        %857 = vst [vmem:[#allocation2 + $0x40] sm:$0xff] %v819
        %858 = vst [vmem:[#allocation2 + $0x48] sm:$0xff] %v822
        %859 = vst [vmem:[#allocation2 + $0x50] sm:$0xff] %v827
        %860 = vst [vmem:[#allocation2 + $0x58] sm:$0xff] %v830
        %861 = vst [vmem:[#allocation2 + $0x60] sm:$0xff] %v835
        %862 = vst [vmem:[#allocation2 + $0x68] sm:$0xff] %v838
        %863 = vst [vmem:[#allocation2 + $0x70] sm:$0xff] %v843
        %864 = vst [vmem:[#allocation2 + $0x78] sm:$0xff] %v846
        %vm865 = vcmask 7168
        %866 = vst.msk [vmem:[#allocation3] sm:$0xff] %vm865, -inf
        %867 = vst.msk [vmem:[#allocation3 + $0x8] sm:$0xff] %vm865, -inf
        %868 = vst.msk [vmem:[#allocation3 + $0x10] sm:$0xff] %vm865, -inf
        %869 = vst.msk [vmem:[#allocation3 + $0x18] sm:$0xff] %vm865, -inf
        %870 = vst.msk [vmem:[#allocation3 + $0x20] sm:$0xff] %vm865, -inf
        %871 = vst.msk [vmem:[#allocation3 + $0x28] sm:$0xff] %vm865, -inf
        %872 = vst.msk [vmem:[#allocation3 + $0x30] sm:$0xff] %vm865, -inf
        %873 = vst.msk [vmem:[#allocation3 + $0x38] sm:$0xff] %vm865, -inf
        %874 = vst.msk [vmem:[#allocation3 + $0x40] sm:$0xff] %vm865, -inf
        %875 = vst.msk [vmem:[#allocation3 + $0x48] sm:$0xff] %vm865, -inf
        %876 = vst.msk [vmem:[#allocation3 + $0x50] sm:$0xff] %vm865, -inf
        %877 = vst.msk [vmem:[#allocation3 + $0x58] sm:$0xff] %vm865, -inf
        %878 = vst.msk [vmem:[#allocation3 + $0x60] sm:$0xff] %vm865, -inf
        %879 = vst.msk [vmem:[#allocation3 + $0x68] sm:$0xff] %vm865, -inf
        %880 = vst.msk [vmem:[#allocation3 + $0x70] sm:$0xff] %vm865, -inf
        %881 = vst.msk [vmem:[#allocation3 + $0x78] sm:$0xff] %vm865, -inf
        %882 = vst.msk [vmem:[#allocation4] sm:$0xff] %vm865, 0.0
        %883 = vst.msk [vmem:[#allocation4 + $0x8] sm:$0xff] %vm865, 0.0
        %884 = vst.msk [vmem:[#allocation4 + $0x10] sm:$0xff] %vm865, 0.0
        %885 = vst.msk [vmem:[#allocation4 + $0x18] sm:$0xff] %vm865, 0.0
        %886 = vst.msk [vmem:[#allocation4 + $0x20] sm:$0xff] %vm865, 0.0
        %887 = vst.msk [vmem:[#allocation4 + $0x28] sm:$0xff] %vm865, 0.0
        %888 = vst.msk [vmem:[#allocation4 + $0x30] sm:$0xff] %vm865, 0.0
        %889 = vst.msk [vmem:[#allocation4 + $0x38] sm:$0xff] %vm865, 0.0
        %890 = vst.msk [vmem:[#allocation4 + $0x40] sm:$0xff] %vm865, 0.0
        %891 = vst.msk [vmem:[#allocation4 + $0x48] sm:$0xff] %vm865, 0.0
        %892 = vst.msk [vmem:[#allocation4 + $0x50] sm:$0xff] %vm865, 0.0
        %893 = vst.msk [vmem:[#allocation4 + $0x58] sm:$0xff] %vm865, 0.0
        %894 = vst.msk [vmem:[#allocation4 + $0x60] sm:$0xff] %vm865, 0.0
        %895 = vst.msk [vmem:[#allocation4 + $0x68] sm:$0xff] %vm865, 0.0
        %896 = vst.msk [vmem:[#allocation4 + $0x70] sm:$0xff] %vm865, 0.0
        %897 = vst.msk [vmem:[#allocation4 + $0x78] sm:$0xff] %vm865, 0.0
        %898 = vst [vmem:[#allocation5] sm:$0xff] 0.0
        %899 = vst [vmem:[#allocation5 + $0x8] sm:$0xff] 0.0
        %900 = vst [vmem:[#allocation5 + $0x10] sm:$0xff] 0.0
        %901 = vst [vmem:[#allocation5 + $0x18] sm:$0xff] 0.0
        %902 = vst [vmem:[#allocation5 + $0x20] sm:$0xff] 0.0
        %903 = vst [vmem:[#allocation5 + $0x28] sm:$0xff] 0.0
        %904 = vst [vmem:[#allocation5 + $0x30] sm:$0xff] 0.0
        %905 = vst [vmem:[#allocation5 + $0x38] sm:$0xff] 0.0
        %906 = vst [vmem:[#allocation5 + $0x40] sm:$0xff] 0.0
        %907 = vst [vmem:[#allocation5 + $0x48] sm:$0xff] 0.0
        %908 = vst [vmem:[#allocation5 + $0x50] sm:$0xff] 0.0
        %909 = vst [vmem:[#allocation5 + $0x58] sm:$0xff] 0.0
        %910 = vst [vmem:[#allocation5 + $0x60] sm:$0xff] 0.0
        %911 = vst [vmem:[#allocation5 + $0x68] sm:$0xff] 0.0
        %912 = vst [vmem:[#allocation5 + $0x70] sm:$0xff] 0.0
        %913 = vst [vmem:[#allocation5 + $0x78] sm:$0xff] 0.0
      $region92: #{_lambda_.3} parent=87 // pred_fallthru
        _
      %v914 = vld [vmem:[%s626] sm:$0xff]
      %v915 = vld [vmem:[%s626 + $0x8] sm:$0xff]
      %v916 = vld [vmem:[%s626 + $0x10] sm:$0xff]
      %v917 = vld [vmem:[%s626 + $0x18] sm:$0xff]
      %v918 = vld [vmem:[%s626 + $0x20] sm:$0xff]
      %v919 = vld [vmem:[%s626 + $0x28] sm:$0xff]
      %v920 = vld [vmem:[%s626 + $0x30] sm:$0xff]
      %v921 = vld [vmem:[%s626 + $0x38] sm:$0xff]
      %v922 = vld [vmem:[%s626 + $0x40] sm:$0xff]
      %v923 = vld [vmem:[%s626 + $0x48] sm:$0xff]
      %v924 = vld [vmem:[%s626 + $0x50] sm:$0xff]
      %v925 = vld [vmem:[%s626 + $0x58] sm:$0xff]
      %v926 = vld [vmem:[%s626 + $0x60] sm:$0xff]
      %v927 = vld [vmem:[%s626 + $0x68] sm:$0xff]
      %v928 = vld [vmem:[%s626 + $0x70] sm:$0xff]
      %v929 = vld [vmem:[%s626 + $0x78] sm:$0xff]
      %v930 = vpack.c.bf16 %v915, %v914
      %v931 = vpack.c.bf16 %v917, %v916
      %v932 = vpack.c.bf16 %v919, %v918
      %v933 = vpack.c.bf16 %v921, %v920
      %v934 = vpack.c.bf16 %v923, %v922
      %v935 = vpack.c.bf16 %v925, %v924
      %v936 = vpack.c.bf16 %v927, %v926
      %v937 = vpack.c.bf16 %v929, %v928
      %v938 = vld [vmem:[%s7] sm:$0xff]
      %v939 = vld [vmem:[%s7 + $0x8] sm:$0xff]
      %v940 = vld [vmem:[%s7 + $0x10] sm:$0xff]
      %v941 = vld [vmem:[%s7 + $0x18] sm:$0xff]
      %v942 = vld [vmem:[%s7 + $0x20] sm:$0xff]
      %v943 = vld [vmem:[%s7 + $0x28] sm:$0xff]
      %v944 = vld [vmem:[%s7 + $0x30] sm:$0xff]
      %v945 = vld [vmem:[%s7 + $0x38] sm:$0xff]
      %v946 = vld [vmem:[%s7 + $0x40] sm:$0xff]
      %v947 = vld [vmem:[%s7 + $0x48] sm:$0xff]
      %v948 = vld [vmem:[%s7 + $0x50] sm:$0xff]
      %v949 = vld [vmem:[%s7 + $0x58] sm:$0xff]
      %v950 = vld [vmem:[%s7 + $0x60] sm:$0xff]
      %v951 = vld [vmem:[%s7 + $0x68] sm:$0xff]
      %v952 = vld [vmem:[%s7 + $0x70] sm:$0xff]
      %v953 = vld [vmem:[%s7 + $0x78] sm:$0xff]
      %v954 = vld [vmem:[%s8] sm:$0x3]
      %v956 = vlaneseq
      %v957 = vshrl.u32 %v956, 7
      %v958 = vsub.s32 0, %v957
      %v959 = vrot.slane %v954, %v958
      %v960 = vlaneseq
      %v961 = vshrl.u32 %v960, 7
      %v962 = vsub.s32 1, %v961
      %v963 = vrot.slane %v954, %v962
      %v982 = vunpack.c.l.b16 %v938
      %v983 = vunpack.c.h.b16 %v938
      %v984 = vunpack.c.l.b16 %v939
      %v985 = vunpack.c.h.b16 %v939
      %v986 = vunpack.c.l.b16 %v940
      %v987 = vunpack.c.h.b16 %v940
      %v988 = vunpack.c.l.b16 %v941
      %v989 = vunpack.c.h.b16 %v941
      %v990 = vunpack.c.l.b16 %v942
      %v991 = vunpack.c.h.b16 %v942
      %v992 = vunpack.c.l.b16 %v943
      %v993 = vunpack.c.h.b16 %v943
      %v994 = vunpack.c.l.b16 %v944
      %v995 = vunpack.c.h.b16 %v944
      %v996 = vunpack.c.l.b16 %v945
      %v997 = vunpack.c.h.b16 %v945
      %v998 = vunpack.c.l.b16 %v946
      %v999 = vunpack.c.h.b16 %v946
      %v1000 = vunpack.c.l.b16 %v947
      %v1001 = vunpack.c.h.b16 %v947
      %v1002 = vunpack.c.l.b16 %v948
      %v1003 = vunpack.c.h.b16 %v948
      %v1004 = vunpack.c.l.b16 %v949
      %v1005 = vunpack.c.h.b16 %v949
      %v1006 = vunpack.c.l.b16 %v950
      %v1007 = vunpack.c.h.b16 %v950
      %v1008 = vunpack.c.l.b16 %v951
      %v1009 = vunpack.c.h.b16 %v951
      %v1010 = vunpack.c.l.b16 %v952
      %v1011 = vunpack.c.h.b16 %v952
      %v1012 = vunpack.c.l.b16 %v953
      %v1013 = vunpack.c.h.b16 %v953
      %v1014 = vpack.c.b16 %v984, %v982
      %v1015 = vpack.c.b16 %v985, %v983
      %v1016 = vpack.c.b16 %v988, %v986
      %v1017 = vpack.c.b16 %v989, %v987
      %v1018 = vpack.c.b16 %v992, %v990
      %v1019 = vpack.c.b16 %v993, %v991
      %v1020 = vpack.c.b16 %v996, %v994
      %v1021 = vpack.c.b16 %v997, %v995
      %v1022 = vpack.c.b16 %v1000, %v998
      %v1023 = vpack.c.b16 %v1001, %v999
      %v1024 = vpack.c.b16 %v1004, %v1002
      %v1025 = vpack.c.b16 %v1005, %v1003
      %v1026 = vpack.c.b16 %v1008, %v1006
      %v1027 = vpack.c.b16 %v1009, %v1007
      %v1028 = vpack.c.b16 %v1012, %v1010
      %v1029 = vpack.c.b16 %v1013, %v1011
      %1046 = vmatprep.subr.bf16.mxu0 %v1015
      %1047 = vmatpush1.bf16.msra.mxu0 %v1014
      %1048 = vmatprep.subr.bf16.mxu0 %v1017
      %1049 = vmatpush1.bf16.msra.mxu0 %v1016
      %1050 = vmatprep.subr.bf16.mxu0 %v1019
      %1051 = vmatpush1.bf16.msra.mxu0 %v1018
      %1052 = vmatprep.subr.bf16.mxu0 %v1021
      %1053 = vmatpush1.bf16.msra.mxu0 %v1020
      %1054 = vmatprep.subr.bf16.mxu0 %v1023
      %1055 = vmatpush1.bf16.msra.mxu0 %v1022
      %1056 = vmatprep.subr.bf16.mxu0 %v1025
      %1057 = vmatpush1.bf16.msra.mxu0 %v1024
      %1058 = vmatprep.subr.bf16.mxu0 %v1027
      %1059 = vmatpush1.bf16.msra.mxu0 %v1026
      %1060 = vmatprep.subr.bf16.mxu0 %v1029
      %1061 = vmatpush1.bf16.msra.mxu0 %v1028
      %1062 = vmatprep.subr.bf16.mxu0 0
      %1063 = vmatpush1.bf16.msra.mxu0 0
      %1064 = vmatprep.subr.bf16.mxu0 0
      %1065 = vmatpush1.bf16.msra.mxu0 0
      %1066 = vmatprep.subr.bf16.mxu0 0
      %1067 = vmatpush1.bf16.msra.mxu0 0
      %1068 = vmatprep.subr.bf16.mxu0 0
      %1069 = vmatpush1.bf16.msra.mxu0 0
      %1070 = vmatprep.subr.bf16.mxu0 0
      %1071 = vmatpush1.bf16.msra.mxu0 0
      %1072 = vmatprep.subr.bf16.mxu0 0
      %1073 = vmatpush1.bf16.msra.mxu0 0
      %1074 = vmatprep.subr.bf16.mxu0 0
      %1075 = vmatpush1.bf16.msra.mxu0 0
      %1076 = vmatprep.subr.bf16.mxu0 0
      %1077 = vmatpush1.bf16.msra.mxu0 0
      %1078 = vmatprep.mubr.bf16.mxu0 0
      %1079 = vmatmul.mubr.bf16.gmra.mrb[0].mxu0 %v930
      %v1080 = vpop.f32.mrb[0].mxu0
      %v1081 = vadd.f32 %v959, %v1080
      %v1082 = vpop.f32.mrb[0].mxu0
      %v1083 = vadd.f32 %v963, %v1082
      %v1084 = vpop.f32.mrb[0].mxu0
      %v1085 = vadd.f32 %v959, %v1084
      %v1086 = vpop.f32.mrb[0].mxu0
      %v1087 = vadd.f32 %v963, %v1086
      %1088 = vmatprep.mubr.bf16.mxu0 0
      %1089 = vmatmul.mubr.bf16.gmra.mrb[0].mxu0 %v931
      %v1090 = vpop.f32.mrb[0].mxu0
      %v1091 = vadd.f32 %v959, %v1090
      %v1092 = vpop.f32.mrb[0].mxu0
      %v1093 = vadd.f32 %v963, %v1092
      %v1094 = vpop.f32.mrb[0].mxu0
      %v1095 = vadd.f32 %v959, %v1094
      %v1096 = vpop.f32.mrb[0].mxu0
      %v1097 = vadd.f32 %v963, %v1096
      %1098 = vmatprep.mubr.bf16.mxu0 0
      %1099 = vmatmul.mubr.bf16.gmra.mrb[0].mxu0 %v932
      %v1100 = vpop.f32.mrb[0].mxu0
      %v1101 = vadd.f32 %v959, %v1100
      %v1102 = vpop.f32.mrb[0].mxu0
      %v1103 = vadd.f32 %v963, %v1102
      %v1104 = vpop.f32.mrb[0].mxu0
      %v1105 = vadd.f32 %v959, %v1104
      %v1106 = vpop.f32.mrb[0].mxu0
      %v1107 = vadd.f32 %v963, %v1106
      %1108 = vmatprep.mubr.bf16.mxu0 0
      %1109 = vmatmul.mubr.bf16.gmra.mrb[0].mxu0 %v933
      %v1110 = vpop.f32.mrb[0].mxu0
      %v1111 = vadd.f32 %v959, %v1110
      %v1112 = vpop.f32.mrb[0].mxu0
      %v1113 = vadd.f32 %v963, %v1112
      %v1114 = vpop.f32.mrb[0].mxu0
      %v1115 = vadd.f32 %v959, %v1114
      %v1116 = vpop.f32.mrb[0].mxu0
      %v1117 = vadd.f32 %v963, %v1116
      %1118 = vmatprep.mubr.bf16.mxu0 0
      %1119 = vmatmul.mubr.bf16.gmra.mrb[0].mxu0 %v934
      %v1120 = vpop.f32.mrb[0].mxu0
      %v1121 = vadd.f32 %v959, %v1120
      %v1122 = vpop.f32.mrb[0].mxu0
      %v1123 = vadd.f32 %v963, %v1122
      %v1124 = vpop.f32.mrb[0].mxu0
      %v1125 = vadd.f32 %v959, %v1124
      %v1126 = vpop.f32.mrb[0].mxu0
      %v1127 = vadd.f32 %v963, %v1126
      %1128 = vmatprep.mubr.bf16.mxu0 0
      %1129 = vmatmul.mubr.bf16.gmra.mrb[0].mxu0 %v935
      %v1130 = vpop.f32.mrb[0].mxu0
      %v1131 = vadd.f32 %v959, %v1130
      %v1132 = vpop.f32.mrb[0].mxu0
      %v1133 = vadd.f32 %v963, %v1132
      %v1134 = vpop.f32.mrb[0].mxu0
      %v1135 = vadd.f32 %v959, %v1134
      %v1136 = vpop.f32.mrb[0].mxu0
      %v1137 = vadd.f32 %v963, %v1136
      %1138 = vmatprep.mubr.bf16.mxu0 0
      %1139 = vmatmul.mubr.bf16.gmra.mrb[0].mxu0 %v936
      %v1140 = vpop.f32.mrb[0].mxu0
      %v1141 = vadd.f32 %v959, %v1140
      %v1142 = vpop.f32.mrb[0].mxu0
      %v1143 = vadd.f32 %v963, %v1142
      %v1144 = vpop.f32.mrb[0].mxu0
      %v1145 = vadd.f32 %v959, %v1144
      %v1146 = vpop.f32.mrb[0].mxu0
      %v1147 = vadd.f32 %v963, %v1146
      %1148 = vmatprep.mubr.bf16.mxu0 0
      %1149 = vmatmul.mubr.bf16.gmra.mrb[0].mxu0 %v937
      %v1150 = vpop.f32.mrb[0].mxu0
      %v1151 = vadd.f32 %v959, %v1150
      %v1152 = vpop.f32.mrb[0].mxu0
      %v1153 = vadd.f32 %v963, %v1152
      %v1154 = vpop.f32.mrb[0].mxu0
      %v1155 = vadd.f32 %v959, %v1154
      %v1156 = vpop.f32.mrb[0].mxu0
      %v1157 = vadd.f32 %v963, %v1156
      %1158 = vdwg.mxu0
      %v1159 = vld [vmem:[#allocation2] sm:$0xff]
      %v1160 = vld [vmem:[#allocation2 + $0x8] sm:$0xff]
      %v1161 = vld [vmem:[#allocation2 + $0x10] sm:$0xff]
      %v1162 = vld [vmem:[#allocation2 + $0x18] sm:$0xff]
      %v1163 = vld [vmem:[#allocation2 + $0x20] sm:$0xff]
      %v1164 = vld [vmem:[#allocation2 + $0x28] sm:$0xff]
      %v1165 = vld [vmem:[#allocation2 + $0x30] sm:$0xff]
      %v1166 = vld [vmem:[#allocation2 + $0x38] sm:$0xff]
      %v1167 = vld [vmem:[#allocation2 + $0x40] sm:$0xff]
      %v1168 = vld [vmem:[#allocation2 + $0x48] sm:$0xff]
      %v1169 = vld [vmem:[#allocation2 + $0x50] sm:$0xff]
      %v1170 = vld [vmem:[#allocation2 + $0x58] sm:$0xff]
      %v1171 = vld [vmem:[#allocation2 + $0x60] sm:$0xff]
      %v1172 = vld [vmem:[#allocation2 + $0x68] sm:$0xff]
      %v1173 = vld [vmem:[#allocation2 + $0x70] sm:$0xff]
      %v1174 = vld [vmem:[#allocation2 + $0x78] sm:$0xff]
      %v1175 = vpack.c.bf16 %v1160, %v1159
      %v1176 = vpack.c.bf16 %v1162, %v1161
      %v1177 = vpack.c.bf16 %v1164, %v1163
      %v1178 = vpack.c.bf16 %v1166, %v1165
      %v1179 = vpack.c.bf16 %v1168, %v1167
      %v1180 = vpack.c.bf16 %v1170, %v1169
      %v1181 = vpack.c.bf16 %v1172, %v1171
      %v1182 = vpack.c.bf16 %v1174, %v1173
      %v1183 = vpack.c.bf16 %v1085, %v1081
      %v1184 = vpack.c.bf16 %v1095, %v1091
      %v1185 = vpack.c.bf16 %v1105, %v1101
      %v1186 = vpack.c.bf16 %v1115, %v1111
      %v1187 = vpack.c.bf16 %v1125, %v1121
      %v1188 = vpack.c.bf16 %v1135, %v1131
      %v1189 = vpack.c.bf16 %v1145, %v1141
      %v1190 = vpack.c.bf16 %v1155, %v1151
      %1191 = vmatprep.subr.bf16.mxu0 0
      %1192 = vmatpush1.bf16.xpose.msra.mxu0 %v1183
      %1193 = vmatprep.subr.bf16.mxu0 0
      %1194 = vmatpush1.bf16.xpose.msra.mxu0 %v1184
      %1195 = vmatprep.subr.bf16.mxu0 0
      %1196 = vmatpush1.bf16.xpose.msra.mxu0 %v1185
      %1197 = vmatprep.subr.bf16.mxu0 0
      %1198 = vmatpush1.bf16.xpose.msra.mxu0 %v1186
      %1199 = vmatprep.subr.bf16.mxu0 0
      %1200 = vmatpush1.bf16.xpose.msra.mxu0 %v1187
      %1201 = vmatprep.subr.bf16.mxu0 0
      %1202 = vmatpush1.bf16.xpose.msra.mxu0 %v1188
      %1203 = vmatprep.subr.bf16.mxu0 0
      %1204 = vmatpush1.bf16.xpose.msra.mxu0 %v1189
      %1205 = vmatprep.subr.bf16.mxu0 0
      %1206 = vmatpush1.bf16.xpose.msra.mxu0 %v1190
      %1207 = vmatprep.subr.bf16.mxu0 0
      %1208 = vmatpush1.bf16.xpose.msra.mxu0 0
      %1209 = vmatprep.subr.bf16.mxu0 0
      %1210 = vmatpush1.bf16.xpose.msra.mxu0 0
      %1211 = vmatprep.subr.bf16.mxu0 0
      %1212 = vmatpush1.bf16.xpose.msra.mxu0 0
      %1213 = vmatprep.subr.bf16.mxu0 0
      %1214 = vmatpush1.bf16.xpose.msra.mxu0 0
      %1215 = vmatprep.subr.bf16.mxu0 0
      %1216 = vmatpush1.bf16.xpose.msra.mxu0 0
      %1217 = vmatprep.subr.bf16.mxu0 0
      %1218 = vmatpush1.bf16.xpose.msra.mxu0 0
      %1219 = vmatprep.subr.bf16.mxu0 0
      %1220 = vmatpush1.bf16.xpose.msra.mxu0 0
      %1221 = vmatprep.subr.bf16.mxu0 0
      %1222 = vmatpush1.bf16.xpose.msra.mxu0 0
      %1223 = vmatprep.mubr.bf16.mxu0 0
      %1224 = vmatmul.mubr.bf16.gmra.mrb[0].mxu0 %v1175
      %v1225 = vpop.f32.mrb[0].mxu0
      %v1226 = vadd.f32 0.0, %v1225
      %v1227 = vpop.f32.mrb[0].mxu0
      %v1228 = vpop.f32.mrb[0].mxu0
      %v1229 = vadd.f32 0.0, %v1228
      %v1230 = vpop.f32.mrb[0].mxu0
      %1231 = vmatprep.mubr.bf16.mxu0 0
      %1232 = vmatmul.mubr.bf16.gmra.mrb[0].mxu0 %v1176
      %v1233 = vpop.f32.mrb[0].mxu0
      %v1234 = vadd.f32 0.0, %v1233
      %v1235 = vpop.f32.mrb[0].mxu0
      %v1236 = vpop.f32.mrb[0].mxu0
      %v1237 = vadd.f32 0.0, %v1236
      %v1238 = vpop.f32.mrb[0].mxu0
      %1239 = vmatprep.mubr.bf16.mxu0 0
      %1240 = vmatmul.mubr.bf16.gmra.mrb[0].mxu0 %v1177
      %v1241 = vpop.f32.mrb[0].mxu0
      %v1242 = vadd.f32 0.0, %v1241
      %v1243 = vpop.f32.mrb[0].mxu0
      %v1244 = vpop.f32.mrb[0].mxu0
      %v1245 = vadd.f32 0.0, %v1244
      %v1246 = vpop.f32.mrb[0].mxu0
      %1247 = vmatprep.mubr.bf16.mxu0 0
      %1248 = vmatmul.mubr.bf16.gmra.mrb[0].mxu0 %v1178
      %v1249 = vpop.f32.mrb[0].mxu0
      %v1250 = vadd.f32 0.0, %v1249
      %v1251 = vpop.f32.mrb[0].mxu0
      %v1252 = vpop.f32.mrb[0].mxu0
      %v1253 = vadd.f32 0.0, %v1252
      %v1254 = vpop.f32.mrb[0].mxu0
      %1255 = vmatprep.mubr.bf16.mxu0 0
      %1256 = vmatmul.mubr.bf16.gmra.mrb[0].mxu0 %v1179
      %v1257 = vpop.f32.mrb[0].mxu0
      %v1258 = vadd.f32 0.0, %v1257
      %v1259 = vpop.f32.mrb[0].mxu0
      %v1260 = vpop.f32.mrb[0].mxu0
      %v1261 = vadd.f32 0.0, %v1260
      %v1262 = vpop.f32.mrb[0].mxu0
      %1263 = vmatprep.mubr.bf16.mxu0 0
      %1264 = vmatmul.mubr.bf16.gmra.mrb[0].mxu0 %v1180
      %v1265 = vpop.f32.mrb[0].mxu0
      %v1266 = vadd.f32 0.0, %v1265
      %v1267 = vpop.f32.mrb[0].mxu0
      %v1268 = vpop.f32.mrb[0].mxu0
      %v1269 = vadd.f32 0.0, %v1268
      %v1270 = vpop.f32.mrb[0].mxu0
      %1271 = vmatprep.mubr.bf16.mxu0 0
      %1272 = vmatmul.mubr.bf16.gmra.mrb[0].mxu0 %v1181
      %v1273 = vpop.f32.mrb[0].mxu0
      %v1274 = vadd.f32 0.0, %v1273
      %v1275 = vpop.f32.mrb[0].mxu0
      %v1276 = vpop.f32.mrb[0].mxu0
      %v1277 = vadd.f32 0.0, %v1276
      %v1278 = vpop.f32.mrb[0].mxu0
      %1279 = vmatprep.mubr.bf16.mxu0 0
      %1280 = vmatmul.mubr.bf16.gmra.mrb[0].mxu0 %v1182
      %v1281 = vpop.f32.mrb[0].mxu0
      %v1282 = vadd.f32 0.0, %v1281
      %v1283 = vpop.f32.mrb[0].mxu0
      %v1284 = vpop.f32.mrb[0].mxu0
      %v1285 = vadd.f32 0.0, %v1284
      %v1286 = vpop.f32.mrb[0].mxu0
      %1287 = vdwg.mxu0
      %v1288 = vld [vmem:[%s632] sm:$0xff]
      %v1289 = vld [vmem:[%s632 + $0x8] sm:$0xff]
      %v1290 = vld [vmem:[%s632 + $0x10] sm:$0xff]
      %v1291 = vld [vmem:[%s632 + $0x18] sm:$0xff]
      %v1292 = vld [vmem:[%s632 + $0x20] sm:$0xff]
      %v1293 = vld [vmem:[%s632 + $0x28] sm:$0xff]
      %v1294 = vld [vmem:[%s632 + $0x30] sm:$0xff]
      %v1295 = vld [vmem:[%s632 + $0x38] sm:$0xff]
      %v1296 = vld [vmem:[%s632 + $0x40] sm:$0xff]
      %v1297 = vld [vmem:[%s632 + $0x48] sm:$0xff]
      %v1298 = vld [vmem:[%s632 + $0x50] sm:$0xff]
      %v1299 = vld [vmem:[%s632 + $0x58] sm:$0xff]
      %v1300 = vld [vmem:[%s632 + $0x60] sm:$0xff]
      %v1301 = vld [vmem:[%s632 + $0x68] sm:$0xff]
      %v1302 = vld [vmem:[%s632 + $0x70] sm:$0xff]
      %v1303 = vld [vmem:[%s632 + $0x78] sm:$0xff]
      %v1304 = vld [vmem:[%s638] sm:$0xff]
      %v1305 = vld [vmem:[%s638 + $0x8] sm:$0xff]
      %v1306 = vld [vmem:[%s638 + $0x10] sm:$0xff]
      %v1307 = vld [vmem:[%s638 + $0x18] sm:$0xff]
      %v1308 = vld [vmem:[%s638 + $0x20] sm:$0xff]
      %v1309 = vld [vmem:[%s638 + $0x28] sm:$0xff]
      %v1310 = vld [vmem:[%s638 + $0x30] sm:$0xff]
      %v1311 = vld [vmem:[%s638 + $0x38] sm:$0xff]
      %v1312 = vld [vmem:[%s638 + $0x40] sm:$0xff]
      %v1313 = vld [vmem:[%s638 + $0x48] sm:$0xff]
      %v1314 = vld [vmem:[%s638 + $0x50] sm:$0xff]
      %v1315 = vld [vmem:[%s638 + $0x58] sm:$0xff]
      %v1316 = vld [vmem:[%s638 + $0x60] sm:$0xff]
      %v1317 = vld [vmem:[%s638 + $0x68] sm:$0xff]
      %v1318 = vld [vmem:[%s638 + $0x70] sm:$0xff]
      %v1319 = vld [vmem:[%s638 + $0x78] sm:$0xff]
      %1320 = vmatprep.subr.mxu0 0.0
      %1321 = vmatpush1.xpose.msra.mxu0 %v1304
      %1322 = vmatprep.subr.mxu0 0.0
      %1323 = vmatpush1.xpose.msra.mxu0 %v1305
      %1324 = vmatprep.subr.mxu0 0.0
      %1325 = vmatpush1.xpose.msra.mxu0 %v1306
      %1326 = vmatprep.subr.mxu0 0.0
      %1327 = vmatpush1.xpose.msra.mxu0 %v1307
      %1328 = vmatprep.subr.mxu0 0.0
      %1329 = vmatpush1.xpose.msra.mxu0 %v1308
      %1330 = vmatprep.subr.mxu0 0.0
      %1331 = vmatpush1.xpose.msra.mxu0 %v1309
      %1332 = vmatprep.subr.mxu0 0.0
      %1333 = vmatpush1.xpose.msra.mxu0 %v1310
      %1334 = vmatprep.subr.mxu0 0.0
      %1335 = vmatpush1.xpose.msra.mxu0 %v1311
      %1336 = vmatprep.subr.mxu0 0.0
      %1337 = vmatpush1.xpose.msra.mxu0 %v1312
      %1338 = vmatprep.subr.mxu0 0.0
      %1339 = vmatpush1.xpose.msra.mxu0 %v1313
      %1340 = vmatprep.subr.mxu0 0.0
      %1341 = vmatpush1.xpose.msra.mxu0 %v1314
      %1342 = vmatprep.subr.mxu0 0.0
      %1343 = vmatpush1.xpose.msra.mxu0 %v1315
      %1344 = vmatprep.subr.mxu0 0.0
      %1345 = vmatpush1.xpose.msra.mxu0 %v1316
      %1346 = vmatprep.subr.mxu0 0.0
      %1347 = vmatpush1.xpose.msra.mxu0 %v1317
      %1348 = vmatprep.subr.mxu0 0.0
      %1349 = vmatpush1.xpose.msra.mxu0 %v1318
      %1350 = vmatprep.subr.mxu0 0.0
      %1351 = vmatpush1.xpose.msra.mxu0 %v1319
      %1352 = vmatprep.subr.mxu0 0.0
      %1353 = vmatpush1.xpose.msra.mxu0 0.0
      %1354 = vmatprep.subr.mxu0 0.0
      %1355 = vmatpush1.xpose.msra.mxu0 0.0
      %1356 = vmatprep.subr.mxu0 0.0
      %1357 = vmatpush1.xpose.msra.mxu0 0.0
      %1358 = vmatprep.subr.mxu0 0.0
      %1359 = vmatpush1.xpose.msra.mxu0 0.0
      %1360 = vmatprep.subr.mxu0 0.0
      %1361 = vmatpush1.xpose.msra.mxu0 0.0
      %1362 = vmatprep.subr.mxu0 0.0
      %1363 = vmatpush1.xpose.msra.mxu0 0.0
      %1364 = vmatprep.subr.mxu0 0.0
      %1365 = vmatpush1.xpose.msra.mxu0 0.0
      %1366 = vmatprep.subr.mxu0 0.0
      %1367 = vmatpush1.xpose.msra.mxu0 0.0
      %1368 = vmatprep.subr.mxu0 0.0
      %1369 = vmatpush1.xpose.msra.mxu0 0.0
      %1370 = vmatprep.subr.mxu0 0.0
      %1371 = vmatpush1.xpose.msra.mxu0 0.0
      %1372 = vmatprep.subr.mxu0 0.0
      %1373 = vmatpush1.xpose.msra.mxu0 0.0
      %1374 = vmatprep.subr.mxu0 0.0
      %1375 = vmatpush1.xpose.msra.mxu0 0.0
      %1376 = vmatprep.subr.mxu0 0.0
      %1377 = vmatpush1.xpose.msra.mxu0 0.0
      %1378 = vmatprep.subr.mxu0 0.0
      %1379 = vmatpush1.xpose.msra.mxu0 0.0
      %1380 = vmatprep.subr.mxu0 0.0
      %1381 = vmatpush1.xpose.msra.mxu0 0.0
      %1382 = vmatprep.subr.mxu0 0.0
      %1383 = vmatpush1.xpose.msra.mxu0 0.0
      %1384 = vmatprep.mubr.f32.mxu0 0.0
      %1385 = vmatmul.mubr.f32.gmra.mrb[0].mxu0 %v1288
      %v1386 = vpop.f32.mrb[0].mxu0
      %v1387 = vadd.f32 0.0, %v1386
      %v1388 = vpop.f32.mrb[0].mxu0
      %1389 = vmatprep.mubr.f32.mxu0 0.0
      %1390 = vmatmul.mubr.f32.gmra.mrb[0].mxu0 %v1289
      %v1391 = vpop.f32.mrb[0].mxu0
      %v1392 = vadd.f32 0.0, %v1391
      %v1393 = vpop.f32.mrb[0].mxu0
      %1394 = vmatprep.mubr.f32.mxu0 0.0
      %1395 = vmatmul.mubr.f32.gmra.mrb[0].mxu0 %v1290
      %v1396 = vpop.f32.mrb[0].mxu0
      %v1397 = vadd.f32 0.0, %v1396
      %v1398 = vpop.f32.mrb[0].mxu0
      %1399 = vmatprep.mubr.f32.mxu0 0.0
      %1400 = vmatmul.mubr.f32.gmra.mrb[0].mxu0 %v1291
      %v1401 = vpop.f32.mrb[0].mxu0
      %v1402 = vadd.f32 0.0, %v1401
      %v1403 = vpop.f32.mrb[0].mxu0
      %1404 = vmatprep.mubr.f32.mxu0 0.0
      %1405 = vmatmul.mubr.f32.gmra.mrb[0].mxu0 %v1292
      %v1406 = vpop.f32.mrb[0].mxu0
      %v1407 = vadd.f32 0.0, %v1406
      %v1408 = vpop.f32.mrb[0].mxu0
      %1409 = vmatprep.mubr.f32.mxu0 0.0
      %1410 = vmatmul.mubr.f32.gmra.mrb[0].mxu0 %v1293
      %v1411 = vpop.f32.mrb[0].mxu0
      %v1412 = vadd.f32 0.0, %v1411
      %v1413 = vpop.f32.mrb[0].mxu0
      %1414 = vmatprep.mubr.f32.mxu0 0.0
      %1415 = vmatmul.mubr.f32.gmra.mrb[0].mxu0 %v1294
      %v1416 = vpop.f32.mrb[0].mxu0
      %v1417 = vadd.f32 0.0, %v1416
      %v1418 = vpop.f32.mrb[0].mxu0
      %1419 = vmatprep.mubr.f32.mxu0 0.0
      %1420 = vmatmul.mubr.f32.gmra.mrb[0].mxu0 %v1295
      %v1421 = vpop.f32.mrb[0].mxu0
      %v1422 = vadd.f32 0.0, %v1421
      %v1423 = vpop.f32.mrb[0].mxu0
      %1424 = vmatprep.mubr.f32.mxu0 0.0
      %1425 = vmatmul.mubr.f32.gmra.mrb[0].mxu0 %v1296
      %v1426 = vpop.f32.mrb[0].mxu0
      %v1427 = vadd.f32 0.0, %v1426
      %v1428 = vpop.f32.mrb[0].mxu0
      %1429 = vmatprep.mubr.f32.mxu0 0.0
      %1430 = vmatmul.mubr.f32.gmra.mrb[0].mxu0 %v1297
      %v1431 = vpop.f32.mrb[0].mxu0
      %v1432 = vadd.f32 0.0, %v1431
      %v1433 = vpop.f32.mrb[0].mxu0
      %1434 = vmatprep.mubr.f32.mxu0 0.0
      %1435 = vmatmul.mubr.f32.gmra.mrb[0].mxu0 %v1298
      %v1436 = vpop.f32.mrb[0].mxu0
      %v1437 = vadd.f32 0.0, %v1436
      %v1438 = vpop.f32.mrb[0].mxu0
      %1439 = vmatprep.mubr.f32.mxu0 0.0
      %1440 = vmatmul.mubr.f32.gmra.mrb[0].mxu0 %v1299
      %v1441 = vpop.f32.mrb[0].mxu0
      %v1442 = vadd.f32 0.0, %v1441
      %v1443 = vpop.f32.mrb[0].mxu0
      %1444 = vmatprep.mubr.f32.mxu0 0.0
      %1445 = vmatmul.mubr.f32.gmra.mrb[0].mxu0 %v1300
      %v1446 = vpop.f32.mrb[0].mxu0
      %v1447 = vadd.f32 0.0, %v1446
      %v1448 = vpop.f32.mrb[0].mxu0
      %1449 = vmatprep.mubr.f32.mxu0 0.0
      %1450 = vmatmul.mubr.f32.gmra.mrb[0].mxu0 %v1301
      %v1451 = vpop.f32.mrb[0].mxu0
      %v1452 = vadd.f32 0.0, %v1451
      %v1453 = vpop.f32.mrb[0].mxu0
      %1454 = vmatprep.mubr.f32.mxu0 0.0
      %1455 = vmatmul.mubr.f32.gmra.mrb[0].mxu0 %v1302
      %v1456 = vpop.f32.mrb[0].mxu0
      %v1457 = vadd.f32 0.0, %v1456
      %v1458 = vpop.f32.mrb[0].mxu0
      %1459 = vmatprep.mubr.f32.mxu0 0.0
      %1460 = vmatmul.mubr.f32.gmra.mrb[0].mxu0 %v1303
      %v1461 = vpop.f32.mrb[0].mxu0
      %v1462 = vadd.f32 0.0, %v1461
      %v1463 = vpop.f32.mrb[0].mxu0
      %1464 = vdwg.mxu0
      %v1465 = vlaneseq
      %v1466 = vand.u32 %v1465, 127
      %s1467 = smul.u32 %s33, 128
      %v1468 = vstv %s1467
      %v1469 = vadd.s32 %v1466, %v1468
      %vm1470 = vcmp.le.f32.partialorder %v1387, 100.0
      %vm1471 = vcmp.le.f32.partialorder %v1392, 100.0
      %vm1472 = vcmp.le.f32.partialorder %v1397, 100.0
      %vm1473 = vcmp.le.f32.partialorder %v1402, 100.0
      %vm1474 = vcmp.le.f32.partialorder %v1407, 100.0
      %vm1475 = vcmp.le.f32.partialorder %v1412, 100.0
      %vm1476 = vcmp.le.f32.partialorder %v1417, 100.0
      %vm1477 = vcmp.le.f32.partialorder %v1422, 100.0
      %vm1478 = vcmp.le.f32.partialorder %v1427, 100.0
      %vm1479 = vcmp.le.f32.partialorder %v1432, 100.0
      %vm1480 = vcmp.le.f32.partialorder %v1437, 100.0
      %vm1481 = vcmp.le.f32.partialorder %v1442, 100.0
      %vm1482 = vcmp.le.f32.partialorder %v1447, 100.0
      %vm1483 = vcmp.le.f32.partialorder %v1452, 100.0
      %vm1484 = vcmp.le.f32.partialorder %v1457, 100.0
      %vm1485 = vcmp.le.f32.partialorder %v1462, 100.0
      %vm1486 = vcmp.lt.s32.totalorder %v1469, 200
      %vm1487 = vmand %vm1470, %vm1486
      %vm1488 = vmand %vm1471, %vm1486
      %vm1489 = vmand %vm1472, %vm1486
      %vm1490 = vmand %vm1473, %vm1486
      %vm1491 = vmand %vm1474, %vm1486
      %vm1492 = vmand %vm1475, %vm1486
      %vm1493 = vmand %vm1476, %vm1486
      %vm1494 = vmand %vm1477, %vm1486
      %vm1495 = vmand %vm1478, %vm1486
      %vm1496 = vmand %vm1479, %vm1486
      %vm1497 = vmand %vm1480, %vm1486
      %vm1498 = vmand %vm1481, %vm1486
      %vm1499 = vmand %vm1482, %vm1486
      %vm1500 = vmand %vm1483, %vm1486
      %vm1501 = vmand %vm1484, %vm1486
      %vm1502 = vmand %vm1485, %vm1486
      %v1503 = vsel %vm1487, %v1226, -1e+30
      %v1504 = vsel %vm1488, %v1229, -1e+30
      %v1505 = vsel %vm1489, %v1234, -1e+30
      %v1506 = vsel %vm1490, %v1237, -1e+30
      %v1507 = vsel %vm1491, %v1242, -1e+30
      %v1508 = vsel %vm1492, %v1245, -1e+30
      %v1509 = vsel %vm1493, %v1250, -1e+30
      %v1510 = vsel %vm1494, %v1253, -1e+30
      %v1511 = vsel %vm1495, %v1258, -1e+30
      %v1512 = vsel %vm1496, %v1261, -1e+30
      %v1513 = vsel %vm1497, %v1266, -1e+30
      %v1514 = vsel %vm1498, %v1269, -1e+30
      %v1515 = vsel %vm1499, %v1274, -1e+30
      %v1516 = vsel %vm1500, %v1277, -1e+30
      %v1517 = vsel %vm1501, %v1282, -1e+30
      %v1518 = vsel %vm1502, %v1285, -1e+30
      %v1519 = vld [vmem:[#allocation3] sm:$0xff]
      %v1520 = vld [vmem:[#allocation3 + $0x8] sm:$0xff]
      %v1521 = vld [vmem:[#allocation3 + $0x10] sm:$0xff]
      %v1522 = vld [vmem:[#allocation3 + $0x18] sm:$0xff]
      %v1523 = vld [vmem:[#allocation3 + $0x20] sm:$0xff]
      %v1524 = vld [vmem:[#allocation3 + $0x28] sm:$0xff]
      %v1525 = vld [vmem:[#allocation3 + $0x30] sm:$0xff]
      %v1526 = vld [vmem:[#allocation3 + $0x38] sm:$0xff]
      %v1527 = vld [vmem:[#allocation3 + $0x40] sm:$0xff]
      %v1528 = vld [vmem:[#allocation3 + $0x48] sm:$0xff]
      %v1529 = vld [vmem:[#allocation3 + $0x50] sm:$0xff]
      %v1530 = vld [vmem:[#allocation3 + $0x58] sm:$0xff]
      %v1531 = vld [vmem:[#allocation3 + $0x60] sm:$0xff]
      %v1532 = vld [vmem:[#allocation3 + $0x68] sm:$0xff]
      %v1533 = vld [vmem:[#allocation3 + $0x70] sm:$0xff]
      %v1534 = vld [vmem:[#allocation3 + $0x78] sm:$0xff]
      %1535 = vmax.xlane.f32.xlu0 %v1503
      %v1536 = vpop.xlane.xlu0 %1535
      %1537 = vmax.xlane.f32.xlu0 %v1504
      %v1538 = vpop.xlane.xlu0 %1537
      %1539 = vmax.xlane.f32.xlu0 %v1505
      %v1540 = vpop.xlane.xlu0 %1539
      %1541 = vmax.xlane.f32.xlu0 %v1506
      %v1542 = vpop.xlane.xlu0 %1541
      %1543 = vmax.xlane.f32.xlu0 %v1507
      %v1544 = vpop.xlane.xlu0 %1543
      %1545 = vmax.xlane.f32.xlu0 %v1508
      %v1546 = vpop.xlane.xlu0 %1545
      %1547 = vmax.xlane.f32.xlu0 %v1509
      %v1548 = vpop.xlane.xlu0 %1547
      %1549 = vmax.xlane.f32.xlu0 %v1510
      %v1550 = vpop.xlane.xlu0 %1549
      %1551 = vmax.xlane.f32.xlu0 %v1511
      %v1552 = vpop.xlane.xlu0 %1551
      %1553 = vmax.xlane.f32.xlu0 %v1512
      %v1554 = vpop.xlane.xlu0 %1553
      %1555 = vmax.xlane.f32.xlu0 %v1513
      %v1556 = vpop.xlane.xlu0 %1555
      %1557 = vmax.xlane.f32.xlu0 %v1514
      %v1558 = vpop.xlane.xlu0 %1557
      %1559 = vmax.xlane.f32.xlu0 %v1515
      %v1560 = vpop.xlane.xlu0 %1559
      %1561 = vmax.xlane.f32.xlu0 %v1516
      %v1562 = vpop.xlane.xlu0 %1561
      %1563 = vmax.xlane.f32.xlu0 %v1517
      %v1564 = vpop.xlane.xlu0 %1563
      %1565 = vmax.xlane.f32.xlu0 %v1518
      %v1566 = vpop.xlane.xlu0 %1565
      %v1567 = vmax.f32 %v1519, %v1536
      %v1568 = vmax.f32 %v1520, %v1538
      %v1569 = vmax.f32 %v1521, %v1540
      %v1570 = vmax.f32 %v1522, %v1542
      %v1571 = vmax.f32 %v1523, %v1544
      %v1572 = vmax.f32 %v1524, %v1546
      %v1573 = vmax.f32 %v1525, %v1548
      %v1574 = vmax.f32 %v1526, %v1550
      %v1575 = vmax.f32 %v1527, %v1552
      %v1576 = vmax.f32 %v1528, %v1554
      %v1577 = vmax.f32 %v1529, %v1556
      %v1578 = vmax.f32 %v1530, %v1558
      %v1579 = vmax.f32 %v1531, %v1560
      %v1580 = vmax.f32 %v1532, %v1562
      %v1581 = vmax.f32 %v1533, %v1564
      %v1582 = vmax.f32 %v1534, %v1566
      %v1583 = vsub.f32 %v1519, %v1567
      %v1584 = vsub.f32 %v1520, %v1568
      %v1585 = vsub.f32 %v1521, %v1569
      %v1586 = vsub.f32 %v1522, %v1570
      %v1587 = vsub.f32 %v1523, %v1571
      %v1588 = vsub.f32 %v1524, %v1572
      %v1589 = vsub.f32 %v1525, %v1573
      %v1590 = vsub.f32 %v1526, %v1574
      %v1591 = vsub.f32 %v1527, %v1575
      %v1592 = vsub.f32 %v1528, %v1576
      %v1593 = vsub.f32 %v1529, %v1577
      %v1594 = vsub.f32 %v1530, %v1578
      %v1595 = vsub.f32 %v1531, %v1579
      %v1596 = vsub.f32 %v1532, %v1580
      %v1597 = vsub.f32 %v1533, %v1581
      %v1598 = vsub.f32 %v1534, %v1582
      %v1599 = vmul.f32 %v1583, 1.442695
      %v1600 = vpow.pop %v1599
      %v1601 = vmul.f32 %v1584, 1.442695
      %v1602 = vpow.pop %v1601
      %v1603 = vmul.f32 %v1585, 1.442695
      %v1604 = vpow.pop %v1603
      %v1605 = vmul.f32 %v1586, 1.442695
      %v1606 = vpow.pop %v1605
      %v1607 = vmul.f32 %v1587, 1.442695
      %v1608 = vpow.pop %v1607
      %v1609 = vmul.f32 %v1588, 1.442695
      %v1610 = vpow.pop %v1609
      %v1611 = vmul.f32 %v1589, 1.442695
      %v1612 = vpow.pop %v1611
      %v1613 = vmul.f32 %v1590, 1.442695
      %v1614 = vpow.pop %v1613
      %v1615 = vmul.f32 %v1591, 1.442695
      %v1616 = vpow.pop %v1615
      %v1617 = vmul.f32 %v1592, 1.442695
      %v1618 = vpow.pop %v1617
      %v1619 = vmul.f32 %v1593, 1.442695
      %v1620 = vpow.pop %v1619
      %v1621 = vmul.f32 %v1594, 1.442695
      %v1622 = vpow.pop %v1621
      %v1623 = vmul.f32 %v1595, 1.442695
      %v1624 = vpow.pop %v1623
      %v1625 = vmul.f32 %v1596, 1.442695
      %v1626 = vpow.pop %v1625
      %v1627 = vmul.f32 %v1597, 1.442695
      %v1628 = vpow.pop %v1627
      %v1629 = vmul.f32 %v1598, 1.442695
      %v1630 = vpow.pop %v1629
      %1632 = vset.pattern.permute.xlu0 0
      %1633 = vperm.xlu0 %1632, %v1567
      %v1634 = vpop.permute.xlu0 %1633
      %1637 = vset.pattern.permute.xlu0 0
      %1638 = vperm.xlu0 %1637, %v1568
      %v1639 = vpop.permute.xlu0 %1638
      %1642 = vset.pattern.permute.xlu0 0
      %1643 = vperm.xlu0 %1642, %v1569
      %v1644 = vpop.permute.xlu0 %1643
      %1647 = vset.pattern.permute.xlu0 0
      %1648 = vperm.xlu0 %1647, %v1570
      %v1649 = vpop.permute.xlu0 %1648
      %1652 = vset.pattern.permute.xlu0 0
      %1653 = vperm.xlu0 %1652, %v1571
      %v1654 = vpop.permute.xlu0 %1653
      %1657 = vset.pattern.permute.xlu0 0
      %1658 = vperm.xlu0 %1657, %v1572
      %v1659 = vpop.permute.xlu0 %1658
      %1662 = vset.pattern.permute.xlu0 0
      %1663 = vperm.xlu0 %1662, %v1573
      %v1664 = vpop.permute.xlu0 %1663
      %1667 = vset.pattern.permute.xlu0 0
      %1668 = vperm.xlu0 %1667, %v1574
      %v1669 = vpop.permute.xlu0 %1668
      %1672 = vset.pattern.permute.xlu0 0
      %1673 = vperm.xlu0 %1672, %v1575
      %v1674 = vpop.permute.xlu0 %1673
      %1677 = vset.pattern.permute.xlu0 0
      %1678 = vperm.xlu0 %1677, %v1576
      %v1679 = vpop.permute.xlu0 %1678
      %1682 = vset.pattern.permute.xlu0 0
      %1683 = vperm.xlu0 %1682, %v1577
      %v1684 = vpop.permute.xlu0 %1683
      %1687 = vset.pattern.permute.xlu0 0
      %1688 = vperm.xlu0 %1687, %v1578
      %v1689 = vpop.permute.xlu0 %1688
      %1692 = vset.pattern.permute.xlu0 0
      %1693 = vperm.xlu0 %1692, %v1579
      %v1694 = vpop.permute.xlu0 %1693
      %1697 = vset.pattern.permute.xlu0 0
      %1698 = vperm.xlu0 %1697, %v1580
      %v1699 = vpop.permute.xlu0 %1698
      %1702 = vset.pattern.permute.xlu0 0
      %1703 = vperm.xlu0 %1702, %v1581
      %v1704 = vpop.permute.xlu0 %1703
      %1707 = vset.pattern.permute.xlu0 0
      %1708 = vperm.xlu0 %1707, %v1582
      %v1709 = vpop.permute.xlu0 %1708
      %v1711 = vsub.f32 %v1503, %v1634
      %v1712 = vsub.f32 %v1504, %v1639
      %v1713 = vsub.f32 %v1505, %v1644
      %v1714 = vsub.f32 %v1506, %v1649
      %v1715 = vsub.f32 %v1507, %v1654
      %v1716 = vsub.f32 %v1508, %v1659
      %v1717 = vsub.f32 %v1509, %v1664
      %v1718 = vsub.f32 %v1510, %v1669
      %v1719 = vsub.f32 %v1511, %v1674
      %v1720 = vsub.f32 %v1512, %v1679
      %v1721 = vsub.f32 %v1513, %v1684
      %v1722 = vsub.f32 %v1514, %v1689
      %v1723 = vsub.f32 %v1515, %v1694
      %v1724 = vsub.f32 %v1516, %v1699
      %v1725 = vsub.f32 %v1517, %v1704
      %v1726 = vsub.f32 %v1518, %v1709
      %v1727 = vmul.f32 %v1711, 1.442695
      %v1728 = vpow.pop %v1727
      %v1729 = vmul.f32 %v1712, 1.442695
      %v1730 = vpow.pop %v1729
      %v1731 = vmul.f32 %v1713, 1.442695
      %v1732 = vpow.pop %v1731
      %v1733 = vmul.f32 %v1714, 1.442695
      %v1734 = vpow.pop %v1733
      %v1735 = vmul.f32 %v1715, 1.442695
      %v1736 = vpow.pop %v1735
      %v1737 = vmul.f32 %v1716, 1.442695
      %v1738 = vpow.pop %v1737
      %v1739 = vmul.f32 %v1717, 1.442695
      %v1740 = vpow.pop %v1739
      %v1741 = vmul.f32 %v1718, 1.442695
      %v1742 = vpow.pop %v1741
      %v1743 = vmul.f32 %v1719, 1.442695
      %v1744 = vpow.pop %v1743
      %v1745 = vmul.f32 %v1720, 1.442695
      %v1746 = vpow.pop %v1745
      %v1747 = vmul.f32 %v1721, 1.442695
      %v1748 = vpow.pop %v1747
      %v1749 = vmul.f32 %v1722, 1.442695
      %v1750 = vpow.pop %v1749
      %v1751 = vmul.f32 %v1723, 1.442695
      %v1752 = vpow.pop %v1751
      %v1753 = vmul.f32 %v1724, 1.442695
      %v1754 = vpow.pop %v1753
      %v1755 = vmul.f32 %v1725, 1.442695
      %v1756 = vpow.pop %v1755
      %v1757 = vmul.f32 %v1726, 1.442695
      %v1758 = vpow.pop %v1757
      %v1759 = vld [vmem:[#allocation4] sm:$0xff]
      %v1760 = vld [vmem:[#allocation4 + $0x8] sm:$0xff]
      %v1761 = vld [vmem:[#allocation4 + $0x10] sm:$0xff]
      %v1762 = vld [vmem:[#allocation4 + $0x18] sm:$0xff]
      %v1763 = vld [vmem:[#allocation4 + $0x20] sm:$0xff]
      %v1764 = vld [vmem:[#allocation4 + $0x28] sm:$0xff]
      %v1765 = vld [vmem:[#allocation4 + $0x30] sm:$0xff]
      %v1766 = vld [vmem:[#allocation4 + $0x38] sm:$0xff]
      %v1767 = vld [vmem:[#allocation4 + $0x40] sm:$0xff]
      %v1768 = vld [vmem:[#allocation4 + $0x48] sm:$0xff]
      %v1769 = vld [vmem:[#allocation4 + $0x50] sm:$0xff]
      %v1770 = vld [vmem:[#allocation4 + $0x58] sm:$0xff]
      %v1771 = vld [vmem:[#allocation4 + $0x60] sm:$0xff]
      %v1772 = vld [vmem:[#allocation4 + $0x68] sm:$0xff]
      %v1773 = vld [vmem:[#allocation4 + $0x70] sm:$0xff]
      %v1774 = vld [vmem:[#allocation4 + $0x78] sm:$0xff]
      %v1775 = vmul.f32 %v1600, %v1759
      %v1776 = vmul.f32 %v1602, %v1760
      %v1777 = vmul.f32 %v1604, %v1761
      %v1778 = vmul.f32 %v1606, %v1762
      %v1779 = vmul.f32 %v1608, %v1763
      %v1780 = vmul.f32 %v1610, %v1764
      %v1781 = vmul.f32 %v1612, %v1765
      %v1782 = vmul.f32 %v1614, %v1766
      %v1783 = vmul.f32 %v1616, %v1767
      %v1784 = vmul.f32 %v1618, %v1768
      %v1785 = vmul.f32 %v1620, %v1769
      %v1786 = vmul.f32 %v1622, %v1770
      %v1787 = vmul.f32 %v1624, %v1771
      %v1788 = vmul.f32 %v1626, %v1772
      %v1789 = vmul.f32 %v1628, %v1773
      %v1790 = vmul.f32 %v1630, %v1774
      %1791 = vadd.xlane.f32.xlu0 %v1728
      %v1792 = vpop.xlane.xlu0 %1791
      %1793 = vadd.xlane.f32.xlu0 %v1730
      %v1794 = vpop.xlane.xlu0 %1793
      %1795 = vadd.xlane.f32.xlu0 %v1732
      %v1796 = vpop.xlane.xlu0 %1795
      %1797 = vadd.xlane.f32.xlu0 %v1734
      %v1798 = vpop.xlane.xlu0 %1797
      %1799 = vadd.xlane.f32.xlu0 %v1736
      %v1800 = vpop.xlane.xlu0 %1799
      %1801 = vadd.xlane.f32.xlu0 %v1738
      %v1802 = vpop.xlane.xlu0 %1801
      %1803 = vadd.xlane.f32.xlu0 %v1740
      %v1804 = vpop.xlane.xlu0 %1803
      %1805 = vadd.xlane.f32.xlu0 %v1742
      %v1806 = vpop.xlane.xlu0 %1805
      %1807 = vadd.xlane.f32.xlu0 %v1744
      %v1808 = vpop.xlane.xlu0 %1807
      %1809 = vadd.xlane.f32.xlu0 %v1746
      %v1810 = vpop.xlane.xlu0 %1809
      %1811 = vadd.xlane.f32.xlu0 %v1748
      %v1812 = vpop.xlane.xlu0 %1811
      %1813 = vadd.xlane.f32.xlu0 %v1750
      %v1814 = vpop.xlane.xlu0 %1813
      %1815 = vadd.xlane.f32.xlu0 %v1752
      %v1816 = vpop.xlane.xlu0 %1815
      %1817 = vadd.xlane.f32.xlu0 %v1754
      %v1818 = vpop.xlane.xlu0 %1817
      %1819 = vadd.xlane.f32.xlu0 %v1756
      %v1820 = vpop.xlane.xlu0 %1819
      %1821 = vadd.xlane.f32.xlu0 %v1758
      %v1822 = vpop.xlane.xlu0 %1821
      %v1823 = vadd.f32 %v1775, %v1792
      %v1824 = vadd.f32 %v1776, %v1794
      %v1825 = vadd.f32 %v1777, %v1796
      %v1826 = vadd.f32 %v1778, %v1798
      %v1827 = vadd.f32 %v1779, %v1800
      %v1828 = vadd.f32 %v1780, %v1802
      %v1829 = vadd.f32 %v1781, %v1804
      %v1830 = vadd.f32 %v1782, %v1806
      %v1831 = vadd.f32 %v1783, %v1808
      %v1832 = vadd.f32 %v1784, %v1810
      %v1833 = vadd.f32 %v1785, %v1812
      %v1834 = vadd.f32 %v1786, %v1814
      %v1835 = vadd.f32 %v1787, %v1816
      %v1836 = vadd.f32 %v1788, %v1818
      %v1837 = vadd.f32 %v1789, %v1820
      %v1838 = vadd.f32 %v1790, %v1822
      %vm1839 = vcmask 7168
      %1840 = vst.msk [vmem:[#allocation4] sm:$0xff] %vm1839, %v1823
      %1841 = vst.msk [vmem:[#allocation4 + $0x8] sm:$0xff] %vm1839, %v1824
      %1842 = vst.msk [vmem:[#allocation4 + $0x10] sm:$0xff] %vm1839, %v1825
      %1843 = vst.msk [vmem:[#allocation4 + $0x18] sm:$0xff] %vm1839, %v1826
      %1844 = vst.msk [vmem:[#allocation4 + $0x20] sm:$0xff] %vm1839, %v1827
      %1845 = vst.msk [vmem:[#allocation4 + $0x28] sm:$0xff] %vm1839, %v1828
      %1846 = vst.msk [vmem:[#allocation4 + $0x30] sm:$0xff] %vm1839, %v1829
      %1847 = vst.msk [vmem:[#allocation4 + $0x38] sm:$0xff] %vm1839, %v1830
      %1848 = vst.msk [vmem:[#allocation4 + $0x40] sm:$0xff] %vm1839, %v1831
      %1849 = vst.msk [vmem:[#allocation4 + $0x48] sm:$0xff] %vm1839, %v1832
      %1850 = vst.msk [vmem:[#allocation4 + $0x50] sm:$0xff] %vm1839, %v1833
      %1851 = vst.msk [vmem:[#allocation4 + $0x58] sm:$0xff] %vm1839, %v1834
      %1852 = vst.msk [vmem:[#allocation4 + $0x60] sm:$0xff] %vm1839, %v1835
      %1853 = vst.msk [vmem:[#allocation4 + $0x68] sm:$0xff] %vm1839, %v1836
      %1854 = vst.msk [vmem:[#allocation4 + $0x70] sm:$0xff] %vm1839, %v1837
      %1855 = vst.msk [vmem:[#allocation4 + $0x78] sm:$0xff] %vm1839, %v1838
      %v1856 = vld [vmem:[#allocation5] sm:$0xff]
      %v1857 = vld [vmem:[#allocation5 + $0x8] sm:$0xff]
      %v1858 = vld [vmem:[#allocation5 + $0x10] sm:$0xff]
      %v1859 = vld [vmem:[#allocation5 + $0x18] sm:$0xff]
      %v1860 = vld [vmem:[#allocation5 + $0x20] sm:$0xff]
      %v1861 = vld [vmem:[#allocation5 + $0x28] sm:$0xff]
      %v1862 = vld [vmem:[#allocation5 + $0x30] sm:$0xff]
      %v1863 = vld [vmem:[#allocation5 + $0x38] sm:$0xff]
      %v1864 = vld [vmem:[#allocation5 + $0x40] sm:$0xff]
      %v1865 = vld [vmem:[#allocation5 + $0x48] sm:$0xff]
      %v1866 = vld [vmem:[#allocation5 + $0x50] sm:$0xff]
      %v1867 = vld [vmem:[#allocation5 + $0x58] sm:$0xff]
      %v1868 = vld [vmem:[#allocation5 + $0x60] sm:$0xff]
      %v1869 = vld [vmem:[#allocation5 + $0x68] sm:$0xff]
      %v1870 = vld [vmem:[#allocation5 + $0x70] sm:$0xff]
      %v1871 = vld [vmem:[#allocation5 + $0x78] sm:$0xff]
      %1873 = vset.pattern.permute.xlu0 0
      %1874 = vperm.xlu0 %1873, %v1600
      %v1875 = vpop.permute.xlu0 %1874
      %1878 = vset.pattern.permute.xlu0 0
      %1879 = vperm.xlu0 %1878, %v1602
      %v1880 = vpop.permute.xlu0 %1879
      %1883 = vset.pattern.permute.xlu0 0
      %1884 = vperm.xlu0 %1883, %v1604
      %v1885 = vpop.permute.xlu0 %1884
      %1888 = vset.pattern.permute.xlu0 0
      %1889 = vperm.xlu0 %1888, %v1606
      %v1890 = vpop.permute.xlu0 %1889
      %1893 = vset.pattern.permute.xlu0 0
      %1894 = vperm.xlu0 %1893, %v1608
      %v1895 = vpop.permute.xlu0 %1894
      %1898 = vset.pattern.permute.xlu0 0
      %1899 = vperm.xlu0 %1898, %v1610
      %v1900 = vpop.permute.xlu0 %1899
      %1903 = vset.pattern.permute.xlu0 0
      %1904 = vperm.xlu0 %1903, %v1612
      %v1905 = vpop.permute.xlu0 %1904
      %1908 = vset.pattern.permute.xlu0 0
      %1909 = vperm.xlu0 %1908, %v1614
      %v1910 = vpop.permute.xlu0 %1909
      %1913 = vset.pattern.permute.xlu0 0
      %1914 = vperm.xlu0 %1913, %v1616
      %v1915 = vpop.permute.xlu0 %1914
      %1918 = vset.pattern.permute.xlu0 0
      %1919 = vperm.xlu0 %1918, %v1618
      %v1920 = vpop.permute.xlu0 %1919
      %1923 = vset.pattern.permute.xlu0 0
      %1924 = vperm.xlu0 %1923, %v1620
      %v1925 = vpop.permute.xlu0 %1924
      %1928 = vset.pattern.permute.xlu0 0
      %1929 = vperm.xlu0 %1928, %v1622
      %v1930 = vpop.permute.xlu0 %1929
      %1933 = vset.pattern.permute.xlu0 0
      %1934 = vperm.xlu0 %1933, %v1624
      %v1935 = vpop.permute.xlu0 %1934
      %1938 = vset.pattern.permute.xlu0 0
      %1939 = vperm.xlu0 %1938, %v1626
      %v1940 = vpop.permute.xlu0 %1939
      %1943 = vset.pattern.permute.xlu0 0
      %1944 = vperm.xlu0 %1943, %v1628
      %v1945 = vpop.permute.xlu0 %1944
      %1948 = vset.pattern.permute.xlu0 0
      %1949 = vperm.xlu0 %1948, %v1630
      %v1950 = vpop.permute.xlu0 %1949
      %v1952 = vmul.f32 %v1875, %v1856
      %v1953 = vmul.f32 %v1880, %v1857
      %v1954 = vmul.f32 %v1885, %v1858
      %v1955 = vmul.f32 %v1890, %v1859
      %v1956 = vmul.f32 %v1895, %v1860
      %v1957 = vmul.f32 %v1900, %v1861
      %v1958 = vmul.f32 %v1905, %v1862
      %v1959 = vmul.f32 %v1910, %v1863
      %v1960 = vmul.f32 %v1915, %v1864
      %v1961 = vmul.f32 %v1920, %v1865
      %v1962 = vmul.f32 %v1925, %v1866
      %v1963 = vmul.f32 %v1930, %v1867
      %v1964 = vmul.f32 %v1935, %v1868
      %v1965 = vmul.f32 %v1940, %v1869
      %v1966 = vmul.f32 %v1945, %v1870
      %v1967 = vmul.f32 %v1950, %v1871
      %v1968 = vpack.c.bf16 %v1730, %v1728
      %v1969 = vpack.c.bf16 %v1734, %v1732
      %v1970 = vpack.c.bf16 %v1738, %v1736
      %v1971 = vpack.c.bf16 %v1742, %v1740
      %v1972 = vpack.c.bf16 %v1746, %v1744
      %v1973 = vpack.c.bf16 %v1750, %v1748
      %v1974 = vpack.c.bf16 %v1754, %v1752
      %v1975 = vpack.c.bf16 %v1758, %v1756
      %v1976 = vpack.c.bf16 %v1087, %v1083
      %v1977 = vpack.c.bf16 %v1097, %v1093
      %v1978 = vpack.c.bf16 %v1107, %v1103
      %v1979 = vpack.c.bf16 %v1117, %v1113
      %v1980 = vpack.c.bf16 %v1127, %v1123
      %v1981 = vpack.c.bf16 %v1137, %v1133
      %v1982 = vpack.c.bf16 %v1147, %v1143
      %v1983 = vpack.c.bf16 %v1157, %v1153
      %1984 = vmatprep.subr.bf16.mxu0 0
      %1985 = vmatpush1.bf16.msra.mxu0 %v1976
      %1986 = vmatprep.subr.bf16.mxu0 0
      %1987 = vmatpush1.bf16.msra.mxu0 %v1977
      %1988 = vmatprep.subr.bf16.mxu0 0
      %1989 = vmatpush1.bf16.msra.mxu0 %v1978
      %1990 = vmatprep.subr.bf16.mxu0 0
      %1991 = vmatpush1.bf16.msra.mxu0 %v1979
      %1992 = vmatprep.subr.bf16.mxu0 0
      %1993 = vmatpush1.bf16.msra.mxu0 %v1980
      %1994 = vmatprep.subr.bf16.mxu0 0
      %1995 = vmatpush1.bf16.msra.mxu0 %v1981
      %1996 = vmatprep.subr.bf16.mxu0 0
      %1997 = vmatpush1.bf16.msra.mxu0 %v1982
      %1998 = vmatprep.subr.bf16.mxu0 0
      %1999 = vmatpush1.bf16.msra.mxu0 %v1983
      %2000 = vmatprep.subr.bf16.mxu0 0
      %2001 = vmatpush1.bf16.msra.mxu0 0
      %2002 = vmatprep.subr.bf16.mxu0 0
      %2003 = vmatpush1.bf16.msra.mxu0 0
      %2004 = vmatprep.subr.bf16.mxu0 0
      %2005 = vmatpush1.bf16.msra.mxu0 0
      %2006 = vmatprep.subr.bf16.mxu0 0
      %2007 = vmatpush1.bf16.msra.mxu0 0
      %2008 = vmatprep.subr.bf16.mxu0 0
      %2009 = vmatpush1.bf16.msra.mxu0 0
      %2010 = vmatprep.subr.bf16.mxu0 0
      %2011 = vmatpush1.bf16.msra.mxu0 0
      %2012 = vmatprep.subr.bf16.mxu0 0
      %2013 = vmatpush1.bf16.msra.mxu0 0
      %2014 = vmatprep.subr.bf16.mxu0 0
      %2015 = vmatpush1.bf16.msra.mxu0 0
      %2016 = vmatprep.mubr.bf16.mxu0 0
      %2017 = vmatmul.mubr.bf16.gmra.mrb[0].mxu0 %v1968
      %v2018 = vpop.f32.mrb[0].mxu0
      %v2019 = vadd.f32 0.0, %v2018
      %v2020 = vpop.f32.mrb[0].mxu0
      %v2021 = vpop.f32.mrb[0].mxu0
      %v2022 = vadd.f32 0.0, %v2021
      %v2023 = vpop.f32.mrb[0].mxu0
      %2024 = vmatprep.mubr.bf16.mxu0 0
      %2025 = vmatmul.mubr.bf16.gmra.mrb[0].mxu0 %v1969
      %v2026 = vpop.f32.mrb[0].mxu0
      %v2027 = vadd.f32 0.0, %v2026
      %v2028 = vpop.f32.mrb[0].mxu0
      %v2029 = vpop.f32.mrb[0].mxu0
      %v2030 = vadd.f32 0.0, %v2029
      %v2031 = vpop.f32.mrb[0].mxu0
      %2032 = vmatprep.mubr.bf16.mxu0 0
      %2033 = vmatmul.mubr.bf16.gmra.mrb[0].mxu0 %v1970
      %v2034 = vpop.f32.mrb[0].mxu0
      %v2035 = vadd.f32 0.0, %v2034
      %v2036 = vpop.f32.mrb[0].mxu0
      %v2037 = vpop.f32.mrb[0].mxu0
      %v2038 = vadd.f32 0.0, %v2037
      %v2039 = vpop.f32.mrb[0].mxu0
      %2040 = vmatprep.mubr.bf16.mxu0 0
      %2041 = vmatmul.mubr.bf16.gmra.mrb[0].mxu0 %v1971
      %v2042 = vpop.f32.mrb[0].mxu0
      %v2043 = vadd.f32 0.0, %v2042
      %v2044 = vpop.f32.mrb[0].mxu0
      %v2045 = vpop.f32.mrb[0].mxu0
      %v2046 = vadd.f32 0.0, %v2045
      %v2047 = vpop.f32.mrb[0].mxu0
      %2048 = vmatprep.mubr.bf16.mxu0 0
      %2049 = vmatmul.mubr.bf16.gmra.mrb[0].mxu0 %v1972
      %v2050 = vpop.f32.mrb[0].mxu0
      %v2051 = vadd.f32 0.0, %v2050
      %v2052 = vpop.f32.mrb[0].mxu0
      %v2053 = vpop.f32.mrb[0].mxu0
      %v2054 = vadd.f32 0.0, %v2053
      %v2055 = vpop.f32.mrb[0].mxu0
      %2056 = vmatprep.mubr.bf16.mxu0 0
      %2057 = vmatmul.mubr.bf16.gmra.mrb[0].mxu0 %v1973
      %v2058 = vpop.f32.mrb[0].mxu0
      %v2059 = vadd.f32 0.0, %v2058
      %v2060 = vpop.f32.mrb[0].mxu0
      %v2061 = vpop.f32.mrb[0].mxu0
      %v2062 = vadd.f32 0.0, %v2061
      %v2063 = vpop.f32.mrb[0].mxu0
      %2064 = vmatprep.mubr.bf16.mxu0 0
      %2065 = vmatmul.mubr.bf16.gmra.mrb[0].mxu0 %v1974
      %v2066 = vpop.f32.mrb[0].mxu0
      %v2067 = vadd.f32 0.0, %v2066
      %v2068 = vpop.f32.mrb[0].mxu0
      %v2069 = vpop.f32.mrb[0].mxu0
      %v2070 = vadd.f32 0.0, %v2069
      %v2071 = vpop.f32.mrb[0].mxu0
      %2072 = vmatprep.mubr.bf16.mxu0 0
      %2073 = vmatmul.mubr.bf16.gmra.mrb[0].mxu0 %v1975
      %v2074 = vpop.f32.mrb[0].mxu0
      %v2075 = vadd.f32 0.0, %v2074
      %v2076 = vpop.f32.mrb[0].mxu0
      %v2077 = vpop.f32.mrb[0].mxu0
      %v2078 = vadd.f32 0.0, %v2077
      %v2079 = vpop.f32.mrb[0].mxu0
      %2080 = vdwg.mxu0
      %v2081 = vadd.f32 %v1952, %v2019
      %v2082 = vadd.f32 %v1953, %v2022
      %v2083 = vadd.f32 %v1954, %v2027
      %v2084 = vadd.f32 %v1955, %v2030
      %v2085 = vadd.f32 %v1956, %v2035
      %v2086 = vadd.f32 %v1957, %v2038
      %v2087 = vadd.f32 %v1958, %v2043
      %v2088 = vadd.f32 %v1959, %v2046
      %v2089 = vadd.f32 %v1960, %v2051
      %v2090 = vadd.f32 %v1961, %v2054
      %v2091 = vadd.f32 %v1962, %v2059
      %v2092 = vadd.f32 %v1963, %v2062
      %v2093 = vadd.f32 %v1964, %v2067
      %v2094 = vadd.f32 %v1965, %v2070
      %v2095 = vadd.f32 %v1966, %v2075
      %v2096 = vadd.f32 %v1967, %v2078
      %2097 = vst [vmem:[#allocation5] sm:$0xff] %v2081
      %2098 = vst [vmem:[#allocation5 + $0x8] sm:$0xff] %v2082
      %2099 = vst [vmem:[#allocation5 + $0x10] sm:$0xff] %v2083
      %2100 = vst [vmem:[#allocation5 + $0x18] sm:$0xff] %v2084
      %2101 = vst [vmem:[#allocation5 + $0x20] sm:$0xff] %v2085
      %2102 = vst [vmem:[#allocation5 + $0x28] sm:$0xff] %v2086
      %2103 = vst [vmem:[#allocation5 + $0x30] sm:$0xff] %v2087
      %2104 = vst [vmem:[#allocation5 + $0x38] sm:$0xff] %v2088
      %2105 = vst [vmem:[#allocation5 + $0x40] sm:$0xff] %v2089
      %2106 = vst [vmem:[#allocation5 + $0x48] sm:$0xff] %v2090
      %2107 = vst [vmem:[#allocation5 + $0x50] sm:$0xff] %v2091
      %2108 = vst [vmem:[#allocation5 + $0x58] sm:$0xff] %v2092
      %2109 = vst [vmem:[#allocation5 + $0x60] sm:$0xff] %v2093
      %2110 = vst [vmem:[#allocation5 + $0x68] sm:$0xff] %v2094
      %2111 = vst [vmem:[#allocation5 + $0x70] sm:$0xff] %v2095
      %2112 = vst [vmem:[#allocation5 + $0x78] sm:$0xff] %v2096
      %2113 = vst.msk [vmem:[#allocation3] sm:$0xff] %vm1839, %v1567
      %2114 = vst.msk [vmem:[#allocation3 + $0x8] sm:$0xff] %vm1839, %v1568
      %2115 = vst.msk [vmem:[#allocation3 + $0x10] sm:$0xff] %vm1839, %v1569
      %2116 = vst.msk [vmem:[#allocation3 + $0x18] sm:$0xff] %vm1839, %v1570
      %2117 = vst.msk [vmem:[#allocation3 + $0x20] sm:$0xff] %vm1839, %v1571
      %2118 = vst.msk [vmem:[#allocation3 + $0x28] sm:$0xff] %vm1839, %v1572
      %2119 = vst.msk [vmem:[#allocation3 + $0x30] sm:$0xff] %vm1839, %v1573
      %2120 = vst.msk [vmem:[#allocation3 + $0x38] sm:$0xff] %vm1839, %v1574
      %2121 = vst.msk [vmem:[#allocation3 + $0x40] sm:$0xff] %vm1839, %v1575
      %2122 = vst.msk [vmem:[#allocation3 + $0x48] sm:$0xff] %vm1839, %v1576
      %2123 = vst.msk [vmem:[#allocation3 + $0x50] sm:$0xff] %vm1839, %v1577
      %2124 = vst.msk [vmem:[#allocation3 + $0x58] sm:$0xff] %vm1839, %v1578
      %2125 = vst.msk [vmem:[#allocation3 + $0x60] sm:$0xff] %vm1839, %v1579
      %2126 = vst.msk [vmem:[#allocation3 + $0x68] sm:$0xff] %vm1839, %v1580
      %2127 = vst.msk [vmem:[#allocation3 + $0x70] sm:$0xff] %vm1839, %v1581
      %2128 = vst.msk [vmem:[#allocation3 + $0x78] sm:$0xff] %vm1839, %v1582
      %p2129 = scmp.eq.s32.totalorder %s33, 1
      // Predicated region
      $region93: #{_lambda_.3} parent=87 // pred_check
        %p2130 = pneg %p2129
      $region94: #{_lambda_.3} parent=87 // pred_check_branch
        %2132 = sbr.rel (%p2130) target = $region96
      $region95: #{_lambda_.3} parent=87 // pred_region
        %v2133 = vld [vmem:[#allocation5] sm:$0xff]
        %v2134 = vld [vmem:[#allocation5 + $0x8] sm:$0xff]
        %v2135 = vld [vmem:[#allocation5 + $0x10] sm:$0xff]
        %v2136 = vld [vmem:[#allocation5 + $0x18] sm:$0xff]
        %v2137 = vld [vmem:[#allocation5 + $0x20] sm:$0xff]
        %v2138 = vld [vmem:[#allocation5 + $0x28] sm:$0xff]
        %v2139 = vld [vmem:[#allocation5 + $0x30] sm:$0xff]
        %v2140 = vld [vmem:[#allocation5 + $0x38] sm:$0xff]
        %v2141 = vld [vmem:[#allocation5 + $0x40] sm:$0xff]
        %v2142 = vld [vmem:[#allocation5 + $0x48] sm:$0xff]
        %v2143 = vld [vmem:[#allocation5 + $0x50] sm:$0xff]
        %v2144 = vld [vmem:[#allocation5 + $0x58] sm:$0xff]
        %v2145 = vld [vmem:[#allocation5 + $0x60] sm:$0xff]
        %v2146 = vld [vmem:[#allocation5 + $0x68] sm:$0xff]
        %v2147 = vld [vmem:[#allocation5 + $0x70] sm:$0xff]
        %v2148 = vld [vmem:[#allocation5 + $0x78] sm:$0xff]
        %v2149 = vld [vmem:[#allocation4] sm:$0xff]
        %v2150 = vld [vmem:[#allocation4 + $0x8] sm:$0xff]
        %v2151 = vld [vmem:[#allocation4 + $0x10] sm:$0xff]
        %v2152 = vld [vmem:[#allocation4 + $0x18] sm:$0xff]
        %v2153 = vld [vmem:[#allocation4 + $0x20] sm:$0xff]
        %v2154 = vld [vmem:[#allocation4 + $0x28] sm:$0xff]
        %v2155 = vld [vmem:[#allocation4 + $0x30] sm:$0xff]
        %v2156 = vld [vmem:[#allocation4 + $0x38] sm:$0xff]
        %v2157 = vld [vmem:[#allocation4 + $0x40] sm:$0xff]
        %v2158 = vld [vmem:[#allocation4 + $0x48] sm:$0xff]
        %v2159 = vld [vmem:[#allocation4 + $0x50] sm:$0xff]
        %v2160 = vld [vmem:[#allocation4 + $0x58] sm:$0xff]
        %v2161 = vld [vmem:[#allocation4 + $0x60] sm:$0xff]
        %v2162 = vld [vmem:[#allocation4 + $0x68] sm:$0xff]
        %v2163 = vld [vmem:[#allocation4 + $0x70] sm:$0xff]
        %v2164 = vld [vmem:[#allocation4 + $0x78] sm:$0xff]
        %v2165 = vrcp.pop %v2149
        %v2166 = vrcp.pop %v2150
        %v2167 = vrcp.pop %v2151
        %v2168 = vrcp.pop %v2152
        %v2169 = vrcp.pop %v2153
        %v2170 = vrcp.pop %v2154
        %v2171 = vrcp.pop %v2155
        %v2172 = vrcp.pop %v2156
        %v2173 = vrcp.pop %v2157
        %v2174 = vrcp.pop %v2158
        %v2175 = vrcp.pop %v2159
        %v2176 = vrcp.pop %v2160
        %v2177 = vrcp.pop %v2161
        %v2178 = vrcp.pop %v2162
        %v2179 = vrcp.pop %v2163
        %v2180 = vrcp.pop %v2164
        %2182 = vset.pattern.permute.xlu0 0
        %2183 = vperm.xlu0 %2182, %v2165
        %v2184 = vpop.permute.xlu0 %2183
        %2187 = vset.pattern.permute.xlu0 0
        %2188 = vperm.xlu0 %2187, %v2166
        %v2189 = vpop.permute.xlu0 %2188
        %2192 = vset.pattern.permute.xlu0 0
        %2193 = vperm.xlu0 %2192, %v2167
        %v2194 = vpop.permute.xlu0 %2193
        %2197 = vset.pattern.permute.xlu0 0
        %2198 = vperm.xlu0 %2197, %v2168
        %v2199 = vpop.permute.xlu0 %2198
        %2202 = vset.pattern.permute.xlu0 0
        %2203 = vperm.xlu0 %2202, %v2169
        %v2204 = vpop.permute.xlu0 %2203
        %2207 = vset.pattern.permute.xlu0 0
        %2208 = vperm.xlu0 %2207, %v2170
        %v2209 = vpop.permute.xlu0 %2208
        %2212 = vset.pattern.permute.xlu0 0
        %2213 = vperm.xlu0 %2212, %v2171
        %v2214 = vpop.permute.xlu0 %2213
        %2217 = vset.pattern.permute.xlu0 0
        %2218 = vperm.xlu0 %2217, %v2172
        %v2219 = vpop.permute.xlu0 %2218
        %2222 = vset.pattern.permute.xlu0 0
        %2223 = vperm.xlu0 %2222, %v2173
        %v2224 = vpop.permute.xlu0 %2223
        %2227 = vset.pattern.permute.xlu0 0
        %2228 = vperm.xlu0 %2227, %v2174
        %v2229 = vpop.permute.xlu0 %2228
        %2232 = vset.pattern.permute.xlu0 0
        %2233 = vperm.xlu0 %2232, %v2175
        %v2234 = vpop.permute.xlu0 %2233
        %2237 = vset.pattern.permute.xlu0 0
        %2238 = vperm.xlu0 %2237, %v2176
        %v2239 = vpop.permute.xlu0 %2238
        %2242 = vset.pattern.permute.xlu0 0
        %2243 = vperm.xlu0 %2242, %v2177
        %v2244 = vpop.permute.xlu0 %2243
        %2247 = vset.pattern.permute.xlu0 0
        %2248 = vperm.xlu0 %2247, %v2178
        %v2249 = vpop.permute.xlu0 %2248
        %2252 = vset.pattern.permute.xlu0 0
        %2253 = vperm.xlu0 %2252, %v2179
        %v2254 = vpop.permute.xlu0 %2253
        %2257 = vset.pattern.permute.xlu0 0
        %2258 = vperm.xlu0 %2257, %v2180
        %v2259 = vpop.permute.xlu0 %2258
        %v2261 = vmul.f32 %v2133, %v2184
        %v2262 = vmul.f32 %v2134, %v2189
        %v2263 = vmul.f32 %v2135, %v2194
        %v2264 = vmul.f32 %v2136, %v2199
        %v2265 = vmul.f32 %v2137, %v2204
        %v2266 = vmul.f32 %v2138, %v2209
        %v2267 = vmul.f32 %v2139, %v2214
        %v2268 = vmul.f32 %v2140, %v2219
        %v2269 = vmul.f32 %v2141, %v2224
        %v2270 = vmul.f32 %v2142, %v2229
        %v2271 = vmul.f32 %v2143, %v2234
        %v2272 = vmul.f32 %v2144, %v2239
        %v2273 = vmul.f32 %v2145, %v2244
        %v2274 = vmul.f32 %v2146, %v2249
        %v2275 = vmul.f32 %v2147, %v2254
        %v2276 = vmul.f32 %v2148, %v2259
        %v2277 = vpack.c.bf16 %v2262, %v2261
        %v2278 = vpack.c.bf16 %v2264, %v2263
        %v2279 = vpack.c.bf16 %v2266, %v2265
        %v2280 = vpack.c.bf16 %v2268, %v2267
        %v2281 = vpack.c.bf16 %v2270, %v2269
        %v2282 = vpack.c.bf16 %v2272, %v2271
        %v2283 = vpack.c.bf16 %v2274, %v2273
        %v2284 = vpack.c.bf16 %v2276, %v2275
        %v2285 = vld [vmem:[%s9] sm:$0xf]
        %v2286 = vld [vmem:[%s9 + $0x4] sm:$0xf]
        %v2287 = vld [vmem:[%s9 + $0x8] sm:$0xf]
        %v2288 = vld [vmem:[%s9 + $0xc] sm:$0xf]
        %v2289 = vld [vmem:[%s9 + $0x10] sm:$0xf]
        %v2290 = vld [vmem:[%s9 + $0x14] sm:$0xf]
        %v2291 = vld [vmem:[%s9 + $0x18] sm:$0xf]
        %v2292 = vld [vmem:[%s9 + $0x1c] sm:$0xf]
        %v2293 = vld [vmem:[%s9 + $0x20] sm:$0xf]
        %v2294 = vld [vmem:[%s9 + $0x24] sm:$0xf]
        %v2295 = vld [vmem:[%s9 + $0x28] sm:$0xf]
        %v2296 = vld [vmem:[%s9 + $0x2c] sm:$0xf]
        %v2297 = vld [vmem:[%s9 + $0x30] sm:$0xf]
        %v2298 = vld [vmem:[%s9 + $0x34] sm:$0xf]
        %v2299 = vld [vmem:[%s9 + $0x38] sm:$0xf]
        %v2300 = vld [vmem:[%s9 + $0x3c] sm:$0xf]
        %v2301 = vld [vmem:[%s10] sm:$0x1]
        %v2303 = vlaneseq
        %v2304 = vshrl.u32 %v2303, 7
        %v2305 = vsub.s32 0, %v2304
        %v2306 = vrot.slane %v2301, %v2305
        %v2324 = vunpack.c.l.b16 %v2285
        %v2325 = vunpack.c.l.b16 %v2286
        %v2326 = vunpack.c.l.b16 %v2287
        %v2327 = vunpack.c.l.b16 %v2288
        %v2328 = vunpack.c.l.b16 %v2289
        %v2329 = vunpack.c.l.b16 %v2290
        %v2330 = vunpack.c.l.b16 %v2291
        %v2331 = vunpack.c.l.b16 %v2292
        %v2332 = vunpack.c.l.b16 %v2293
        %v2333 = vunpack.c.l.b16 %v2294
        %v2334 = vunpack.c.l.b16 %v2295
        %v2335 = vunpack.c.l.b16 %v2296
        %v2336 = vunpack.c.l.b16 %v2297
        %v2337 = vunpack.c.l.b16 %v2298
        %v2338 = vunpack.c.l.b16 %v2299
        %v2339 = vunpack.c.l.b16 %v2300
        %v2340 = vpack.c.b16 %v2325, %v2324
        %v2341 = vpack.c.b16 %v2327, %v2326
        %v2342 = vpack.c.b16 %v2329, %v2328
        %v2343 = vpack.c.b16 %v2331, %v2330
        %v2344 = vpack.c.b16 %v2333, %v2332
        %v2345 = vpack.c.b16 %v2335, %v2334
        %v2346 = vpack.c.b16 %v2337, %v2336
        %v2347 = vpack.c.b16 %v2339, %v2338
        %2356 = vmatprep.subr.bf16.mxu0 0
        %2357 = vmatpush1.bf16.msra.mxu0 %v2340
        %2358 = vmatprep.subr.bf16.mxu0 0
        %2359 = vmatpush1.bf16.msra.mxu0 %v2341
        %2360 = vmatprep.subr.bf16.mxu0 0
        %2361 = vmatpush1.bf16.msra.mxu0 %v2342
        %2362 = vmatprep.subr.bf16.mxu0 0
        %2363 = vmatpush1.bf16.msra.mxu0 %v2343
        %2364 = vmatprep.subr.bf16.mxu0 0
        %2365 = vmatpush1.bf16.msra.mxu0 %v2344
        %2366 = vmatprep.subr.bf16.mxu0 0
        %2367 = vmatpush1.bf16.msra.mxu0 %v2345
        %2368 = vmatprep.subr.bf16.mxu0 0
        %2369 = vmatpush1.bf16.msra.mxu0 %v2346
        %2370 = vmatprep.subr.bf16.mxu0 0
        %2371 = vmatpush1.bf16.msra.mxu0 %v2347
        %2372 = vmatprep.subr.bf16.mxu0 0
        %2373 = vmatpush1.bf16.msra.mxu0 0
        %2374 = vmatprep.subr.bf16.mxu0 0
        %2375 = vmatpush1.bf16.msra.mxu0 0
        %2376 = vmatprep.subr.bf16.mxu0 0
        %2377 = vmatpush1.bf16.msra.mxu0 0
        %2378 = vmatprep.subr.bf16.mxu0 0
        %2379 = vmatpush1.bf16.msra.mxu0 0
        %2380 = vmatprep.subr.bf16.mxu0 0
        %2381 = vmatpush1.bf16.msra.mxu0 0
        %2382 = vmatprep.subr.bf16.mxu0 0
        %2383 = vmatpush1.bf16.msra.mxu0 0
        %2384 = vmatprep.subr.bf16.mxu0 0
        %2385 = vmatpush1.bf16.msra.mxu0 0
        %2386 = vmatprep.subr.bf16.mxu0 0
        %2387 = vmatpush1.bf16.msra.mxu0 0
        %2388 = vmatprep.mubr.bf16.mxu0 0
        %2389 = vmatmul.mubr.bf16.gmra.mrb[0].mxu0 %v2277
        %v2390 = vpop.f32.mrb[0].mxu0
        %v2391 = vadd.f32 %v2306, %v2390
        %v2392 = vpop.f32.mrb[0].mxu0
        %v2393 = vpop.f32.mrb[0].mxu0
        %v2394 = vadd.f32 %v2306, %v2393
        %v2395 = vpop.f32.mrb[0].mxu0
        %2396 = vmatprep.mubr.bf16.mxu0 0
        %2397 = vmatmul.mubr.bf16.gmra.mrb[0].mxu0 %v2278
        %v2398 = vpop.f32.mrb[0].mxu0
        %v2399 = vadd.f32 %v2306, %v2398
        %v2400 = vpop.f32.mrb[0].mxu0
        %v2401 = vpop.f32.mrb[0].mxu0
        %v2402 = vadd.f32 %v2306, %v2401
        %v2403 = vpop.f32.mrb[0].mxu0
        %2404 = vmatprep.mubr.bf16.mxu0 0
        %2405 = vmatmul.mubr.bf16.gmra.mrb[0].mxu0 %v2279
        %v2406 = vpop.f32.mrb[0].mxu0
        %v2407 = vadd.f32 %v2306, %v2406
        %v2408 = vpop.f32.mrb[0].mxu0
        %v2409 = vpop.f32.mrb[0].mxu0
        %v2410 = vadd.f32 %v2306, %v2409
        %v2411 = vpop.f32.mrb[0].mxu0
        %2412 = vmatprep.mubr.bf16.mxu0 0
        %2413 = vmatmul.mubr.bf16.gmra.mrb[0].mxu0 %v2280
        %v2414 = vpop.f32.mrb[0].mxu0
        %v2415 = vadd.f32 %v2306, %v2414
        %v2416 = vpop.f32.mrb[0].mxu0
        %v2417 = vpop.f32.mrb[0].mxu0
        %v2418 = vadd.f32 %v2306, %v2417
        %v2419 = vpop.f32.mrb[0].mxu0
        %2420 = vmatprep.mubr.bf16.mxu0 0
        %2421 = vmatmul.mubr.bf16.gmra.mrb[0].mxu0 %v2281
        %v2422 = vpop.f32.mrb[0].mxu0
        %v2423 = vadd.f32 %v2306, %v2422
        %v2424 = vpop.f32.mrb[0].mxu0
        %v2425 = vpop.f32.mrb[0].mxu0
        %v2426 = vadd.f32 %v2306, %v2425
        %v2427 = vpop.f32.mrb[0].mxu0
        %2428 = vmatprep.mubr.bf16.mxu0 0
        %2429 = vmatmul.mubr.bf16.gmra.mrb[0].mxu0 %v2282
        %v2430 = vpop.f32.mrb[0].mxu0
        %v2431 = vadd.f32 %v2306, %v2430
        %v2432 = vpop.f32.mrb[0].mxu0
        %v2433 = vpop.f32.mrb[0].mxu0
        %v2434 = vadd.f32 %v2306, %v2433
        %v2435 = vpop.f32.mrb[0].mxu0
        %2436 = vmatprep.mubr.bf16.mxu0 0
        %2437 = vmatmul.mubr.bf16.gmra.mrb[0].mxu0 %v2283
        %v2438 = vpop.f32.mrb[0].mxu0
        %v2439 = vadd.f32 %v2306, %v2438
        %v2440 = vpop.f32.mrb[0].mxu0
        %v2441 = vpop.f32.mrb[0].mxu0
        %v2442 = vadd.f32 %v2306, %v2441
        %v2443 = vpop.f32.mrb[0].mxu0
        %2444 = vmatprep.mubr.bf16.mxu0 0
        %2445 = vmatmul.mubr.bf16.gmra.mrb[0].mxu0 %v2284
        %v2446 = vpop.f32.mrb[0].mxu0
        %v2447 = vadd.f32 %v2306, %v2446
        %v2448 = vpop.f32.mrb[0].mxu0
        %v2449 = vpop.f32.mrb[0].mxu0
        %v2450 = vadd.f32 %v2306, %v2449
        %v2451 = vpop.f32.mrb[0].mxu0
        %2452 = vdwg.mxu0
        %v2453 = vld [vmem:[%s644] sm:$0xff]
        %v2454 = vld [vmem:[%s644 + $0x8] sm:$0xff]
        %v2455 = vld [vmem:[%s644 + $0x10] sm:$0xff]
        %v2456 = vld [vmem:[%s644 + $0x18] sm:$0xff]
        %v2457 = vld [vmem:[%s644 + $0x20] sm:$0xff]
        %v2458 = vld [vmem:[%s644 + $0x28] sm:$0xff]
        %v2459 = vld [vmem:[%s644 + $0x30] sm:$0xff]
        %v2460 = vld [vmem:[%s644 + $0x38] sm:$0xff]
        %v2461 = vld [vmem:[%s644 + $0x40] sm:$0xff]
        %v2462 = vld [vmem:[%s644 + $0x48] sm:$0xff]
        %v2463 = vld [vmem:[%s644 + $0x50] sm:$0xff]
        %v2464 = vld [vmem:[%s644 + $0x58] sm:$0xff]
        %v2465 = vld [vmem:[%s644 + $0x60] sm:$0xff]
        %v2466 = vld [vmem:[%s644 + $0x68] sm:$0xff]
        %v2467 = vld [vmem:[%s644 + $0x70] sm:$0xff]
        %v2468 = vld [vmem:[%s644 + $0x78] sm:$0xff]
        %v2469 = vadd.f32 %v2453, %v2391
        %v2470 = vadd.f32 %v2454, %v2394
        %v2471 = vadd.f32 %v2455, %v2399
        %v2472 = vadd.f32 %v2456, %v2402
        %v2473 = vadd.f32 %v2457, %v2407
        %v2474 = vadd.f32 %v2458, %v2410
        %v2475 = vadd.f32 %v2459, %v2415
        %v2476 = vadd.f32 %v2460, %v2418
        %v2477 = vadd.f32 %v2461, %v2423
        %v2478 = vadd.f32 %v2462, %v2426
        %v2479 = vadd.f32 %v2463, %v2431
        %v2480 = vadd.f32 %v2464, %v2434
        %v2481 = vadd.f32 %v2465, %v2439
        %v2482 = vadd.f32 %v2466, %v2442
        %v2483 = vadd.f32 %v2467, %v2447
        %v2484 = vadd.f32 %v2468, %v2450
        %v2485 = vpack.c.bf16 %v2470, %v2469
        %v2486 = vpack.c.bf16 %v2472, %v2471
        %v2487 = vpack.c.bf16 %v2474, %v2473
        %v2488 = vpack.c.bf16 %v2476, %v2475
        %v2489 = vpack.c.bf16 %v2478, %v2477
        %v2490 = vpack.c.bf16 %v2480, %v2479
        %v2491 = vpack.c.bf16 %v2482, %v2481
        %v2492 = vpack.c.bf16 %v2484, %v2483
        %v2493 = vld [vmem:[%s11] sm:$0xf]
        %v2494 = vld [vmem:[%s11 + $0x4] sm:$0xf]
        %v2495 = vld [vmem:[%s11 + $0x8] sm:$0xf]
        %v2496 = vld [vmem:[%s11 + $0xc] sm:$0xf]
        %v2497 = vld [vmem:[%s11 + $0x10] sm:$0xf]
        %v2498 = vld [vmem:[%s11 + $0x14] sm:$0xf]
        %v2499 = vld [vmem:[%s11 + $0x18] sm:$0xf]
        %v2500 = vld [vmem:[%s11 + $0x1c] sm:$0xf]
        %v2501 = vld [vmem:[%s11 + $0x20] sm:$0xf]
        %v2502 = vld [vmem:[%s11 + $0x24] sm:$0xf]
        %v2503 = vld [vmem:[%s11 + $0x28] sm:$0xf]
        %v2504 = vld [vmem:[%s11 + $0x2c] sm:$0xf]
        %v2505 = vld [vmem:[%s11 + $0x30] sm:$0xf]
        %v2506 = vld [vmem:[%s11 + $0x34] sm:$0xf]
        %v2507 = vld [vmem:[%s11 + $0x38] sm:$0xf]
        %v2508 = vld [vmem:[%s11 + $0x3c] sm:$0xf]
        %v2509 = vld [vmem:[%s12] sm:$0x1]
        %v2511 = vlaneseq
        %v2512 = vshrl.u32 %v2511, 7
        %v2513 = vsub.s32 0, %v2512
        %v2514 = vrot.slane %v2509, %v2513
        %v2532 = vunpack.c.l.b16 %v2493
        %v2533 = vunpack.c.l.b16 %v2494
        %v2534 = vunpack.c.l.b16 %v2495
        %v2535 = vunpack.c.l.b16 %v2496
        %v2536 = vunpack.c.l.b16 %v2497
        %v2537 = vunpack.c.l.b16 %v2498
        %v2538 = vunpack.c.l.b16 %v2499
        %v2539 = vunpack.c.l.b16 %v2500
        %v2540 = vunpack.c.l.b16 %v2501
        %v2541 = vunpack.c.l.b16 %v2502
        %v2542 = vunpack.c.l.b16 %v2503
        %v2543 = vunpack.c.l.b16 %v2504
        %v2544 = vunpack.c.l.b16 %v2505
        %v2545 = vunpack.c.l.b16 %v2506
        %v2546 = vunpack.c.l.b16 %v2507
        %v2547 = vunpack.c.l.b16 %v2508
        %v2548 = vpack.c.b16 %v2533, %v2532
        %v2549 = vpack.c.b16 %v2535, %v2534
        %v2550 = vpack.c.b16 %v2537, %v2536
        %v2551 = vpack.c.b16 %v2539, %v2538
        %v2552 = vpack.c.b16 %v2541, %v2540
        %v2553 = vpack.c.b16 %v2543, %v2542
        %v2554 = vpack.c.b16 %v2545, %v2544
        %v2555 = vpack.c.b16 %v2547, %v2546
        %2564 = vmatprep.subr.bf16.mxu0 0
        %2565 = vmatpush1.bf16.msra.mxu0 %v2548
        %2566 = vmatprep.subr.bf16.mxu0 0
        %2567 = vmatpush1.bf16.msra.mxu0 %v2549
        %2568 = vmatprep.subr.bf16.mxu0 0
        %2569 = vmatpush1.bf16.msra.mxu0 %v2550
        %2570 = vmatprep.subr.bf16.mxu0 0
        %2571 = vmatpush1.bf16.msra.mxu0 %v2551
        %2572 = vmatprep.subr.bf16.mxu0 0
        %2573 = vmatpush1.bf16.msra.mxu0 %v2552
        %2574 = vmatprep.subr.bf16.mxu0 0
        %2575 = vmatpush1.bf16.msra.mxu0 %v2553
        %2576 = vmatprep.subr.bf16.mxu0 0
        %2577 = vmatpush1.bf16.msra.mxu0 %v2554
        %2578 = vmatprep.subr.bf16.mxu0 0
        %2579 = vmatpush1.bf16.msra.mxu0 %v2555
        %2580 = vmatprep.subr.bf16.mxu0 0
        %2581 = vmatpush1.bf16.msra.mxu0 0
        %2582 = vmatprep.subr.bf16.mxu0 0
        %2583 = vmatpush1.bf16.msra.mxu0 0
        %2584 = vmatprep.subr.bf16.mxu0 0
        %2585 = vmatpush1.bf16.msra.mxu0 0
        %2586 = vmatprep.subr.bf16.mxu0 0
        %2587 = vmatpush1.bf16.msra.mxu0 0
        %2588 = vmatprep.subr.bf16.mxu0 0
        %2589 = vmatpush1.bf16.msra.mxu0 0
        %2590 = vmatprep.subr.bf16.mxu0 0
        %2591 = vmatpush1.bf16.msra.mxu0 0
        %2592 = vmatprep.subr.bf16.mxu0 0
        %2593 = vmatpush1.bf16.msra.mxu0 0
        %2594 = vmatprep.subr.bf16.mxu0 0
        %2595 = vmatpush1.bf16.msra.mxu0 0
        %2596 = vmatprep.mubr.bf16.mxu0 0
        %2597 = vmatmul.mubr.bf16.gmra.mrb[0].mxu0 %v2485
        %v2598 = vpop.f32.mrb[0].mxu0
        %v2599 = vadd.f32 %v2514, %v2598
        %v2600 = vpop.f32.mrb[0].mxu0
        %v2601 = vpop.f32.mrb[0].mxu0
        %v2602 = vadd.f32 %v2514, %v2601
        %v2603 = vpop.f32.mrb[0].mxu0
        %2604 = vmatprep.mubr.bf16.mxu0 0
        %2605 = vmatmul.mubr.bf16.gmra.mrb[0].mxu0 %v2486
        %v2606 = vpop.f32.mrb[0].mxu0
        %v2607 = vadd.f32 %v2514, %v2606
        %v2608 = vpop.f32.mrb[0].mxu0
        %v2609 = vpop.f32.mrb[0].mxu0
        %v2610 = vadd.f32 %v2514, %v2609
        %v2611 = vpop.f32.mrb[0].mxu0
        %2612 = vmatprep.mubr.bf16.mxu0 0
        %2613 = vmatmul.mubr.bf16.gmra.mrb[0].mxu0 %v2487
        %v2614 = vpop.f32.mrb[0].mxu0
        %v2615 = vadd.f32 %v2514, %v2614
        %v2616 = vpop.f32.mrb[0].mxu0
        %v2617 = vpop.f32.mrb[0].mxu0
        %v2618 = vadd.f32 %v2514, %v2617
        %v2619 = vpop.f32.mrb[0].mxu0
        %2620 = vmatprep.mubr.bf16.mxu0 0
        %2621 = vmatmul.mubr.bf16.gmra.mrb[0].mxu0 %v2488
        %v2622 = vpop.f32.mrb[0].mxu0
        %v2623 = vadd.f32 %v2514, %v2622
        %v2624 = vpop.f32.mrb[0].mxu0
        %v2625 = vpop.f32.mrb[0].mxu0
        %v2626 = vadd.f32 %v2514, %v2625
        %v2627 = vpop.f32.mrb[0].mxu0
        %2628 = vmatprep.mubr.bf16.mxu0 0
        %2629 = vmatmul.mubr.bf16.gmra.mrb[0].mxu0 %v2489
        %v2630 = vpop.f32.mrb[0].mxu0
        %v2631 = vadd.f32 %v2514, %v2630
        %v2632 = vpop.f32.mrb[0].mxu0
        %v2633 = vpop.f32.mrb[0].mxu0
        %v2634 = vadd.f32 %v2514, %v2633
        %v2635 = vpop.f32.mrb[0].mxu0
        %2636 = vmatprep.mubr.bf16.mxu0 0
        %2637 = vmatmul.mubr.bf16.gmra.mrb[0].mxu0 %v2490
        %v2638 = vpop.f32.mrb[0].mxu0
        %v2639 = vadd.f32 %v2514, %v2638
        %v2640 = vpop.f32.mrb[0].mxu0
        %v2641 = vpop.f32.mrb[0].mxu0
        %v2642 = vadd.f32 %v2514, %v2641
        %v2643 = vpop.f32.mrb[0].mxu0
        %2644 = vmatprep.mubr.bf16.mxu0 0
        %2645 = vmatmul.mubr.bf16.gmra.mrb[0].mxu0 %v2491
        %v2646 = vpop.f32.mrb[0].mxu0
        %v2647 = vadd.f32 %v2514, %v2646
        %v2648 = vpop.f32.mrb[0].mxu0
        %v2649 = vpop.f32.mrb[0].mxu0
        %v2650 = vadd.f32 %v2514, %v2649
        %v2651 = vpop.f32.mrb[0].mxu0
        %2652 = vmatprep.mubr.bf16.mxu0 0
        %2653 = vmatmul.mubr.bf16.gmra.mrb[0].mxu0 %v2492
        %v2654 = vpop.f32.mrb[0].mxu0
        %v2655 = vadd.f32 %v2514, %v2654
        %v2656 = vpop.f32.mrb[0].mxu0
        %v2657 = vpop.f32.mrb[0].mxu0
        %v2658 = vadd.f32 %v2514, %v2657
        %v2659 = vpop.f32.mrb[0].mxu0
        %2660 = vdwg.mxu0
        %v2661 = vmax.f32 %v2599, 0.0
        %v2662 = vmax.f32 %v2602, 0.0
        %v2663 = vmax.f32 %v2607, 0.0
        %v2664 = vmax.f32 %v2610, 0.0
        %v2665 = vmax.f32 %v2615, 0.0
        %v2666 = vmax.f32 %v2618, 0.0
        %v2667 = vmax.f32 %v2623, 0.0
        %v2668 = vmax.f32 %v2626, 0.0
        %v2669 = vmax.f32 %v2631, 0.0
        %v2670 = vmax.f32 %v2634, 0.0
        %v2671 = vmax.f32 %v2639, 0.0
        %v2672 = vmax.f32 %v2642, 0.0
        %v2673 = vmax.f32 %v2647, 0.0
        %v2674 = vmax.f32 %v2650, 0.0
        %v2675 = vmax.f32 %v2655, 0.0
        %v2676 = vmax.f32 %v2658, 0.0
        %vm2677 = vcmp.lt.s32.totalorder %v1466, 32
        %v2678 = vsel %vm2677, 1, 0
        %v2679 = vcvt.s32.f32 %v2678
        %v2680 = vmul.f32 %v2661, %v2679
        %v2681 = vmul.f32 %v2662, %v2679
        %v2682 = vmul.f32 %v2663, %v2679
        %v2683 = vmul.f32 %v2664, %v2679
        %v2684 = vmul.f32 %v2665, %v2679
        %v2685 = vmul.f32 %v2666, %v2679
        %v2686 = vmul.f32 %v2667, %v2679
        %v2687 = vmul.f32 %v2668, %v2679
        %v2688 = vmul.f32 %v2669, %v2679
        %v2689 = vmul.f32 %v2670, %v2679
        %v2690 = vmul.f32 %v2671, %v2679
        %v2691 = vmul.f32 %v2672, %v2679
        %v2692 = vmul.f32 %v2673, %v2679
        %v2693 = vmul.f32 %v2674, %v2679
        %v2694 = vmul.f32 %v2675, %v2679
        %v2695 = vmul.f32 %v2676, %v2679
        %2696 = vadd.xlane.f32.xlu0 %v2680
        %v2697 = vpop.xlane.xlu0 %2696
        %2698 = vadd.xlane.f32.xlu0 %v2681
        %v2699 = vpop.xlane.xlu0 %2698
        %2700 = vadd.xlane.f32.xlu0 %v2682
        %v2701 = vpop.xlane.xlu0 %2700
        %2702 = vadd.xlane.f32.xlu0 %v2683
        %v2703 = vpop.xlane.xlu0 %2702
        %2704 = vadd.xlane.f32.xlu0 %v2684
        %v2705 = vpop.xlane.xlu0 %2704
        %2706 = vadd.xlane.f32.xlu0 %v2685
        %v2707 = vpop.xlane.xlu0 %2706
        %2708 = vadd.xlane.f32.xlu0 %v2686
        %v2709 = vpop.xlane.xlu0 %2708
        %2710 = vadd.xlane.f32.xlu0 %v2687
        %v2711 = vpop.xlane.xlu0 %2710
        %2712 = vadd.xlane.f32.xlu0 %v2688
        %v2713 = vpop.xlane.xlu0 %2712
        %2714 = vadd.xlane.f32.xlu0 %v2689
        %v2715 = vpop.xlane.xlu0 %2714
        %2716 = vadd.xlane.f32.xlu0 %v2690
        %v2717 = vpop.xlane.xlu0 %2716
        %2718 = vadd.xlane.f32.xlu0 %v2691
        %v2719 = vpop.xlane.xlu0 %2718
        %2720 = vadd.xlane.f32.xlu0 %v2692
        %v2721 = vpop.xlane.xlu0 %2720
        %2722 = vadd.xlane.f32.xlu0 %v2693
        %v2723 = vpop.xlane.xlu0 %2722
        %2724 = vadd.xlane.f32.xlu0 %v2694
        %v2725 = vpop.xlane.xlu0 %2724
        %2726 = vadd.xlane.f32.xlu0 %v2695
        %v2727 = vpop.xlane.xlu0 %2726
        %v2728 = vrcp.pop 32.0
        %v2729 = vmul.f32 %v2697, %v2728
        %v2730 = vmul.f32 %v2699, %v2728
        %v2731 = vmul.f32 %v2701, %v2728
        %v2732 = vmul.f32 %v2703, %v2728
        %v2733 = vmul.f32 %v2705, %v2728
        %v2734 = vmul.f32 %v2707, %v2728
        %v2735 = vmul.f32 %v2709, %v2728
        %v2736 = vmul.f32 %v2711, %v2728
        %v2737 = vmul.f32 %v2713, %v2728
        %v2738 = vmul.f32 %v2715, %v2728
        %v2739 = vmul.f32 %v2717, %v2728
        %v2740 = vmul.f32 %v2719, %v2728
        %v2741 = vmul.f32 %v2721, %v2728
        %v2742 = vmul.f32 %v2723, %v2728
        %v2743 = vmul.f32 %v2725, %v2728
        %v2744 = vmul.f32 %v2727, %v2728
        %v2745 = vsub.f32 %v2661, %v2729
        %v2746 = vsub.f32 %v2662, %v2730
        %v2747 = vsub.f32 %v2663, %v2731
        %v2748 = vsub.f32 %v2664, %v2732
        %v2749 = vsub.f32 %v2665, %v2733
        %v2750 = vsub.f32 %v2666, %v2734
        %v2751 = vsub.f32 %v2667, %v2735
        %v2752 = vsub.f32 %v2668, %v2736
        %v2753 = vsub.f32 %v2669, %v2737
        %v2754 = vsub.f32 %v2670, %v2738
        %v2755 = vsub.f32 %v2671, %v2739
        %v2756 = vsub.f32 %v2672, %v2740
        %v2757 = vsub.f32 %v2673, %v2741
        %v2758 = vsub.f32 %v2674, %v2742
        %v2759 = vsub.f32 %v2675, %v2743
        %v2760 = vsub.f32 %v2676, %v2744
        %v2761 = vmul.f32 %v2745, %v2679
        %v2762 = vmul.f32 %v2746, %v2679
        %v2763 = vmul.f32 %v2747, %v2679
        %v2764 = vmul.f32 %v2748, %v2679
        %v2765 = vmul.f32 %v2749, %v2679
        %v2766 = vmul.f32 %v2750, %v2679
        %v2767 = vmul.f32 %v2751, %v2679
        %v2768 = vmul.f32 %v2752, %v2679
        %v2769 = vmul.f32 %v2753, %v2679
        %v2770 = vmul.f32 %v2754, %v2679
        %v2771 = vmul.f32 %v2755, %v2679
        %v2772 = vmul.f32 %v2756, %v2679
        %v2773 = vmul.f32 %v2757, %v2679
        %v2774 = vmul.f32 %v2758, %v2679
        %v2775 = vmul.f32 %v2759, %v2679
        %v2776 = vmul.f32 %v2760, %v2679
        %v2777 = vmul.f32 %v2761, %v2761
        %v2778 = vmul.f32 %v2762, %v2762
        %v2779 = vmul.f32 %v2763, %v2763
        %v2780 = vmul.f32 %v2764, %v2764
        %v2781 = vmul.f32 %v2765, %v2765
        %v2782 = vmul.f32 %v2766, %v2766
        %v2783 = vmul.f32 %v2767, %v2767
        %v2784 = vmul.f32 %v2768, %v2768
        %v2785 = vmul.f32 %v2769, %v2769
        %v2786 = vmul.f32 %v2770, %v2770
        %v2787 = vmul.f32 %v2771, %v2771
        %v2788 = vmul.f32 %v2772, %v2772
        %v2789 = vmul.f32 %v2773, %v2773
        %v2790 = vmul.f32 %v2774, %v2774
        %v2791 = vmul.f32 %v2775, %v2775
        %v2792 = vmul.f32 %v2776, %v2776
        %2793 = vadd.xlane.f32.xlu0 %v2777
        %v2794 = vpop.xlane.xlu0 %2793
        %2795 = vadd.xlane.f32.xlu0 %v2778
        %v2796 = vpop.xlane.xlu0 %2795
        %2797 = vadd.xlane.f32.xlu0 %v2779
        %v2798 = vpop.xlane.xlu0 %2797
        %2799 = vadd.xlane.f32.xlu0 %v2780
        %v2800 = vpop.xlane.xlu0 %2799
        %2801 = vadd.xlane.f32.xlu0 %v2781
        %v2802 = vpop.xlane.xlu0 %2801
        %2803 = vadd.xlane.f32.xlu0 %v2782
        %v2804 = vpop.xlane.xlu0 %2803
        %2805 = vadd.xlane.f32.xlu0 %v2783
        %v2806 = vpop.xlane.xlu0 %2805
        %2807 = vadd.xlane.f32.xlu0 %v2784
        %v2808 = vpop.xlane.xlu0 %2807
        %2809 = vadd.xlane.f32.xlu0 %v2785
        %v2810 = vpop.xlane.xlu0 %2809
        %2811 = vadd.xlane.f32.xlu0 %v2786
        %v2812 = vpop.xlane.xlu0 %2811
        %2813 = vadd.xlane.f32.xlu0 %v2787
        %v2814 = vpop.xlane.xlu0 %2813
        %2815 = vadd.xlane.f32.xlu0 %v2788
        %v2816 = vpop.xlane.xlu0 %2815
        %2817 = vadd.xlane.f32.xlu0 %v2789
        %v2818 = vpop.xlane.xlu0 %2817
        %2819 = vadd.xlane.f32.xlu0 %v2790
        %v2820 = vpop.xlane.xlu0 %2819
        %2821 = vadd.xlane.f32.xlu0 %v2791
        %v2822 = vpop.xlane.xlu0 %2821
        %2823 = vadd.xlane.f32.xlu0 %v2792
        %v2824 = vpop.xlane.xlu0 %2823
        %v2825 = vmul.f32 %v2794, %v2728
        %v2826 = vmul.f32 %v2796, %v2728
        %v2827 = vmul.f32 %v2798, %v2728
        %v2828 = vmul.f32 %v2800, %v2728
        %v2829 = vmul.f32 %v2802, %v2728
        %v2830 = vmul.f32 %v2804, %v2728
        %v2831 = vmul.f32 %v2806, %v2728
        %v2832 = vmul.f32 %v2808, %v2728
        %v2833 = vmul.f32 %v2810, %v2728
        %v2834 = vmul.f32 %v2812, %v2728
        %v2835 = vmul.f32 %v2814, %v2728
        %v2836 = vmul.f32 %v2816, %v2728
        %v2837 = vmul.f32 %v2818, %v2728
        %v2838 = vmul.f32 %v2820, %v2728
        %v2839 = vmul.f32 %v2822, %v2728
        %v2840 = vmul.f32 %v2824, %v2728
        %v2841 = vadd.f32 %v2825, 1e-05
        %v2842 = vadd.f32 %v2826, 1e-05
        %v2843 = vadd.f32 %v2827, 1e-05
        %v2844 = vadd.f32 %v2828, 1e-05
        %v2845 = vadd.f32 %v2829, 1e-05
        %v2846 = vadd.f32 %v2830, 1e-05
        %v2847 = vadd.f32 %v2831, 1e-05
        %v2848 = vadd.f32 %v2832, 1e-05
        %v2849 = vadd.f32 %v2833, 1e-05
        %v2850 = vadd.f32 %v2834, 1e-05
        %v2851 = vadd.f32 %v2835, 1e-05
        %v2852 = vadd.f32 %v2836, 1e-05
        %v2853 = vadd.f32 %v2837, 1e-05
        %v2854 = vadd.f32 %v2838, 1e-05
        %v2855 = vadd.f32 %v2839, 1e-05
        %v2856 = vadd.f32 %v2840, 1e-05
        %v2857 = vrsqrt.pop %v2841
        %v2858 = vrsqrt.pop %v2842
        %v2859 = vrsqrt.pop %v2843
        %v2860 = vrsqrt.pop %v2844
        %v2861 = vrsqrt.pop %v2845
        %v2862 = vrsqrt.pop %v2846
        %v2863 = vrsqrt.pop %v2847
        %v2864 = vrsqrt.pop %v2848
        %v2865 = vrsqrt.pop %v2849
        %v2866 = vrsqrt.pop %v2850
        %v2867 = vrsqrt.pop %v2851
        %v2868 = vrsqrt.pop %v2852
        %v2869 = vrsqrt.pop %v2853
        %v2870 = vrsqrt.pop %v2854
        %v2871 = vrsqrt.pop %v2855
        %v2872 = vrsqrt.pop %v2856
        %v2873 = vmul.f32 %v2761, %v2857
        %v2874 = vmul.f32 %v2762, %v2858
        %v2875 = vmul.f32 %v2763, %v2859
        %v2876 = vmul.f32 %v2764, %v2860
        %v2877 = vmul.f32 %v2765, %v2861
        %v2878 = vmul.f32 %v2766, %v2862
        %v2879 = vmul.f32 %v2767, %v2863
        %v2880 = vmul.f32 %v2768, %v2864
        %v2881 = vmul.f32 %v2769, %v2865
        %v2882 = vmul.f32 %v2770, %v2866
        %v2883 = vmul.f32 %v2771, %v2867
        %v2884 = vmul.f32 %v2772, %v2868
        %v2885 = vmul.f32 %v2773, %v2869
        %v2886 = vmul.f32 %v2774, %v2870
        %v2887 = vmul.f32 %v2775, %v2871
        %v2888 = vmul.f32 %v2776, %v2872
        %v2889 = vld [vmem:[%s13] sm:$0x1]
        %v2891 = vlaneseq
        %v2892 = vshrl.u32 %v2891, 7
        %v2893 = vsub.s32 0, %v2892
        %v2894 = vrot.slane %v2889, %v2893
        %v2896 = vmul.f32 %v2873, %v2894
        %v2897 = vmul.f32 %v2874, %v2894
        %v2898 = vmul.f32 %v2875, %v2894
        %v2899 = vmul.f32 %v2876, %v2894
        %v2900 = vmul.f32 %v2877, %v2894
        %v2901 = vmul.f32 %v2878, %v2894
        %v2902 = vmul.f32 %v2879, %v2894
        %v2903 = vmul.f32 %v2880, %v2894
        %v2904 = vmul.f32 %v2881, %v2894
        %v2905 = vmul.f32 %v2882, %v2894
        %v2906 = vmul.f32 %v2883, %v2894
        %v2907 = vmul.f32 %v2884, %v2894
        %v2908 = vmul.f32 %v2885, %v2894
        %v2909 = vmul.f32 %v2886, %v2894
        %v2910 = vmul.f32 %v2887, %v2894
        %v2911 = vmul.f32 %v2888, %v2894
        %v2912 = vld [vmem:[%s14] sm:$0x1]
        %v2914 = vlaneseq
        %v2915 = vshrl.u32 %v2914, 7
        %v2916 = vsub.s32 0, %v2915
        %v2917 = vrot.slane %v2912, %v2916
        %v2919 = vadd.f32 %v2896, %v2917
        %v2920 = vadd.f32 %v2897, %v2917
        %v2921 = vadd.f32 %v2898, %v2917
        %v2922 = vadd.f32 %v2899, %v2917
        %v2923 = vadd.f32 %v2900, %v2917
        %v2924 = vadd.f32 %v2901, %v2917
        %v2925 = vadd.f32 %v2902, %v2917
        %v2926 = vadd.f32 %v2903, %v2917
        %v2927 = vadd.f32 %v2904, %v2917
        %v2928 = vadd.f32 %v2905, %v2917
        %v2929 = vadd.f32 %v2906, %v2917
        %v2930 = vadd.f32 %v2907, %v2917
        %v2931 = vadd.f32 %v2908, %v2917
        %v2932 = vadd.f32 %v2909, %v2917
        %v2933 = vadd.f32 %v2910, %v2917
        %v2934 = vadd.f32 %v2911, %v2917
        %v2935 = vpack.c.bf16 %v2920, %v2919
        %v2936 = vpack.c.bf16 %v2922, %v2921
        %v2937 = vpack.c.bf16 %v2924, %v2923
        %v2938 = vpack.c.bf16 %v2926, %v2925
        %v2939 = vpack.c.bf16 %v2928, %v2927
        %v2940 = vpack.c.bf16 %v2930, %v2929
        %v2941 = vpack.c.bf16 %v2932, %v2931
        %v2942 = vpack.c.bf16 %v2934, %v2933
        %v2943 = vld [vmem:[%s15] sm:$0xf]
        %v2944 = vld [vmem:[%s15 + $0x4] sm:$0xf]
        %v2945 = vld [vmem:[%s15 + $0x8] sm:$0xf]
        %v2946 = vld [vmem:[%s15 + $0xc] sm:$0xf]
        %v2947 = vld [vmem:[%s15 + $0x10] sm:$0xf]
        %v2948 = vld [vmem:[%s15 + $0x14] sm:$0xf]
        %v2949 = vld [vmem:[%s15 + $0x18] sm:$0xf]
        %v2950 = vld [vmem:[%s15 + $0x1c] sm:$0xf]
        %v2951 = vld [vmem:[%s15 + $0x20] sm:$0xf]
        %v2952 = vld [vmem:[%s15 + $0x24] sm:$0xf]
        %v2953 = vld [vmem:[%s15 + $0x28] sm:$0xf]
        %v2954 = vld [vmem:[%s15 + $0x2c] sm:$0xf]
        %v2955 = vld [vmem:[%s15 + $0x30] sm:$0xf]
        %v2956 = vld [vmem:[%s15 + $0x34] sm:$0xf]
        %v2957 = vld [vmem:[%s15 + $0x38] sm:$0xf]
        %v2958 = vld [vmem:[%s15 + $0x3c] sm:$0xf]
        %v2959 = vld [vmem:[%s16] sm:$0x1]
        %v2961 = vlaneseq
        %v2962 = vshrl.u32 %v2961, 7
        %v2963 = vsub.s32 0, %v2962
        %v2964 = vrot.slane %v2959, %v2963
        %v2982 = vunpack.c.l.b16 %v2943
        %v2983 = vunpack.c.l.b16 %v2944
        %v2984 = vunpack.c.l.b16 %v2945
        %v2985 = vunpack.c.l.b16 %v2946
        %v2986 = vunpack.c.l.b16 %v2947
        %v2987 = vunpack.c.l.b16 %v2948
        %v2988 = vunpack.c.l.b16 %v2949
        %v2989 = vunpack.c.l.b16 %v2950
        %v2990 = vunpack.c.l.b16 %v2951
        %v2991 = vunpack.c.l.b16 %v2952
        %v2992 = vunpack.c.l.b16 %v2953
        %v2993 = vunpack.c.l.b16 %v2954
        %v2994 = vunpack.c.l.b16 %v2955
        %v2995 = vunpack.c.l.b16 %v2956
        %v2996 = vunpack.c.l.b16 %v2957
        %v2997 = vunpack.c.l.b16 %v2958
        %v2998 = vpack.c.b16 %v2983, %v2982
        %v2999 = vpack.c.b16 %v2985, %v2984
        %v3000 = vpack.c.b16 %v2987, %v2986
        %v3001 = vpack.c.b16 %v2989, %v2988
        %v3002 = vpack.c.b16 %v2991, %v2990
        %v3003 = vpack.c.b16 %v2993, %v2992
        %v3004 = vpack.c.b16 %v2995, %v2994
        %v3005 = vpack.c.b16 %v2997, %v2996
        %3014 = vmatprep.subr.bf16.mxu0 0
        %3015 = vmatpush1.bf16.msra.mxu0 %v2998
        %3016 = vmatprep.subr.bf16.mxu0 0
        %3017 = vmatpush1.bf16.msra.mxu0 %v2999
        %3018 = vmatprep.subr.bf16.mxu0 0
        %3019 = vmatpush1.bf16.msra.mxu0 %v3000
        %3020 = vmatprep.subr.bf16.mxu0 0
        %3021 = vmatpush1.bf16.msra.mxu0 %v3001
        %3022 = vmatprep.subr.bf16.mxu0 0
        %3023 = vmatpush1.bf16.msra.mxu0 %v3002
        %3024 = vmatprep.subr.bf16.mxu0 0
        %3025 = vmatpush1.bf16.msra.mxu0 %v3003
        %3026 = vmatprep.subr.bf16.mxu0 0
        %3027 = vmatpush1.bf16.msra.mxu0 %v3004
        %3028 = vmatprep.subr.bf16.mxu0 0
        %3029 = vmatpush1.bf16.msra.mxu0 %v3005
        %3030 = vmatprep.subr.bf16.mxu0 0
        %3031 = vmatpush1.bf16.msra.mxu0 0
        %3032 = vmatprep.subr.bf16.mxu0 0
        %3033 = vmatpush1.bf16.msra.mxu0 0
        %3034 = vmatprep.subr.bf16.mxu0 0
        %3035 = vmatpush1.bf16.msra.mxu0 0
        %3036 = vmatprep.subr.bf16.mxu0 0
        %3037 = vmatpush1.bf16.msra.mxu0 0
        %3038 = vmatprep.subr.bf16.mxu0 0
        %3039 = vmatpush1.bf16.msra.mxu0 0
        %3040 = vmatprep.subr.bf16.mxu0 0
        %3041 = vmatpush1.bf16.msra.mxu0 0
        %3042 = vmatprep.subr.bf16.mxu0 0
        %3043 = vmatpush1.bf16.msra.mxu0 0
        %3044 = vmatprep.subr.bf16.mxu0 0
        %3045 = vmatpush1.bf16.msra.mxu0 0
        %3046 = vmatprep.mubr.bf16.mxu0 0
        %3047 = vmatmul.mubr.bf16.gmra.mrb[0].mxu0 %v2935
        %v3048 = vpop.f32.mrb[0].mxu0
        %v3049 = vadd.f32 %v2964, %v3048
        %v3050 = vpop.f32.mrb[0].mxu0
        %v3051 = vpop.f32.mrb[0].mxu0
        %v3052 = vadd.f32 %v2964, %v3051
        %v3053 = vpop.f32.mrb[0].mxu0
        %3054 = vmatprep.mubr.bf16.mxu0 0
        %3055 = vmatmul.mubr.bf16.gmra.mrb[0].mxu0 %v2936
        %v3056 = vpop.f32.mrb[0].mxu0
        %v3057 = vadd.f32 %v2964, %v3056
        %v3058 = vpop.f32.mrb[0].mxu0
        %v3059 = vpop.f32.mrb[0].mxu0
        %v3060 = vadd.f32 %v2964, %v3059
        %v3061 = vpop.f32.mrb[0].mxu0
        %3062 = vmatprep.mubr.bf16.mxu0 0
        %3063 = vmatmul.mubr.bf16.gmra.mrb[0].mxu0 %v2937
        %v3064 = vpop.f32.mrb[0].mxu0
        %v3065 = vadd.f32 %v2964, %v3064
        %v3066 = vpop.f32.mrb[0].mxu0
        %v3067 = vpop.f32.mrb[0].mxu0
        %v3068 = vadd.f32 %v2964, %v3067
        %v3069 = vpop.f32.mrb[0].mxu0
        %3070 = vmatprep.mubr.bf16.mxu0 0
        %3071 = vmatmul.mubr.bf16.gmra.mrb[0].mxu0 %v2938
        %v3072 = vpop.f32.mrb[0].mxu0
        %v3073 = vadd.f32 %v2964, %v3072
        %v3074 = vpop.f32.mrb[0].mxu0
        %v3075 = vpop.f32.mrb[0].mxu0
        %v3076 = vadd.f32 %v2964, %v3075
        %v3077 = vpop.f32.mrb[0].mxu0
        %3078 = vmatprep.mubr.bf16.mxu0 0
        %3079 = vmatmul.mubr.bf16.gmra.mrb[0].mxu0 %v2939
        %v3080 = vpop.f32.mrb[0].mxu0
        %v3081 = vadd.f32 %v2964, %v3080
        %v3082 = vpop.f32.mrb[0].mxu0
        %v3083 = vpop.f32.mrb[0].mxu0
        %v3084 = vadd.f32 %v2964, %v3083
        %v3085 = vpop.f32.mrb[0].mxu0
        %3086 = vmatprep.mubr.bf16.mxu0 0
        %3087 = vmatmul.mubr.bf16.gmra.mrb[0].mxu0 %v2940
        %v3088 = vpop.f32.mrb[0].mxu0
        %v3089 = vadd.f32 %v2964, %v3088
        %v3090 = vpop.f32.mrb[0].mxu0
        %v3091 = vpop.f32.mrb[0].mxu0
        %v3092 = vadd.f32 %v2964, %v3091
        %v3093 = vpop.f32.mrb[0].mxu0
        %3094 = vmatprep.mubr.bf16.mxu0 0
        %3095 = vmatmul.mubr.bf16.gmra.mrb[0].mxu0 %v2941
        %v3096 = vpop.f32.mrb[0].mxu0
        %v3097 = vadd.f32 %v2964, %v3096
        %v3098 = vpop.f32.mrb[0].mxu0
        %v3099 = vpop.f32.mrb[0].mxu0
        %v3100 = vadd.f32 %v2964, %v3099
        %v3101 = vpop.f32.mrb[0].mxu0
        %3102 = vmatprep.mubr.bf16.mxu0 0
        %3103 = vmatmul.mubr.bf16.gmra.mrb[0].mxu0 %v2942
        %v3104 = vpop.f32.mrb[0].mxu0
        %v3105 = vadd.f32 %v2964, %v3104
        %v3106 = vpop.f32.mrb[0].mxu0
        %v3107 = vpop.f32.mrb[0].mxu0
        %v3108 = vadd.f32 %v2964, %v3107
        %v3109 = vpop.f32.mrb[0].mxu0
        %3110 = vdwg.mxu0
        %3111 = vst [vmem:[%s650] sm:$0xff] %v3049
        %3112 = vst [vmem:[%s650 + $0x8] sm:$0xff] %v3052
        %3113 = vst [vmem:[%s650 + $0x10] sm:$0xff] %v3057
        %3114 = vst [vmem:[%s650 + $0x18] sm:$0xff] %v3060
        %3115 = vst [vmem:[%s650 + $0x20] sm:$0xff] %v3065
        %3116 = vst [vmem:[%s650 + $0x28] sm:$0xff] %v3068
        %3117 = vst [vmem:[%s650 + $0x30] sm:$0xff] %v3073
        %3118 = vst [vmem:[%s650 + $0x38] sm:$0xff] %v3076
        %3119 = vst [vmem:[%s650 + $0x40] sm:$0xff] %v3081
        %3120 = vst [vmem:[%s650 + $0x48] sm:$0xff] %v3084
        %3121 = vst [vmem:[%s650 + $0x50] sm:$0xff] %v3089
        %3122 = vst [vmem:[%s650 + $0x58] sm:$0xff] %v3092
        %3123 = vst [vmem:[%s650 + $0x60] sm:$0xff] %v3097
        %3124 = vst [vmem:[%s650 + $0x68] sm:$0xff] %v3100
        %3125 = vst [vmem:[%s650 + $0x70] sm:$0xff] %v3105
        %3126 = vst [vmem:[%s650 + $0x78] sm:$0xff] %v3108
      $region96: #{_lambda_.3} parent=87 // pred_fallthru
        _
      %s3127 = smul.u32 16, %s32
      %p3128 = scmp.lt.s32.totalorder %s3127, 31
      %s3129 = scalar_select %p3128, %s3127, 31
      %s3130 = smul.addr %s3129, 8
      %s3131 = scalar_lea.vmem %s17, %s3130
      // Predicated region
      $region97: #{_lambda_.3} parent=87 // pred_check
        %p3132 = pneg %p440
      $region98: #{_lambda_.3} parent=87 // pred_check_branch
        %3134 = sbr.rel (%p3132) target = $region100
      $region99: #{_lambda_.3} parent=87 // pred_region
        %s3135 = smul.u32 16, %s32
      $region100: #{_lambda_.3} parent=87 // pred_fallthru
        _
    $region88: #{_lambda_.3} parent=5 // pred_fallthru
      _
    %p3136 = scmp.le.s32.totalorder 2, %s23
    // Predicated region
    $region101: #{_lambda_.3} parent=5 // pred_check
      %p3137 = pneg %p3136
    $region102: #{_lambda_.3} parent=5 // pred_check_branch
      %3139 = sbr.rel (%p3137) target = $region104
    $region103: #{_lambda_.3} parent=5 // pred_region
      %s3140 = ssub.s32 %s23, 2
      // Predicated region
      $region105: #{_lambda_.3} parent=103 // pred_check
        %p3141 = pneg %p446
      $region106: #{_lambda_.3} parent=103 // pred_check_branch
        %3143 = sbr.rel (%p3141) target = $region108
      $region107: #{_lambda_.3} parent=103 // pred_region
        %s3144 = smul.u32 16, %s34
        %p3145 = scmp.lt.s32.totalorder %s3144, 31
        %s3146 = scalar_select %p3145, %s3144, 31
        %s3147 = smul.addr %s3146, 8
        %s3148 = scalar_lea.vmem %s17, %s3147
      $region108: #{_lambda_.3} parent=103 // pred_fallthru
        _
    $region104: #{_lambda_.3} parent=5 // pred_fallthru
      _
  $region6: #{_lambda_.3} parent=0 // loop_footer
    %s27 = sadd.s32 1, %s23
  $region7: #{_lambda_.3} parent=0 // loop_footer_branch
    %22 = sbr.rel target = $region3
  $region8: #{_lambda_.3} parent=0 // loop_exit
    _

</llo_original>
